<compile_context>
chip_gen: v5e
topology: v5e:2x2
jax: 0.10.0
libtpu: 0.0.40
codegen_flags: <defaults>
</compile_context>

<pallas_src>
import functools

import jax
import jax.numpy as jnp
from jax.experimental import pallas as pl
from jax.experimental.pallas import tpu as pltpu

EPS = 1e-5                      # nn.BatchNorm2d default eps
LANE = 128
SUBLANE = 8


# ---------------------------------------------------------------------------
# small helpers
# ---------------------------------------------------------------------------
def _round_up(x, m):
    return ((x + m - 1) // m) * m


def _pick_tile(total, target, quantum=SUBLANE):
    """Largest divisor of `total` that is a multiple of `quantum` and <= target."""
    cap = min(max(target, quantum), total)
    for cand in range(cap, 0, -1):
        if total % cand == 0 and cand % quantum == 0:
            return cand
    return total


def _vmem_limit_bytes():
    """~75% of physical VMEM, clamped — leaves headroom on v7x (64 MiB/TC),
    lets v5e/v6e (128 MiB) use bigger tiles."""
    try:
        cap = int(pltpu.get_tpu_info().vmem_capacity_bytes)
    except Exception:
        cap = 128 * 1024 * 1024
    return max(32 * 1024 * 1024, min(cap * 3 // 4, 100 * 1024 * 1024))


def _compiler_params():
    return pltpu.CompilerParams(
        dimension_semantics=("parallel",),
        vmem_limit_bytes=_vmem_limit_bytes(),
    )


def _pack_stats(s, ss):
    """(1,C) sum and sum_sq -> full (8,C) block (rows 2..7 zero) so the stats
    store is a full-sublane, unmasked vst."""
    C = s.shape[-1]
    r = jax.lax.broadcasted_iota(jnp.int32, (8, C), 0)
    return jnp.where(r == 0, s, jnp.where(r == 1, ss, 0.0))


def _stats_block(y2d):
    """Per-tile per-channel (sum, sum_sq) of a (rows, C) f32 tensor -> (8, C)."""
    s = jnp.sum(y2d, axis=0, keepdims=True)
    ss = jnp.sum(y2d * y2d, axis=0, keepdims=True)
    return _pack_stats(s, ss)


def _bn_scale_shift(st_tiles, gamma, beta, count):
    """Reduce per-tile stats -> per-channel BN scale/shift (single FMA apply)."""
    s = jnp.sum(st_tiles[:, 0, :], axis=0, keepdims=True)      # (1, C)
    ss = jnp.sum(st_tiles[:, 1, :], axis=0, keepdims=True)     # (1, C)
    mean = s / count
    var = jnp.maximum(ss / count - mean * mean, 0.0)            # biased variance
    scale = gamma * jax.lax.rsqrt(var + EPS)
    shift = beta - mean * scale
    return scale, shift


# ---------------------------------------------------------------------------
# kernels
# ---------------------------------------------------------------------------
def conv1x1_stats_kernel(x_ref, w_ref, y_ref, st_ref, *, mm_dtype):
    """y = x @ w  (1x1 conv), plus per-tile BN partial stats of y (f32)."""
    y = jnp.dot(x_ref[...].astype(mm_dtype), w_ref[...],
                preferred_element_type=jnp.float32)
    y_ref[...] = y.astype(y_ref.dtype)
    st_ref[0] = _stats_block(y)


def bn_conv1x1_stats_kernel(h_ref, sc_ref, sh_ref, w_ref, st_ref, *, mm_dtype):
    """stats-only: y = relu(h*scale + shift) @ w; emit per-tile BN stats of y."""
    a = jnp.maximum(h_ref[...].astype(jnp.float32) * sc_ref[...] + sh_ref[...], 0.0)
    y = jnp.dot(a.astype(mm_dtype), w_ref[...], preferred_element_type=jnp.float32)
    st_ref[0] = _stats_block(y)


def bn_conv3x3_stats_kernel(h_ref, sc_ref, sh_ref, w_ref, y_ref, st_ref, pad_ref,
                            *, H, W):
    """BN1-apply + ReLU fused with a 3x3 / pad=1 conv, plus BN2 partial stats.

    h_ref:   (1, H, W, C)  raw conv1 output for one image (act dtype)
    w_ref:   (3, 3, C, C)  HWIO weights (channel-padded, mm dtype)
    pad_ref: (rows, C)     flat zero-haloed image, row pitch P = W+2 (mm dtype)
    """
    C = h_ref.shape[-1]
    P = W + 2
    L = H * P

    sc = sc_ref[...].reshape(1, 1, C)
    sh = sh_ref[...].reshape(1, 1, C)
    # BN1 apply + ReLU in f32, cast once to the matmul dtype.
    a = jnp.maximum(h_ref[0].astype(jnp.float32) * sc + sh, 0.0).astype(pad_ref.dtype)

    # Fill the flat padded image.  Only halo rows/columns are zero-stored, but
    # every scratch row is rewritten each step (safe under megacore sharding).
    nrows = pad_ref.shape[0]
    z2 = jnp.zeros((2, C), pad_ref.dtype)
    pad_ref[pl.ds(0, P + 1), :] = jnp.zeros((P + 1, C), pad_ref.dtype)  # top halo + left halo of row 0
    for h in range(H):
        base = (h + 1) * P
        pad_ref[pl.ds(base + 1, W), :] = a[h]                           # interior row h
        pad_ref[pl.ds(base + W + 1, 2), :] = z2                         # right halo h + left halo h+1
    bstart = (H + 1) * P + 1
    pad_ref[pl.ds(bstart, nrows - bstart), :] = jnp.zeros((nrows - bstart, C), pad_ref.dtype)

    # 9 shifted matmuls over contiguous strips of the flat padded image.
    # Strip row r = h*P + w ; rows with w >= W are garbage and never read out.
    acc = None
    for dy in range(3):
        for dx in range(3):
            patch = pad_ref[pl.ds(dy * P + dx, L), :]          # (L, C), contiguous
            t = jnp.dot(patch, w_ref[dy, dx], preferred_element_type=jnp.float32)
            acc = t if acc is None else acc + t
    # TODO(synk): on v6e/v7x (256-deep MXU) concatenating taps along K would
    # improve MXU fill, but requires an im2col-style duplication of the strips;
    # skipped since this pass is memory-bound.

    # Extract valid rows (drop the 2 garbage columns per image row), write the
    # bf16 output and accumulate f32 stats before the cast.
    s = jnp.zeros((1, C), jnp.float32)
    ss = jnp.zeros((1, C), jnp.float32)
    for h in range(H):
        row = acc[h * P:h * P + W]                             # (W, C) f32
        y_ref[0, h] = row.astype(y_ref.dtype)
        s = s + jnp.sum(row, axis=0, keepdims=True)
        ss = ss + jnp.sum(row * row, axis=0, keepdims=True)
    st_ref[0] = _pack_stats(s, ss)


def bn_conv1x1_bn_residual_relu_kernel(h_ref, sc2_ref, sh2_ref, w_ref, id_ref,
                                       sc3_ref, sh3_ref, o_ref, *, mm_dtype):
    """out = relu( (relu(h*sc2+sh2) @ w3) * sc3 + sh3 + identity )."""
    a = jnp.maximum(h_ref[...].astype(jnp.float32) * sc2_ref[...] + sh2_ref[...], 0.0)
    y = jnp.dot(a.astype(mm_dtype), w_ref[...], preferred_element_type=jnp.float32)
    o_ref[...] = jnp.maximum(y * sc3_ref[...] + sh3_ref[...] + id_ref[...], 0.0)


# ---------------------------------------------------------------------------
# wrapper
# ---------------------------------------------------------------------------
def bottleneck_forward(x_nchw, params, *, mm_dtype=jnp.bfloat16,
                       act_dtype=jnp.bfloat16, row_tile=1024):
    w1, g1, b1, w2, g2, b2, w3, g3, b3 = params
    N, Cin, H, W = x_nchw.shape
    width = w1.shape[1]
    Cout = w3.shape[1]
    assert Cin == Cout, "no downsample: inplanes must equal planes * expansion"

    f32 = jnp.float32
    Cin_p = _round_up(Cin, LANE)
    Wd_p = _round_up(width, LANE)
    Cout_p = _round_up(Cout, LANE)
    Cin_p = Cout_p = max(Cin_p, Cout_p)      # identity add needs equal padded width

    M = N * H * W
    assert M % SUBLANE == 0, "N*H*W must be a multiple of 8"
    TM = _pick_tile(M, row_tile)             # rows per tile for the 1x1-conv passes
    n_row_tiles = M // TM
    TN = 1                                   # images per 3x3-conv tile (halo in VMEM)
    n_img_tiles = N // TN
    # TODO(synk): images whose (H+2)*(W+2)*C padded plane does not fit VMEM (or
    # stride/dilation != 1) would need spatial row-strip tiling with halo rows.

    def pad_to(a, axis, size, value=0.0):
        pads = [(0, 0)] * a.ndim
        pads[axis] = (0, size - a.shape[axis])
        return jnp.pad(a, pads, constant_values=value)

    # ---- channel padding (lane-dense operands / outputs) -------------------
    # TODO(synk): the NCHW<->NHWC relayouts here are extra full HBM passes;
    # callers that can keep activations channels-last between blocks should
    # bypass them.
    x_nhwc = jnp.transpose(x_nchw, (0, 2, 3, 1)).astype(f32)
    x2d = pad_to(x_nhwc.reshape(M, Cin), 1, Cin_p)

    w1p = pad_to(pad_to(w1.astype(f32), 0, Cin_p), 1, Wd_p).astype(mm_dtype)
    w2p = pad_to(pad_to(w2.astype(f32), 2, Wd_p), 3, Wd_p).astype(mm_dtype)
    w3p = pad_to(pad_to(w3.astype(f32), 0, Wd_p), 1, Cout_p).astype(mm_dtype)

    g1p = pad_to(g1.reshape(1, -1).astype(f32), 1, Wd_p, 1.0)
    b1p = pad_to(b1.reshape(1, -1).astype(f32), 1, Wd_p)
    g2p = pad_to(g2.reshape(1, -1).astype(f32), 1, Wd_p, 1.0)
    b2p = pad_to(b2.reshape(1, -1).astype(f32), 1, Wd_p)
    g3p = pad_to(g3.reshape(1, -1).astype(f32), 1, Cout_p, 1.0)
    b3p = pad_to(b3.reshape(1, -1).astype(f32), 1, Cout_p)

    cp = _compiler_params()

    # ---- pass 1: conv1 (1x1) + per-tile BN1 partial stats -------------------
    y1, st1 = pl.pallas_call(
        functools.partial(conv1x1_stats_kernel, mm_dtype=mm_dtype),
        out_shape=(jax.ShapeDtypeStruct((M, Wd_p), act_dtype),
                   jax.ShapeDtypeStruct((n_row_tiles, 8, Wd_p), f32)),
        grid=(n_row_tiles,),
        in_specs=[pl.BlockSpec((TM, Cin_p), lambda i: (i, 0)),
                  pl.BlockSpec((Cin_p, Wd_p), lambda i: (0, 0))],
        out_specs=(pl.BlockSpec((TM, Wd_p), lambda i: (i, 0)),
                   pl.BlockSpec((1, 8, Wd_p), lambda i: (i, 0, 0))),
        compiler_params=cp,
    )(x2d, w1p)
    sc1, sh1 = _bn_scale_shift(st1, g1p, b1p, M)

    # ---- pass 2: BN1+ReLU fused with 3x3 conv (no im2col) + BN2 stats -------
    PAD_ROWS = _round_up((H + 2) * (W + 2) + 2, SUBLANE)   # +2: strip over-read slack
    y1_4d = y1.reshape(N, H, W, Wd_p)
    y2_4d, st2 = pl.pallas_call(
        functools.partial(bn_conv3x3_stats_kernel, H=H, W=W),
        out_shape=(jax.ShapeDtypeStruct((N, H, W, Wd_p), act_dtype),
                   jax.ShapeDtypeStruct((n_img_tiles, 8, Wd_p), f32)),
        grid=(n_img_tiles,),
        in_specs=[pl.BlockSpec((TN, H, W, Wd_p), lambda i: (i, 0, 0, 0)),
                  pl.BlockSpec((1, Wd_p), lambda i: (0, 0)),
                  pl.BlockSpec((1, Wd_p), lambda i: (0, 0)),
                  pl.BlockSpec((3, 3, Wd_p, Wd_p), lambda i: (0, 0, 0, 0))],
        out_specs=(pl.BlockSpec((TN, H, W, Wd_p), lambda i: (i, 0, 0, 0)),
                   pl.BlockSpec((1, 8, Wd_p), lambda i: (i, 0, 0))),
        scratch_shapes=[pltpu.VMEM((PAD_ROWS, Wd_p), mm_dtype)],
        compiler_params=cp,
    )(y1_4d, sc1, sh1, w2p)
    sc2, sh2 = _bn_scale_shift(st2, g2p, b2p, M)

    # ---- pass 3 (stats only): BN2+ReLU, conv3 (1x1), emit BN3 partial stats -
    y2 = y2_4d.reshape(M, Wd_p)
    st3 = pl.pallas_call(
        functools.partial(bn_conv1x1_stats_kernel, mm_dtype=mm_dtype),
        out_shape=jax.ShapeDtypeStruct((n_row_tiles, 8, Cout_p), f32),
        grid=(n_row_tiles,),
        in_specs=[pl.BlockSpec((TM, Wd_p), lambda i: (i, 0)),
                  pl.BlockSpec((1, Wd_p), lambda i: (0, 0)),
                  pl.BlockSpec((1, Wd_p), lambda i: (0, 0)),
                  pl.BlockSpec((Wd_p, Cout_p), lambda i: (0, 0))],
        out_specs=pl.BlockSpec((1, 8, Cout_p), lambda i: (i, 0, 0)),
        compiler_params=cp,
    )(y2, sc2, sh2, w3p)
    sc3, sh3 = _bn_scale_shift(st3, g3p, b3p, M)

    # ---- pass 4: recompute conv3 fused with BN3 + residual + ReLU -----------
    # (identity buffer aliased to the output; no y3 HBM round trip)
    out2d = pl.pallas_call(
        functools.partial(bn_conv1x1_bn_residual_relu_kernel, mm_dtype=mm_dtype),
        out_shape=jax.ShapeDtypeStruct((M, Cout_p), f32),
        grid=(n_row_tiles,),
        in_specs=[pl.BlockSpec((TM, Wd_p), lambda i: (i, 0)),
                  pl.BlockSpec((1, Wd_p), lambda i: (0, 0)),
                  pl.BlockSpec((1, Wd_p), lambda i: (0, 0)),
                  pl.BlockSpec((Wd_p, Cout_p), lambda i: (0, 0)),
                  pl.BlockSpec((TM, Cout_p), lambda i: (i, 0)),
                  pl.BlockSpec((1, Cout_p), lambda i: (0, 0)),
                  pl.BlockSpec((1, Cout_p), lambda i: (0, 0))],
        out_specs=pl.BlockSpec((TM, Cout_p), lambda i: (i, 0)),
        input_output_aliases={4: 0},
        compiler_params=cp,
    )(y2, sc2, sh2, w3p, x2d, sc3, sh3)

    out = out2d[:, :Cout].reshape(N, H, W, Cout)
    return jnp.transpose(out, (0, 3, 1, 2))          # back to NCHW
    # TODO(synk): BatchNorm running_mean/running_var buffer updates (a training
    # side effect that does not affect this forward output) are not emitted.


# ---------------------------------------------------------------------------
# Pure-JAX reference (same math, for a correctness check)
# ---------------------------------------------------------------------------
def bottleneck_ref(x_nchw, params):
    w1, g1, b1, w2, g2, b2, w3, g3, b3 = params
    x = jnp.transpose(x_nchw, (0, 2, 3, 1))

    def bn(h, g, b):
        mean = jnp.mean(h, axis=(0, 1, 2), keepdims=True)
        var = jnp.mean((h - mean) ** 2, axis=(0, 1, 2), keepdims=True)
        return (h - mean) * jax.lax.rsqrt(var + EPS) * g.reshape(1, 1, 1, -1) \
            + b.reshape(1, 1, 1, -1)

    h = jnp.einsum('nhwc,cd->nhwd', x, w1)
    h = jnp.maximum(bn(h, g1, b1), 0.0)
    h = jax.lax.conv_general_dilated(
        h, w2, window_strides=(1, 1), padding='SAME',
        dimension_numbers=('NHWC', 'HWIO', 'NHWC'))
    h = jnp.maximum(bn(h, g2, b2), 0.0)
    h = jnp.einsum('nhwc,cd->nhwd', h, w3)
    h = bn(h, g3, b3) + x
    h = jnp.maximum(h, 0.0)
    return h.transpose(0, 3, 1, 2)


if __name__ == "__main__":
    # Bottleneck(inplanes=16, planes=4): width = 4, out channels = 16 (= inplanes).
    N, inplanes, planes, H, W = 2, 16, 4, 16, 16
    width = planes                      # base_width=64, groups=1
    Cout = planes * 4                   # expansion = 4

    key = jax.random.PRNGKey(0)
    ks = jax.random.split(key, 10)
    x = jax.random.normal(ks[0], (N, inplanes, H, W), jnp.float32)

    # Deterministic synthetic parameters (conv weights have no bias).
    w1 = 0.1 * jax.random.normal(ks[1], (inplanes, width), jnp.float32)      # conv1 1x1
    w2 = 0.1 * jax.random.normal(ks[2], (3, 3, width, width), jnp.float32)   # conv2 3x3 (HWIO)
    w3 = 0.1 * jax.random.normal(ks[3], (width, Cout), jnp.float32)          # conv3 1x1
    g1 = 1.0 + 0.1 * jax.random.normal(ks[4], (1, width), jnp.float32)
    b1 = 0.1 * jax.random.normal(ks[5], (1, width), jnp.float32)
    g2 = 1.0 + 0.1 * jax.random.normal(ks[6], (1, width), jnp.float32)
    b2 = 0.1 * jax.random.normal(ks[7], (1, width), jnp.float32)
    g3 = 1.0 + 0.1 * jax.random.normal(ks[8], (1, Cout), jnp.float32)
    b3 = 0.1 * jax.random.normal(ks[9], (1, Cout), jnp.float32)
    params = (w1, g1, b1, w2, g2, b2, w3, g3, b3)

    ref = bottleneck_ref(x, params)

    # Exact-math config (f32 matmuls + f32 inter-pass streams); small row tile
    # so multi-tile BN statistics reduction is exercised.
    fwd_f32 = jax.jit(functools.partial(
        bottleneck_forward, mm_dtype=jnp.float32, act_dtype=jnp.float32,
        row_tile=128))
    out_f32 = jax.block_until_ready(fwd_f32(x, params))
    assert out_f32.shape == (N, Cout, H, W), out_f32.shape
    err = float(jnp.max(jnp.abs(out_f32 - ref)))
    assert err < 2e-3, f"f32 path max abs error {err}"

    # Default performance config: bf16 MXU inputs + bf16 inter-pass activations
    # (BN / residual math stays f32).
    fwd_perf = jax.jit(bottleneck_forward)
    out_perf = jax.block_until_ready(fwd_perf(x, params))
    err_perf = float(jnp.max(jnp.abs(out_perf - ref)))
    assert err_perf < 0.25, f"bf16 path max abs error {err_perf}"

    print("KERNEL_OK")
</pallas_src>

<mosaic_0001>
module attributes {stable_mosaic.version = 11 : i64} {
  func.func @conv1x1_stats_kernel(%arg0: i32, %arg1: memref<128x128xf32, #tpu.memory_space<vmem>>, %arg2: memref<128x128xf32, #tpu.memory_space<vmem>>, %arg3: memref<128x128xf32, #tpu.memory_space<vmem>>, %arg4: memref<1x8x128xf32, #tpu.memory_space<vmem>>) attributes {dimension_semantics = [#tpu.dimension_semantics<parallel>], iteration_bounds = array<i64: 4>, scalar_prefetch = 0 : i64, scratch_operands = 0 : i64, tpu.core_type = #tpu.core_type<tc>, window_params = [{transform_indices = @transform_0, window_bounds = array<i64: 128, 128>}, {pipeline_mode = #tpu.pipeline_mode<synchronous>, transform_indices = @transform_1, window_bounds = array<i64: 128, 128>}, {transform_indices = @transform_2, window_bounds = array<i64: 128, 128>}, {transform_indices = @transform_3, window_bounds = array<i64: 1, 8, 128>}]} {
    %c0 = arith.constant 0 : index
    %c0_0 = arith.constant 0 : index
    %0 = vector.load %arg1[%c0, %c0_0] : memref<128x128xf32, #tpu.memory_space<vmem>>, vector<128x128xf32>
    %c0_1 = arith.constant 0 : index
    %c0_2 = arith.constant 0 : index
    %1 = vector.load %arg2[%c0_1, %c0_2] : memref<128x128xf32, #tpu.memory_space<vmem>>, vector<128x128xf32>
    %cst = arith.constant dense<0.000000e+00> : vector<128x128xf32>
    %2 = tpu.matmul %0, %1, %cst {dimension_numbers = #tpu.dot_dimension_numbers<[1], [0], [0], [1], [0, 0, 1, 1], [], []>} : vector<128x128xf32>, vector<128x128xf32>, vector<128x128xf32> -> vector<128x128xf32>
    %c0_3 = arith.constant 0 : index
    %c0_4 = arith.constant 0 : index
    %3 = vector.load %arg3[%c0_3, %c0_4] : memref<128x128xf32, #tpu.memory_space<vmem>>, vector<128x128xf32>
    tpu.vector_store %arg3[%c0_3, %c0_4], %2 {strides = array<i32>} : memref<128x128xf32, #tpu.memory_space<vmem>>, vector<128x128xf32>,
    %cst_5 = arith.constant dense<0.000000e+00> : vector<128xf32>
    %4 = vector.multi_reduction <add>, %2, %cst_5 [0] : vector<128x128xf32> to vector<128xf32>
    %5 = vector.shape_cast %4 : vector<128xf32> to vector<1x128xf32>
    %6 = arith.mulf %2, %2 : vector<128x128xf32>
    %cst_6 = arith.constant dense<0.000000e+00> : vector<128xf32>
    %7 = vector.multi_reduction <add>, %6, %cst_6 [0] : vector<128x128xf32> to vector<128xf32>
    %8 = vector.shape_cast %7 : vector<128xf32> to vector<1x128xf32>
    %9 = tpu.iota {dimensions = array<i32: 0>} : vector<8x128xi32>
    %c0_i32 = arith.constant 0 : i32
    %10 = vector.broadcast %c0_i32 : i32 to vector<8x128xi32>
    %11 = arith.cmpi eq, %9, %10 : vector<8x128xi32>
    %c1_i32 = arith.constant 1 : i32
    %12 = vector.broadcast %c1_i32 : i32 to vector<8x128xi32>
    %13 = arith.cmpi eq, %9, %12 : vector<8x128xi32>
    %cst_7 = arith.constant 0.000000e+00 : f32
    %14 = vector.shape_cast %8 : vector<1x128xf32> to vector<1x128xf32>
    %15 = vector.broadcast %14 : vector<1x128xf32> to vector<8x128xf32>
    %16 = vector.broadcast %cst_7 : f32 to vector<8x128xf32>
    %17 = arith.select %13, %15, %16 : vector<8x128xi1>, vector<8x128xf32>
    %18 = vector.shape_cast %5 : vector<1x128xf32> to vector<1x128xf32>
    %19 = vector.broadcast %18 : vector<1x128xf32> to vector<8x128xf32>
    %20 = arith.select %11, %19, %17 : vector<8x128xi1>, vector<8x128xf32>
    %c0_8 = arith.constant 0 : index
    %c0_9 = arith.constant 0 : index
    %c0_10 = arith.constant 0 : index
    %21 = vector.load %arg4[%c0_8, %c0_9, %c0_10] : memref<1x8x128xf32, #tpu.memory_space<vmem>>, vector<1x8x128xf32>
    %22 = vector.shape_cast %21 : vector<1x8x128xf32> to vector<8x128xf32>
    %23 = vector.shape_cast %20 : vector<8x128xf32> to vector<1x8x128xf32>
    tpu.vector_store %arg4[%c0_8, %c0_9, %c0_10], %23 {strides = array<i32>} : memref<1x8x128xf32, #tpu.memory_space<vmem>>, vector<1x8x128xf32>,
    return
  }
  func.func @transform_0(%arg0: i32) -> (i32, i32) {
    %c0_i32 = arith.constant 0 : i32
    %c0_i32_0 = arith.constant 0 : i32
    return %arg0, %c0_i32 : i32, i32
  }
  func.func @transform_1(%arg0: i32) -> (i32, i32) {
    %c0_i32 = arith.constant 0 : i32
    %c0_i32_0 = arith.constant 0 : i32
    %c0_i32_1 = arith.constant 0 : i32
    return %c0_i32, %c0_i32_0 : i32, i32
  }
  func.func @transform_2(%arg0: i32) -> (i32, i32) {
    %c0_i32 = arith.constant 0 : i32
    %c0_i32_0 = arith.constant 0 : i32
    return %arg0, %c0_i32 : i32, i32
  }
  func.func @transform_3(%arg0: i32) -> (i32, i32, i32) {
    %c0_i32 = arith.constant 0 : i32
    %c0_i32_0 = arith.constant 0 : i32
    %c0_i32_1 = arith.constant 0 : i32
    return %arg0, %c0_i32, %c0_i32_0 : i32, i32, i32
  }
}

module attributes {stable_mosaic.version = 11 : i64} {
  func.func @bn_conv1x1_stats_kernel(%arg0: i32, %arg1: memref<128x128xf32, #tpu.memory_space<vmem>>, %arg2: memref<1x128xf32, #tpu.memory_space<vmem>>, %arg3: memref<1x128xf32, #tpu.memory_space<vmem>>, %arg4: memref<128x128xf32, #tpu.memory_space<vmem>>, %arg5: memref<1x8x128xf32, #tpu.memory_space<vmem>>) attributes {dimension_semantics = [#tpu.dimension_semantics<parallel>], iteration_bounds = array<i64: 4>, scalar_prefetch = 0 : i64, scratch_operands = 0 : i64, tpu.core_type = #tpu.core_type<tc>, window_params = [{transform_indices = @transform_0, window_bounds = array<i64: 128, 128>}, {pipeline_mode = #tpu.pipeline_mode<synchronous>, transform_indices = @transform_1, window_bounds = array<i64: 1, 128>}, {pipeline_mode = #tpu.pipeline_mode<synchronous>, transform_indices = @transform_2, window_bounds = array<i64: 1, 128>}, {pipeline_mode = #tpu.pipeline_mode<synchronous>, transform_indices = @transform_3, window_bounds = array<i64: 128, 128>}, {transform_indices = @transform_4, window_bounds = array<i64: 1, 8, 128>}]} {
    %c0 = arith.constant 0 : index
    %c0_0 = arith.constant 0 : index
    %0 = vector.load %arg1[%c0, %c0_0] : memref<128x128xf32, #tpu.memory_space<vmem>>, vector<128x128xf32>
    %c0_1 = arith.constant 0 : index
    %c0_2 = arith.constant 0 : index
    %1 = vector.load %arg2[%c0_1, %c0_2] : memref<1x128xf32, #tpu.memory_space<vmem>>, vector<1x128xf32>
    %2 = vector.broadcast %1 : vector<1x128xf32> to vector<128x128xf32>
    %3 = arith.mulf %0, %2 : vector<128x128xf32>
    %c0_3 = arith.constant 0 : index
    %c0_4 = arith.constant 0 : index
    %4 = vector.load %arg3[%c0_3, %c0_4] : memref<1x128xf32, #tpu.memory_space<vmem>>, vector<1x128xf32>
    %5 = vector.broadcast %4 : vector<1x128xf32> to vector<128x128xf32>
    %6 = arith.addf %3, %5 : vector<128x128xf32>
    %cst = arith.constant 0.000000e+00 : f32
    %7 = vector.broadcast %cst : f32 to vector<128x128xf32>
    %8 = arith.maximumf %6, %7 : vector<128x128xf32>
    %c0_5 = arith.constant 0 : index
    %c0_6 = arith.constant 0 : index
    %9 = vector.load %arg4[%c0_5, %c0_6] : memref<128x128xf32, #tpu.memory_space<vmem>>, vector<128x128xf32>
    %cst_7 = arith.constant dense<0.000000e+00> : vector<128x128xf32>
    %10 = tpu.matmul %8, %9, %cst_7 {dimension_numbers = #tpu.dot_dimension_numbers<[1], [0], [0], [1], [0, 0, 1, 1], [], []>} : vector<128x128xf32>, vector<128x128xf32>, vector<128x128xf32> -> vector<128x128xf32>
    %cst_8 = arith.constant dense<0.000000e+00> : vector<128xf32>
    %11 = vector.multi_reduction <add>, %10, %cst_8 [0] : vector<128x128xf32> to vector<128xf32>
    %12 = vector.shape_cast %11 : vector<128xf32> to vector<1x128xf32>
    %13 = arith.mulf %10, %10 : vector<128x128xf32>
    %cst_9 = arith.constant dense<0.000000e+00> : vector<128xf32>
    %14 = vector.multi_reduction <add>, %13, %cst_9 [0] : vector<128x128xf32> to vector<128xf32>
    %15 = vector.shape_cast %14 : vector<128xf32> to vector<1x128xf32>
    %16 = tpu.iota {dimensions = array<i32: 0>} : vector<8x128xi32>
    %c0_i32 = arith.constant 0 : i32
    %17 = vector.broadcast %c0_i32 : i32 to vector<8x128xi32>
    %18 = arith.cmpi eq, %16, %17 : vector<8x128xi32>
    %c1_i32 = arith.constant 1 : i32
    %19 = vector.broadcast %c1_i32 : i32 to vector<8x128xi32>
    %20 = arith.cmpi eq, %16, %19 : vector<8x128xi32>
    %cst_10 = arith.constant 0.000000e+00 : f32
    %21 = vector.shape_cast %15 : vector<1x128xf32> to vector<1x128xf32>
    %22 = vector.broadcast %21 : vector<1x128xf32> to vector<8x128xf32>
    %23 = vector.broadcast %cst_10 : f32 to vector<8x128xf32>
    %24 = arith.select %20, %22, %23 : vector<8x128xi1>, vector<8x128xf32>
    %25 = vector.shape_cast %12 : vector<1x128xf32> to vector<1x128xf32>
    %26 = vector.broadcast %25 : vector<1x128xf32> to vector<8x128xf32>
    %27 = arith.select %18, %26, %24 : vector<8x128xi1>, vector<8x128xf32>
    %c0_11 = arith.constant 0 : index
    %c0_12 = arith.constant 0 : index
    %c0_13 = arith.constant 0 : index
    %28 = vector.load %arg5[%c0_11, %c0_12, %c0_13] : memref<1x8x128xf32, #tpu.memory_space<vmem>>, vector<1x8x128xf32>
    %29 = vector.shape_cast %28 : vector<1x8x128xf32> to vector<8x128xf32>
    %30 = vector.shape_cast %27 : vector<8x128xf32> to vector<1x8x128xf32>
    tpu.vector_store %arg5[%c0_11, %c0_12, %c0_13], %30 {strides = array<i32>} : memref<1x8x128xf32, #tpu.memory_space<vmem>>, vector<1x8x128xf32>,
    return
  }
  func.func @transform_0(%arg0: i32) -> (i32, i32) {
    %c0_i32 = arith.constant 0 : i32
    %c0_i32_0 = arith.constant 0 : i32
    return %arg0, %c0_i32 : i32, i32
  }
  func.func @transform_1(%arg0: i32) -> (i32, i32) {
    %c0_i32 = arith.constant 0 : i32
    %c0_i32_0 = arith.constant 0 : i32
    %c0_i32_1 = arith.constant 0 : i32
    return %c0_i32, %c0_i32_0 : i32, i32
  }
  func.func @transform_2(%arg0: i32) -> (i32, i32) {
    %c0_i32 = arith.constant 0 : i32
    %c0_i32_0 = arith.constant 0 : i32
    %c0_i32_1 = arith.constant 0 : i32
    return %c0_i32, %c0_i32_0 : i32, i32
  }
  func.func @transform_3(%arg0: i32) -> (i32, i32) {
    %c0_i32 = arith.constant 0 : i32
    %c0_i32_0 = arith.constant 0 : i32
    %c0_i32_1 = arith.constant 0 : i32
    return %c0_i32, %c0_i32_0 : i32, i32
  }
  func.func @transform_4(%arg0: i32) -> (i32, i32, i32) {
    %c0_i32 = arith.constant 0 : i32
    %c0_i32_0 = arith.constant 0 : i32
    %c0_i32_1 = arith.constant 0 : i32
    return %arg0, %c0_i32, %c0_i32_0 : i32, i32, i32
  }
}

module attributes {stable_mosaic.version = 11 : i64} {
  func.func @bn_conv3x3_stats_kernel(%arg0: i32, %arg1: memref<1x16x16x128xf32, #tpu.memory_space<vmem>>, %arg2: memref<1x128xf32, #tpu.memory_space<vmem>>, %arg3: memref<1x128xf32, #tpu.memory_space<vmem>>, %arg4: memref<3x3x128x128xf32, #tpu.memory_space<vmem>>, %arg5: memref<1x16x16x128xf32, #tpu.memory_space<vmem>>, %arg6: memref<1x8x128xf32, #tpu.memory_space<vmem>>, %arg7: memref<328x128xf32, #tpu.memory_space<vmem>>) attributes {dimension_semantics = [#tpu.dimension_semantics<parallel>], iteration_bounds = array<i64: 2>, scalar_prefetch = 0 : i64, scratch_operands = 1 : i64, tpu.core_type = #tpu.core_type<tc>, window_params = [{transform_indices = @transform_0, window_bounds = array<i64: 1, 16, 16, 128>}, {pipeline_mode = #tpu.pipeline_mode<synchronous>, transform_indices = @transform_1, window_bounds = array<i64: 1, 128>}, {pipeline_mode = #tpu.pipeline_mode<synchronous>, transform_indices = @transform_2, window_bounds = array<i64: 1, 128>}, {pipeline_mode = #tpu.pipeline_mode<synchronous>, transform_indices = @transform_3, window_bounds = array<i64: 3, 3, 128, 128>}, {transform_indices = @transform_4, window_bounds = array<i64: 1, 16, 16, 128>}, {transform_indices = @transform_5, window_bounds = array<i64: 1, 8, 128>}]} {
    %c0 = arith.constant 0 : index
    %c0_0 = arith.constant 0 : index
    %0 = vector.load %arg2[%c0, %c0_0] : memref<1x128xf32, #tpu.memory_space<vmem>>, vector<1x128xf32>
    %1 = vector.shape_cast %0 : vector<1x128xf32> to vector<1x1x128xf32>
    %c0_1 = arith.constant 0 : index
    %c0_2 = arith.constant 0 : index
    %2 = vector.load %arg3[%c0_1, %c0_2] : memref<1x128xf32, #tpu.memory_space<vmem>>, vector<1x128xf32>
    %3 = vector.shape_cast %2 : vector<1x128xf32> to vector<1x1x128xf32>
    %c0_3 = arith.constant 0 : index
    %c0_4 = arith.constant 0 : index
    %c0_5 = arith.constant 0 : index
    %c0_6 = arith.constant 0 : index
    %4 = vector.load %arg1[%c0_3, %c0_4, %c0_5, %c0_6] : memref<1x16x16x128xf32, #tpu.memory_space<vmem>>, vector<1x16x16x128xf32>
    %5 = vector.shape_cast %4 : vector<1x16x16x128xf32> to vector<16x16x128xf32>
    %6 = vector.broadcast %1 : vector<1x1x128xf32> to vector<16x16x128xf32>
    %7 = arith.mulf %5, %6 : vector<16x16x128xf32>
    %8 = vector.broadcast %3 : vector<1x1x128xf32> to vector<16x16x128xf32>
    %9 = arith.addf %7, %8 : vector<16x16x128xf32>
    %cst = arith.constant 0.000000e+00 : f32
    %10 = vector.broadcast %cst : f32 to vector<16x16x128xf32>
    %11 = arith.maximumf %9, %10 : vector<16x16x128xf32>
    %cst_7 = arith.constant 0.000000e+00 : f32
    %12 = vector.broadcast %cst_7 : f32 to vector<2x128xf32>
    %cst_8 = arith.constant 0.000000e+00 : f32
    %13 = vector.broadcast %cst_8 : f32 to vector<19x128xf32>
    %c0_9 = arith.constant 0 : index
    %c0_10 = arith.constant 0 : index
    %14 = vector.load %arg7[%c0_9, %c0_10] : memref<328x128xf32, #tpu.memory_space<vmem>>, vector<19x128xf32>
    tpu.vector_store %arg7[%c0_9, %c0_10], %13 {strides = array<i32>} : memref<328x128xf32, #tpu.memory_space<vmem>>, vector<19x128xf32>,
    %15 = vector.extract_strided_slice %11 {offsets = [0, 0, 0], sizes = [1, 16, 128], strides = [1, 1, 1]} : vector<16x16x128xf32> to vector<1x16x128xf32>
    %16 = vector.shape_cast %15 : vector<1x16x128xf32> to vector<16x128xf32>
    %c19 = arith.constant 19 : index
    %c0_11 = arith.constant 0 : index
    %17 = vector.load %arg7[%c19, %c0_11] : memref<328x128xf32, #tpu.memory_space<vmem>>, vector<16x128xf32>
    tpu.vector_store %arg7[%c19, %c0_11], %16 {strides = array<i32>} : memref<328x128xf32, #tpu.memory_space<vmem>>, vector<16x128xf32>,
    %c35 = arith.constant 35 : index
    %c0_12 = arith.constant 0 : index
    %18 = vector.load %arg7[%c35, %c0_12] : memref<328x128xf32, #tpu.memory_space<vmem>>, vector<2x128xf32>
    tpu.vector_store %arg7[%c35, %c0_12], %12 {strides = array<i32>} : memref<328x128xf32, #tpu.memory_space<vmem>>, vector<2x128xf32>,
    %19 = vector.extract_strided_slice %11 {offsets = [1, 0, 0], sizes = [1, 16, 128], strides = [1, 1, 1]} : vector<16x16x128xf32> to vector<1x16x128xf32>
    %20 = vector.shape_cast %19 : vector<1x16x128xf32> to vector<16x128xf32>
    %c37 = arith.constant 37 : index
    %c0_13 = arith.constant 0 : index
    %21 = vector.load %arg7[%c37, %c0_13] : memref<328x128xf32, #tpu.memory_space<vmem>>, vector<16x128xf32>
    tpu.vector_store %arg7[%c37, %c0_13], %20 {strides = array<i32>} : memref<328x128xf32, #tpu.memory_space<vmem>>, vector<16x128xf32>,
    %c53 = arith.constant 53 : index
    %c0_14 = arith.constant 0 : index
    %22 = vector.load %arg7[%c53, %c0_14] : memref<328x128xf32, #tpu.memory_space<vmem>>, vector<2x128xf32>
    tpu.vector_store %arg7[%c53, %c0_14], %12 {strides = array<i32>} : memref<328x128xf32, #tpu.memory_space<vmem>>, vector<2x128xf32>,
    %23 = vector.extract_strided_slice %11 {offsets = [2, 0, 0], sizes = [1, 16, 128], strides = [1, 1, 1]} : vector<16x16x128xf32> to vector<1x16x128xf32>
    %24 = vector.shape_cast %23 : vector<1x16x128xf32> to vector<16x128xf32>
    %c55 = arith.constant 55 : index
    %c0_15 = arith.constant 0 : index
    %25 = vector.load %arg7[%c55, %c0_15] : memref<328x128xf32, #tpu.memory_space<vmem>>, vector<16x128xf32>
    tpu.vector_store %arg7[%c55, %c0_15], %24 {strides = array<i32>} : memref<328x128xf32, #tpu.memory_space<vmem>>, vector<16x128xf32>,
    %c71 = arith.constant 71 : index
    %c0_16 = arith.constant 0 : index
    %26 = vector.load %arg7[%c71, %c0_16] : memref<328x128xf32, #tpu.memory_space<vmem>>, vector<2x128xf32>
    tpu.vector_store %arg7[%c71, %c0_16], %12 {strides = array<i32>} : memref<328x128xf32, #tpu.memory_space<vmem>>, vector<2x128xf32>,
    %27 = vector.extract_strided_slice %11 {offsets = [3, 0, 0], sizes = [1, 16, 128], strides = [1, 1, 1]} : vector<16x16x128xf32> to vector<1x16x128xf32>
    %28 = vector.shape_cast %27 : vector<1x16x128xf32> to vector<16x128xf32>
    %c73 = arith.constant 73 : index
    %c0_17 = arith.constant 0 : index
    %29 = vector.load %arg7[%c73, %c0_17] : memref<328x128xf32, #tpu.memory_space<vmem>>, vector<16x128xf32>
    tpu.vector_store %arg7[%c73, %c0_17], %28 {strides = array<i32>} : memref<328x128xf32, #tpu.memory_space<vmem>>, vector<16x128xf32>,
    %c89 = arith.constant 89 : index
    %c0_18 = arith.constant 0 : index
    %30 = vector.load %arg7[%c89, %c0_18] : memref<328x128xf32, #tpu.memory_space<vmem>>, vector<2x128xf32>
    tpu.vector_store %arg7[%c89, %c0_18], %12 {strides = array<i32>} : memref<328x128xf32, #tpu.memory_space<vmem>>, vector<2x128xf32>,
    %31 = vector.extract_strided_slice %11 {offsets = [4, 0, 0], sizes = [1, 16, 128], strides = [1, 1, 1]} : vector<16x16x128xf32> to vector<1x16x128xf32>
    %32 = vector.shape_cast %31 : vector<1x16x128xf32> to vector<16x128xf32>
    %c91 = arith.constant 91 : index
    %c0_19 = arith.constant 0 : index
    %33 = vector.load %arg7[%c91, %c0_19] : memref<328x128xf32, #tpu.memory_space<vmem>>, vector<16x128xf32>
    tpu.vector_store %arg7[%c91, %c0_19], %32 {strides = array<i32>} : memref<328x128xf32, #tpu.memory_space<vmem>>, vector<16x128xf32>,
    %c107 = arith.constant 107 : index
    %c0_20 = arith.constant 0 : index
    %34 = vector.load %arg7[%c107, %c0_20] : memref<328x128xf32, #tpu.memory_space<vmem>>, vector<2x128xf32>
    tpu.vector_store %arg7[%c107, %c0_20], %12 {strides = array<i32>} : memref<328x128xf32, #tpu.memory_space<vmem>>, vector<2x128xf32>,
    %35 = vector.extract_strided_slice %11 {offsets = [5, 0, 0], sizes = [1, 16, 128], strides = [1, 1, 1]} : vector<16x16x128xf32> to vector<1x16x128xf32>
    %36 = vector.shape_cast %35 : vector<1x16x128xf32> to vector<16x128xf32>
    %c109 = arith.constant 109 : index
    %c0_21 = arith.constant 0 : index
    %37 = vector.load %arg7[%c109, %c0_21] : memref<328x128xf32, #tpu.memory_space<vmem>>, vector<16x128xf32>
    tpu.vector_store %arg7[%c109, %c0_21], %36 {strides = array<i32>} : memref<328x128xf32, #tpu.memory_space<vmem>>, vector<16x128xf32>,
    %c125 = arith.constant 125 : index
    %c0_22 = arith.constant 0 : index
    %38 = vector.load %arg7[%c125, %c0_22] : memref<328x128xf32, #tpu.memory_space<vmem>>, vector<2x128xf32>
    tpu.vector_store %arg7[%c125, %c0_22], %12 {strides = array<i32>} : memref<328x128xf32, #tpu.memory_space<vmem>>, vector<2x128xf32>,
    %39 = vector.extract_strided_slice %11 {offsets = [6, 0, 0], sizes = [1, 16, 128], strides = [1, 1, 1]} : vector<16x16x128xf32> to vector<1x16x128xf32>
    %40 = vector.shape_cast %39 : vector<1x16x128xf32> to vector<16x128xf32>
    %c127 = arith.constant 127 : index
    %c0_23 = arith.constant 0 : index
    %41 = vector.load %arg7[%c127, %c0_23] : memref<328x128xf32, #tpu.memory_space<vmem>>, vector<16x128xf32>
    tpu.vector_store %arg7[%c127, %c0_23], %40 {strides = array<i32>} : memref<328x128xf32, #tpu.memory_space<vmem>>, vector<16x128xf32>,
    %c143 = arith.constant 143 : index
    %c0_24 = arith.constant 0 : index
    %42 = vector.load %arg7[%c143, %c0_24] : memref<328x128xf32, #tpu.memory_space<vmem>>, vector<2x128xf32>
    tpu.vector_store %arg7[%c143, %c0_24], %12 {strides = array<i32>} : memref<328x128xf32, #tpu.memory_space<vmem>>, vector<2x128xf32>,
    %43 = vector.extract_strided_slice %11 {offsets = [7, 0, 0], sizes = [1, 16, 128], strides = [1, 1, 1]} : vector<16x16x128xf32> to vector<1x16x128xf32>
    %44 = vector.shape_cast %43 : vector<1x16x128xf32> to vector<16x128xf32>
    %c145 = arith.constant 145 : index
    %c0_25 = arith.constant 0 : index
    %45 = vector.load %arg7[%c145, %c0_25] : memref<328x128xf32, #tpu.memory_space<vmem>>, vector<16x128xf32>
    tpu.vector_store %arg7[%c145, %c0_25], %44 {strides = array<i32>} : memref<328x128xf32, #tpu.memory_space<vmem>>, vector<16x128xf32>,
    %c161 = arith.constant 161 : index
    %c0_26 = arith.constant 0 : index
    %46 = vector.load %arg7[%c161, %c0_26] : memref<328x128xf32, #tpu.memory_space<vmem>>, vector<2x128xf32>
    tpu.vector_store %arg7[%c161, %c0_26], %12 {strides = array<i32>} : memref<328x128xf32, #tpu.memory_space<vmem>>, vector<2x128xf32>,
    %47 = vector.extract_strided_slice %11 {offsets = [8, 0, 0], sizes = [1, 16, 128], strides = [1, 1, 1]} : vector<16x16x128xf32> to vector<1x16x128xf32>
    %48 = vector.shape_cast %47 : vector<1x16x128xf32> to vector<16x128xf32>
    %c163 = arith.constant 163 : index
    %c0_27 = arith.constant 0 : index
    %49 = vector.load %arg7[%c163, %c0_27] : memref<328x128xf32, #tpu.memory_space<vmem>>, vector<16x128xf32>
    tpu.vector_store %arg7[%c163, %c0_27], %48 {strides = array<i32>} : memref<328x128xf32, #tpu.memory_space<vmem>>, vector<16x128xf32>,
    %c179 = arith.constant 179 : index
    %c0_28 = arith.constant 0 : index
    %50 = vector.load %arg7[%c179, %c0_28] : memref<328x128xf32, #tpu.memory_space<vmem>>, vector<2x128xf32>
    tpu.vector_store %arg7[%c179, %c0_28], %12 {strides = array<i32>} : memref<328x128xf32, #tpu.memory_space<vmem>>, vector<2x128xf32>,
    %51 = vector.extract_strided_slice %11 {offsets = [9, 0, 0], sizes = [1, 16, 128], strides = [1, 1, 1]} : vector<16x16x128xf32> to vector<1x16x128xf32>
    %52 = vector.shape_cast %51 : vector<1x16x128xf32> to vector<16x128xf32>
    %c181 = arith.constant 181 : index
    %c0_29 = arith.constant 0 : index
    %53 = vector.load %arg7[%c181, %c0_29] : memref<328x128xf32, #tpu.memory_space<vmem>>, vector<16x128xf32>
    tpu.vector_store %arg7[%c181, %c0_29], %52 {strides = array<i32>} : memref<328x128xf32, #tpu.memory_space<vmem>>, vector<16x128xf32>,
    %c197 = arith.constant 197 : index
    %c0_30 = arith.constant 0 : index
    %54 = vector.load %arg7[%c197, %c0_30] : memref<328x128xf32, #tpu.memory_space<vmem>>, vector<2x128xf32>
    tpu.vector_store %arg7[%c197, %c0_30], %12 {strides = array<i32>} : memref<328x128xf32, #tpu.memory_space<vmem>>, vector<2x128xf32>,
    %55 = vector.extract_strided_slice %11 {offsets = [10, 0, 0], sizes = [1, 16, 128], strides = [1, 1, 1]} : vector<16x16x128xf32> to vector<1x16x128xf32>
    %56 = vector.shape_cast %55 : vector<1x16x128xf32> to vector<16x128xf32>
    %c199 = arith.constant 199 : index
    %c0_31 = arith.constant 0 : index
    %57 = vector.load %arg7[%c199, %c0_31] : memref<328x128xf32, #tpu.memory_space<vmem>>, vector<16x128xf32>
    tpu.vector_store %arg7[%c199, %c0_31], %56 {strides = array<i32>} : memref<328x128xf32, #tpu.memory_space<vmem>>, vector<16x128xf32>,
    %c215 = arith.constant 215 : index
    %c0_32 = arith.constant 0 : index
    %58 = vector.load %arg7[%c215, %c0_32] : memref<328x128xf32, #tpu.memory_space<vmem>>, vector<2x128xf32>
    tpu.vector_store %arg7[%c215, %c0_32], %12 {strides = array<i32>} : memref<328x128xf32, #tpu.memory_space<vmem>>, vector<2x128xf32>,
    %59 = vector.extract_strided_slice %11 {offsets = [11, 0, 0], sizes = [1, 16, 128], strides = [1, 1, 1]} : vector<16x16x128xf32> to vector<1x16x128xf32>
    %60 = vector.shape_cast %59 : vector<1x16x128xf32> to vector<16x128xf32>
    %c217 = arith.constant 217 : index
    %c0_33 = arith.constant 0 : index
    %61 = vector.load %arg7[%c217, %c0_33] : memref<328x128xf32, #tpu.memory_space<vmem>>, vector<16x128xf32>
    tpu.vector_store %arg7[%c217, %c0_33], %60 {strides = array<i32>} : memref<328x128xf32, #tpu.memory_space<vmem>>, vector<16x128xf32>,
    %c233 = arith.constant 233 : index
    %c0_34 = arith.constant 0 : index
    %62 = vector.load %arg7[%c233, %c0_34] : memref<328x128xf32, #tpu.memory_space<vmem>>, vector<2x128xf32>
    tpu.vector_store %arg7[%c233, %c0_34], %12 {strides = array<i32>} : memref<328x128xf32, #tpu.memory_space<vmem>>, vector<2x128xf32>,
    %63 = vector.extract_strided_slice %11 {offsets = [12, 0, 0], sizes = [1, 16, 128], strides = [1, 1, 1]} : vector<16x16x128xf32> to vector<1x16x128xf32>
    %64 = vector.shape_cast %63 : vector<1x16x128xf32> to vector<16x128xf32>
    %c235 = arith.constant 235 : index
    %c0_35 = arith.constant 0 : index
    %65 = vector.load %arg7[%c235, %c0_35] : memref<328x128xf32, #tpu.memory_space<vmem>>, vector<16x128xf32>
    tpu.vector_store %arg7[%c235, %c0_35], %64 {strides = array<i32>} : memref<328x128xf32, #tpu.memory_space<vmem>>, vector<16x128xf32>,
    %c251 = arith.constant 251 : index
    %c0_36 = arith.constant 0 : index
    %66 = vector.load %arg7[%c251, %c0_36] : memref<328x128xf32, #tpu.memory_space<vmem>>, vector<2x128xf32>
    tpu.vector_store %arg7[%c251, %c0_36], %12 {strides = array<i32>} : memref<328x128xf32, #tpu.memory_space<vmem>>, vector<2x128xf32>,
    %67 = vector.extract_strided_slice %11 {offsets = [13, 0, 0], sizes = [1, 16, 128], strides = [1, 1, 1]} : vector<16x16x128xf32> to vector<1x16x128xf32>
    %68 = vector.shape_cast %67 : vector<1x16x128xf32> to vector<16x128xf32>
    %c253 = arith.constant 253 : index
    %c0_37 = arith.constant 0 : index
    %69 = vector.load %arg7[%c253, %c0_37] : memref<328x128xf32, #tpu.memory_space<vmem>>, vector<16x128xf32>
    tpu.vector_store %arg7[%c253, %c0_37], %68 {strides = array<i32>} : memref<328x128xf32, #tpu.memory_space<vmem>>, vector<16x128xf32>,
    %c269 = arith.constant 269 : index
    %c0_38 = arith.constant 0 : index
    %70 = vector.load %arg7[%c269, %c0_38] : memref<328x128xf32, #tpu.memory_space<vmem>>, vector<2x128xf32>
    tpu.vector_store %arg7[%c269, %c0_38], %12 {strides = array<i32>} : memref<328x128xf32, #tpu.memory_space<vmem>>, vector<2x128xf32>,
    %71 = vector.extract_strided_slice %11 {offsets = [14, 0, 0], sizes = [1, 16, 128], strides = [1, 1, 1]} : vector<16x16x128xf32> to vector<1x16x128xf32>
    %72 = vector.shape_cast %71 : vector<1x16x128xf32> to vector<16x128xf32>
    %c271 = arith.constant 271 : index
    %c0_39 = arith.constant 0 : index
    %73 = vector.load %arg7[%c271, %c0_39] : memref<328x128xf32, #tpu.memory_space<vmem>>, vector<16x128xf32>
    tpu.vector_store %arg7[%c271, %c0_39], %72 {strides = array<i32>} : memref<328x128xf32, #tpu.memory_space<vmem>>, vector<16x128xf32>,
    %c287 = arith.constant 287 : index
    %c0_40 = arith.constant 0 : index
    %74 = vector.load %arg7[%c287, %c0_40] : memref<328x128xf32, #tpu.memory_space<vmem>>, vector<2x128xf32>
    tpu.vector_store %arg7[%c287, %c0_40], %12 {strides = array<i32>} : memref<328x128xf32, #tpu.memory_space<vmem>>, vector<2x128xf32>,
    %75 = vector.extract_strided_slice %11 {offsets = [15, 0, 0], sizes = [1, 16, 128], strides = [1, 1, 1]} : vector<16x16x128xf32> to vector<1x16x128xf32>
    %76 = vector.shape_cast %75 : vector<1x16x128xf32> to vector<16x128xf32>
    %c289 = arith.constant 289 : index
    %c0_41 = arith.constant 0 : index
    %77 = vector.load %arg7[%c289, %c0_41] : memref<328x128xf32, #tpu.memory_space<vmem>>, vector<16x128xf32>
    tpu.vector_store %arg7[%c289, %c0_41], %76 {strides = array<i32>} : memref<328x128xf32, #tpu.memory_space<vmem>>, vector<16x128xf32>,
    %c305 = arith.constant 305 : index
    %c0_42 = arith.constant 0 : index
    %78 = vector.load %arg7[%c305, %c0_42] : memref<328x128xf32, #tpu.memory_space<vmem>>, vector<2x128xf32>
    tpu.vector_store %arg7[%c305, %c0_42], %12 {strides = array<i32>} : memref<328x128xf32, #tpu.memory_space<vmem>>, vector<2x128xf32>,
    %cst_43 = arith.constant 0.000000e+00 : f32
    %79 = vector.broadcast %cst_43 : f32 to vector<21x128xf32>
    %c307 = arith.constant 307 : index
    %c0_44 = arith.constant 0 : index
    %80 = vector.load %arg7[%c307, %c0_44] : memref<328x128xf32, #tpu.memory_space<vmem>>, vector<21x128xf32>
    tpu.vector_store %arg7[%c307, %c0_44], %79 {strides = array<i32>} : memref<328x128xf32, #tpu.memory_space<vmem>>, vector<21x128xf32>,
    %c0_45 = arith.constant 0 : index
    %c0_46 = arith.constant 0 : index
    %81 = vector.load %arg7[%c0_45, %c0_46] : memref<328x128xf32, #tpu.memory_space<vmem>>, vector<288x128xf32>
    %c0_47 = arith.constant 0 : index
    %c0_48 = arith.constant 0 : index
    %c0_49 = arith.constant 0 : index
    %c0_50 = arith.constant 0 : index
    %82 = vector.load %arg4[%c0_47, %c0_48, %c0_49, %c0_50] : memref<3x3x128x128xf32, #tpu.memory_space<vmem>>, vector<1x1x128x128xf32>
    %83 = vector.shape_cast %82 : vector<1x1x128x128xf32> to vector<128x128xf32>
    %cst_51 = arith.constant dense<0.000000e+00> : vector<288x128xf32>
    %84 = tpu.matmul %81, %83, %cst_51 {dimension_numbers = #tpu.dot_dimension_numbers<[1], [0], [0], [1], [0, 0, 1, 1], [], []>} : vector<288x128xf32>, vector<128x128xf32>, vector<288x128xf32> -> vector<288x128xf32>
    %c1 = arith.constant 1 : index
    %c0_52 = arith.constant 0 : index
    %85 = vector.load %arg7[%c1, %c0_52] : memref<328x128xf32, #tpu.memory_space<vmem>>, vector<288x128xf32>
    %c0_53 = arith.constant 0 : index
    %c1_54 = arith.constant 1 : index
    %c0_55 = arith.constant 0 : index
    %c0_56 = arith.constant 0 : index
    %86 = vector.load %arg4[%c0_53, %c1_54, %c0_55, %c0_56] : memref<3x3x128x128xf32, #tpu.memory_space<vmem>>, vector<1x1x128x128xf32>
    %87 = vector.shape_cast %86 : vector<1x1x128x128xf32> to vector<128x128xf32>
    %cst_57 = arith.constant dense<0.000000e+00> : vector<288x128xf32>
    %88 = tpu.matmul %85, %87, %cst_57 {dimension_numbers = #tpu.dot_dimension_numbers<[1], [0], [0], [1], [0, 0, 1, 1], [], []>} : vector<288x128xf32>, vector<128x128xf32>, vector<288x128xf32> -> vector<288x128xf32>
    %89 = arith.addf %84, %88 : vector<288x128xf32>
    %c2 = arith.constant 2 : index
    %c0_58 = arith.constant 0 : index
    %90 = vector.load %arg7[%c2, %c0_58] : memref<328x128xf32, #tpu.memory_space<vmem>>, vector<288x128xf32>
    %c0_59 = arith.constant 0 : index
    %c2_60 = arith.constant 2 : index
    %c0_61 = arith.constant 0 : index
    %c0_62 = arith.constant 0 : index
    %91 = vector.load %arg4[%c0_59, %c2_60, %c0_61, %c0_62] : memref<3x3x128x128xf32, #tpu.memory_space<vmem>>, vector<1x1x128x128xf32>
    %92 = vector.shape_cast %91 : vector<1x1x128x128xf32> to vector<128x128xf32>
    %cst_63 = arith.constant dense<0.000000e+00> : vector<288x128xf32>
    %93 = tpu.matmul %90, %92, %cst_63 {dimension_numbers = #tpu.dot_dimension_numbers<[1], [0], [0], [1], [0, 0, 1, 1], [], []>} : vector<288x128xf32>, vector<128x128xf32>, vector<288x128xf32> -> vector<288x128xf32>
    %94 = arith.addf %89, %93 : vector<288x128xf32>
    %c18 = arith.constant 18 : index
    %c0_64 = arith.constant 0 : index
    %95 = vector.load %arg7[%c18, %c0_64] : memref<328x128xf32, #tpu.memory_space<vmem>>, vector<288x128xf32>
    %c1_65 = arith.constant 1 : index
    %c0_66 = arith.constant 0 : index
    %c0_67 = arith.constant 0 : index
    %c0_68 = arith.constant 0 : index
    %96 = vector.load %arg4[%c1_65, %c0_66, %c0_67, %c0_68] : memref<3x3x128x128xf32, #tpu.memory_space<vmem>>, vector<1x1x128x128xf32>
    %97 = vector.shape_cast %96 : vector<1x1x128x128xf32> to vector<128x128xf32>
    %cst_69 = arith.constant dense<0.000000e+00> : vector<288x128xf32>
    %98 = tpu.matmul %95, %97, %cst_69 {dimension_numbers = #tpu.dot_dimension_numbers<[1], [0], [0], [1], [0, 0, 1, 1], [], []>} : vector<288x128xf32>, vector<128x128xf32>, vector<288x128xf32> -> vector<288x128xf32>
    %99 = arith.addf %94, %98 : vector<288x128xf32>
    %c19_70 = arith.constant 19 : index
    %c0_71 = arith.constant 0 : index
    %100 = vector.load %arg7[%c19_70, %c0_71] : memref<328x128xf32, #tpu.memory_space<vmem>>, vector<288x128xf32>
    %c1_72 = arith.constant 1 : index
    %c1_73 = arith.constant 1 : index
    %c0_74 = arith.constant 0 : index
    %c0_75 = arith.constant 0 : index
    %101 = vector.load %arg4[%c1_72, %c1_73, %c0_74, %c0_75] : memref<3x3x128x128xf32, #tpu.memory_space<vmem>>, vector<1x1x128x128xf32>
    %102 = vector.shape_cast %101 : vector<1x1x128x128xf32> to vector<128x128xf32>
    %cst_76 = arith.constant dense<0.000000e+00> : vector<288x128xf32>
    %103 = tpu.matmul %100, %102, %cst_76 {dimension_numbers = #tpu.dot_dimension_numbers<[1], [0], [0], [1], [0, 0, 1, 1], [], []>} : vector<288x128xf32>, vector<128x128xf32>, vector<288x128xf32> -> vector<288x128xf32>
    %104 = arith.addf %99, %103 : vector<288x128xf32>
    %c20 = arith.constant 20 : index
    %c0_77 = arith.constant 0 : index
    %105 = vector.load %arg7[%c20, %c0_77] : memref<328x128xf32, #tpu.memory_space<vmem>>, vector<288x128xf32>
    %c1_78 = arith.constant 1 : index
    %c2_79 = arith.constant 2 : index
    %c0_80 = arith.constant 0 : index
    %c0_81 = arith.constant 0 : index
    %106 = vector.load %arg4[%c1_78, %c2_79, %c0_80, %c0_81] : memref<3x3x128x128xf32, #tpu.memory_space<vmem>>, vector<1x1x128x128xf32>
    %107 = vector.shape_cast %106 : vector<1x1x128x128xf32> to vector<128x128xf32>
    %cst_82 = arith.constant dense<0.000000e+00> : vector<288x128xf32>
    %108 = tpu.matmul %105, %107, %cst_82 {dimension_numbers = #tpu.dot_dimension_numbers<[1], [0], [0], [1], [0, 0, 1, 1], [], []>} : vector<288x128xf32>, vector<128x128xf32>, vector<288x128xf32> -> vector<288x128xf32>
    %109 = arith.addf %104, %108 : vector<288x128xf32>
    %c36 = arith.constant 36 : index
    %c0_83 = arith.constant 0 : index
    %110 = vector.load %arg7[%c36, %c0_83] : memref<328x128xf32, #tpu.memory_space<vmem>>, vector<288x128xf32>
    %c2_84 = arith.constant 2 : index
    %c0_85 = arith.constant 0 : index
    %c0_86 = arith.constant 0 : index
    %c0_87 = arith.constant 0 : index
    %111 = vector.load %arg4[%c2_84, %c0_85, %c0_86, %c0_87] : memref<3x3x128x128xf32, #tpu.memory_space<vmem>>, vector<1x1x128x128xf32>
    %112 = vector.shape_cast %111 : vector<1x1x128x128xf32> to vector<128x128xf32>
    %cst_88 = arith.constant dense<0.000000e+00> : vector<288x128xf32>
    %113 = tpu.matmul %110, %112, %cst_88 {dimension_numbers = #tpu.dot_dimension_numbers<[1], [0], [0], [1], [0, 0, 1, 1], [], []>} : vector<288x128xf32>, vector<128x128xf32>, vector<288x128xf32> -> vector<288x128xf32>
    %114 = arith.addf %109, %113 : vector<288x128xf32>
    %c37_89 = arith.constant 37 : index
    %c0_90 = arith.constant 0 : index
    %115 = vector.load %arg7[%c37_89, %c0_90] : memref<328x128xf32, #tpu.memory_space<vmem>>, vector<288x128xf32>
    %c2_91 = arith.constant 2 : index
    %c1_92 = arith.constant 1 : index
    %c0_93 = arith.constant 0 : index
    %c0_94 = arith.constant 0 : index
    %116 = vector.load %arg4[%c2_91, %c1_92, %c0_93, %c0_94] : memref<3x3x128x128xf32, #tpu.memory_space<vmem>>, vector<1x1x128x128xf32>
    %117 = vector.shape_cast %116 : vector<1x1x128x128xf32> to vector<128x128xf32>
    %cst_95 = arith.constant dense<0.000000e+00> : vector<288x128xf32>
    %118 = tpu.matmul %115, %117, %cst_95 {dimension_numbers = #tpu.dot_dimension_numbers<[1], [0], [0], [1], [0, 0, 1, 1], [], []>} : vector<288x128xf32>, vector<128x128xf32>, vector<288x128xf32> -> vector<288x128xf32>
    %119 = arith.addf %114, %118 : vector<288x128xf32>
    %c38 = arith.constant 38 : index
    %c0_96 = arith.constant 0 : index
    %120 = vector.load %arg7[%c38, %c0_96] : memref<328x128xf32, #tpu.memory_space<vmem>>, vector<288x128xf32>
    %c2_97 = arith.constant 2 : index
    %c2_98 = arith.constant 2 : index
    %c0_99 = arith.constant 0 : index
    %c0_100 = arith.constant 0 : index
    %121 = vector.load %arg4[%c2_97, %c2_98, %c0_99, %c0_100] : memref<3x3x128x128xf32, #tpu.memory_space<vmem>>, vector<1x1x128x128xf32>
    %122 = vector.shape_cast %121 : vector<1x1x128x128xf32> to vector<128x128xf32>
    %cst_101 = arith.constant dense<0.000000e+00> : vector<288x128xf32>
    %123 = tpu.matmul %120, %122, %cst_101 {dimension_numbers = #tpu.dot_dimension_numbers<[1], [0], [0], [1], [0, 0, 1, 1], [], []>} : vector<288x128xf32>, vector<128x128xf32>, vector<288x128xf32> -> vector<288x128xf32>
    %124 = arith.addf %119, %123 : vector<288x128xf32>
    %cst_102 = arith.constant 0.000000e+00 : f32
    %125 = vector.broadcast %cst_102 : f32 to vector<1x128xf32>
    %cst_103 = arith.constant 0.000000e+00 : f32
    %126 = vector.broadcast %cst_103 : f32 to vector<1x128xf32>
    %127 = vector.extract_strided_slice %124 {offsets = [0, 0], sizes = [16, 128], strides = [1, 1]} : vector<288x128xf32> to vector<16x128xf32>
    %c0_104 = arith.constant 0 : index
    %c0_105 = arith.constant 0 : index
    %c0_106 = arith.constant 0 : index
    %c0_107 = arith.constant 0 : index
    %128 = vector.load %arg5[%c0_104, %c0_105, %c0_106, %c0_107] : memref<1x16x16x128xf32, #tpu.memory_space<vmem>>, vector<1x1x16x128xf32>
    %129 = vector.shape_cast %128 : vector<1x1x16x128xf32> to vector<16x128xf32>
    %130 = vector.shape_cast %127 : vector<16x128xf32> to vector<1x1x16x128xf32>
    tpu.vector_store %arg5[%c0_104, %c0_105, %c0_106, %c0_107], %130 {strides = array<i32>} : memref<1x16x16x128xf32, #tpu.memory_space<vmem>>, vector<1x1x16x128xf32>,
    %cst_108 = arith.constant dense<0.000000e+00> : vector<128xf32>
    %131 = vector.multi_reduction <add>, %127, %cst_108 [0] : vector<16x128xf32> to vector<128xf32>
    %132 = vector.shape_cast %131 : vector<128xf32> to vector<1x128xf32>
    %133 = arith.addf %125, %132 : vector<1x128xf32>
    %134 = arith.mulf %127, %127 : vector<16x128xf32>
    %cst_109 = arith.constant dense<0.000000e+00> : vector<128xf32>
    %135 = vector.multi_reduction <add>, %134, %cst_109 [0] : vector<16x128xf32> to vector<128xf32>
    %136 = vector.shape_cast %135 : vector<128xf32> to vector<1x128xf32>
    %137 = arith.addf %126, %136 : vector<1x128xf32>
    %138 = vector.extract_strided_slice %124 {offsets = [18, 0], sizes = [16, 128], strides = [1, 1]} : vector<288x128xf32> to vector<16x128xf32>
    %c0_110 = arith.constant 0 : index
    %c1_111 = arith.constant 1 : index
    %c0_112 = arith.constant 0 : index
    %c0_113 = arith.constant 0 : index
    %139 = vector.load %arg5[%c0_110, %c1_111, %c0_112, %c0_113] : memref<1x16x16x128xf32, #tpu.memory_space<vmem>>, vector<1x1x16x128xf32>
    %140 = vector.shape_cast %139 : vector<1x1x16x128xf32> to vector<16x128xf32>
    %141 = vector.shape_cast %138 : vector<16x128xf32> to vector<1x1x16x128xf32>
    tpu.vector_store %arg5[%c0_110, %c1_111, %c0_112, %c0_113], %141 {strides = array<i32>} : memref<1x16x16x128xf32, #tpu.memory_space<vmem>>, vector<1x1x16x128xf32>,
    %cst_114 = arith.constant dense<0.000000e+00> : vector<128xf32>
    %142 = vector.multi_reduction <add>, %138, %cst_114 [0] : vector<16x128xf32> to vector<128xf32>
    %143 = vector.shape_cast %142 : vector<128xf32> to vector<1x128xf32>
    %144 = arith.addf %133, %143 : vector<1x128xf32>
    %145 = arith.mulf %138, %138 : vector<16x128xf32>
    %cst_115 = arith.constant dense<0.000000e+00> : vector<128xf32>
    %146 = vector.multi_reduction <add>, %145, %cst_115 [0] : vector<16x128xf32> to vector<128xf32>
    %147 = vector.shape_cast %146 : vector<128xf32> to vector<1x128xf32>
    %148 = arith.addf %137, %147 : vector<1x128xf32>
    %149 = vector.extract_strided_slice %124 {offsets = [36, 0], sizes = [16, 128], strides = [1, 1]} : vector<288x128xf32> to vector<16x128xf32>
    %c0_116 = arith.constant 0 : index
    %c2_117 = arith.constant 2 : index
    %c0_118 = arith.constant 0 : index
    %c0_119 = arith.constant 0 : index
    %150 = vector.load %arg5[%c0_116, %c2_117, %c0_118, %c0_119] : memref<1x16x16x128xf32, #tpu.memory_space<vmem>>, vector<1x1x16x128xf32>
    %151 = vector.shape_cast %150 : vector<1x1x16x128xf32> to vector<16x128xf32>
    %152 = vector.shape_cast %149 : vector<16x128xf32> to vector<1x1x16x128xf32>
    tpu.vector_store %arg5[%c0_116, %c2_117, %c0_118, %c0_119], %152 {strides = array<i32>} : memref<1x16x16x128xf32, #tpu.memory_space<vmem>>, vector<1x1x16x128xf32>,
    %cst_120 = arith.constant dense<0.000000e+00> : vector<128xf32>
    %153 = vector.multi_reduction <add>, %149, %cst_120 [0] : vector<16x128xf32> to vector<128xf32>
    %154 = vector.shape_cast %153 : vector<128xf32> to vector<1x128xf32>
    %155 = arith.addf %144, %154 : vector<1x128xf32>
    %156 = arith.mulf %149, %149 : vector<16x128xf32>
    %cst_121 = arith.constant dense<0.000000e+00> : vector<128xf32>
    %157 = vector.multi_reduction <add>, %156, %cst_121 [0] : vector<16x128xf32> to vector<128xf32>
    %158 = vector.shape_cast %157 : vector<128xf32> to vector<1x128xf32>
    %159 = arith.addf %148, %158 : vector<1x128xf32>
    %160 = vector.extract_strided_slice %124 {offsets = [54, 0], sizes = [16, 128], strides = [1, 1]} : vector<288x128xf32> to vector<16x128xf32>
    %c0_122 = arith.constant 0 : index
    %c3 = arith.constant 3 : index
    %c0_123 = arith.constant 0 : index
    %c0_124 = arith.constant 0 : index
    %161 = vector.load %arg5[%c0_122, %c3, %c0_123, %c0_124] : memref<1x16x16x128xf32, #tpu.memory_space<vmem>>, vector<1x1x16x128xf32>
    %162 = vector.shape_cast %161 : vector<1x1x16x128xf32> to vector<16x128xf32>
    %163 = vector.shape_cast %160 : vector<16x128xf32> to vector<1x1x16x128xf32>
    tpu.vector_store %arg5[%c0_122, %c3, %c0_123, %c0_124], %163 {strides = array<i32>} : memref<1x16x16x128xf32, #tpu.memory_space<vmem>>, vector<1x1x16x128xf32>,
    %cst_125 = arith.constant dense<0.000000e+00> : vector<128xf32>
    %164 = vector.multi_reduction <add>, %160, %cst_125 [0] : vector<16x128xf32> to vector<128xf32>
    %165 = vector.shape_cast %164 : vector<128xf32> to vector<1x128xf32>
    %166 = arith.addf %155, %165 : vector<1x128xf32>
    %167 = arith.mulf %160, %160 : vector<16x128xf32>
    %cst_126 = arith.constant dense<0.000000e+00> : vector<128xf32>
    %168 = vector.multi_reduction <add>, %167, %cst_126 [0] : vector<16x128xf32> to vector<128xf32>
    %169 = vector.shape_cast %168 : vector<128xf32> to vector<1x128xf32>
    %170 = arith.addf %159, %169 : vector<1x128xf32>
    %171 = vector.extract_strided_slice %124 {offsets = [72, 0], sizes = [16, 128], strides = [1, 1]} : vector<288x128xf32> to vector<16x128xf32>
    %c0_127 = arith.constant 0 : index
    %c4 = arith.constant 4 : index
    %c0_128 = arith.constant 0 : index
    %c0_129 = arith.constant 0 : index
    %172 = vector.load %arg5[%c0_127, %c4, %c0_128, %c0_129] : memref<1x16x16x128xf32, #tpu.memory_space<vmem>>, vector<1x1x16x128xf32>
    %173 = vector.shape_cast %172 : vector<1x1x16x128xf32> to vector<16x128xf32>
    %174 = vector.shape_cast %171 : vector<16x128xf32> to vector<1x1x16x128xf32>
    tpu.vector_store %arg5[%c0_127, %c4, %c0_128, %c0_129], %174 {strides = array<i32>} : memref<1x16x16x128xf32, #tpu.memory_space<vmem>>, vector<1x1x16x128xf32>,
    %cst_130 = arith.constant dense<0.000000e+00> : vector<128xf32>
    %175 = vector.multi_reduction <add>, %171, %cst_130 [0] : vector<16x128xf32> to vector<128xf32>
    %176 = vector.shape_cast %175 : vector<128xf32> to vector<1x128xf32>
    %177 = arith.addf %166, %176 : vector<1x128xf32>
    %178 = arith.mulf %171, %171 : vector<16x128xf32>
    %cst_131 = arith.constant dense<0.000000e+00> : vector<128xf32>
    %179 = vector.multi_reduction <add>, %178, %cst_131 [0] : vector<16x128xf32> to vector<128xf32>
    %180 = vector.shape_cast %179 : vector<128xf32> to vector<1x128xf32>
    %181 = arith.addf %170, %180 : vector<1x128xf32>
    %182 = vector.extract_strided_slice %124 {offsets = [90, 0], sizes = [16, 128], strides = [1, 1]} : vector<288x128xf32> to vector<16x128xf32>
    %c0_132 = arith.constant 0 : index
    %c5 = arith.constant 5 : index
    %c0_133 = arith.constant 0 : index
    %c0_134 = arith.constant 0 : index
    %183 = vector.load %arg5[%c0_132, %c5, %c0_133, %c0_134] : memref<1x16x16x128xf32, #tpu.memory_space<vmem>>, vector<1x1x16x128xf32>
    %184 = vector.shape_cast %183 : vector<1x1x16x128xf32> to vector<16x128xf32>
    %185 = vector.shape_cast %182 : vector<16x128xf32> to vector<1x1x16x128xf32>
    tpu.vector_store %arg5[%c0_132, %c5, %c0_133, %c0_134], %185 {strides = array<i32>} : memref<1x16x16x128xf32, #tpu.memory_space<vmem>>, vector<1x1x16x128xf32>,
    %cst_135 = arith.constant dense<0.000000e+00> : vector<128xf32>
    %186 = vector.multi_reduction <add>, %182, %cst_135 [0] : vector<16x128xf32> to vector<128xf32>
    %187 = vector.shape_cast %186 : vector<128xf32> to vector<1x128xf32>
    %188 = arith.addf %177, %187 : vector<1x128xf32>
    %189 = arith.mulf %182, %182 : vector<16x128xf32>
    %cst_136 = arith.constant dense<0.000000e+00> : vector<128xf32>
    %190 = vector.multi_reduction <add>, %189, %cst_136 [0] : vector<16x128xf32> to vector<128xf32>
    %191 = vector.shape_cast %190 : vector<128xf32> to vector<1x128xf32>
    %192 = arith.addf %181, %191 : vector<1x128xf32>
    %193 = vector.extract_strided_slice %124 {offsets = [108, 0], sizes = [16, 128], strides = [1, 1]} : vector<288x128xf32> to vector<16x128xf32>
    %c0_137 = arith.constant 0 : index
    %c6 = arith.constant 6 : index
    %c0_138 = arith.constant 0 : index
    %c0_139 = arith.constant 0 : index
    %194 = vector.load %arg5[%c0_137, %c6, %c0_138, %c0_139] : memref<1x16x16x128xf32, #tpu.memory_space<vmem>>, vector<1x1x16x128xf32>
    %195 = vector.shape_cast %194 : vector<1x1x16x128xf32> to vector<16x128xf32>
    %196 = vector.shape_cast %193 : vector<16x128xf32> to vector<1x1x16x128xf32>
    tpu.vector_store %arg5[%c0_137, %c6, %c0_138, %c0_139], %196 {strides = array<i32>} : memref<1x16x16x128xf32, #tpu.memory_space<vmem>>, vector<1x1x16x128xf32>,
    %cst_140 = arith.constant dense<0.000000e+00> : vector<128xf32>
    %197 = vector.multi_reduction <add>, %193, %cst_140 [0] : vector<16x128xf32> to vector<128xf32>
    %198 = vector.shape_cast %197 : vector<128xf32> to vector<1x128xf32>
    %199 = arith.addf %188, %198 : vector<1x128xf32>
    %200 = arith.mulf %193, %193 : vector<16x128xf32>
    %cst_141 = arith.constant dense<0.000000e+00> : vector<128xf32>
    %201 = vector.multi_reduction <add>, %200, %cst_141 [0] : vector<16x128xf32> to vector<128xf32>
    %202 = vector.shape_cast %201 : vector<128xf32> to vector<1x128xf32>
    %203 = arith.addf %192, %202 : vector<1x128xf32>
    %204 = vector.extract_strided_slice %124 {offsets = [126, 0], sizes = [16, 128], strides = [1, 1]} : vector<288x128xf32> to vector<16x128xf32>
    %c0_142 = arith.constant 0 : index
    %c7 = arith.constant 7 : index
    %c0_143 = arith.constant 0 : index
    %c0_144 = arith.constant 0 : index
    %205 = vector.load %arg5[%c0_142, %c7, %c0_143, %c0_144] : memref<1x16x16x128xf32, #tpu.memory_space<vmem>>, vector<1x1x16x128xf32>
    %206 = vector.shape_cast %205 : vector<1x1x16x128xf32> to vector<16x128xf32>
    %207 = vector.shape_cast %204 : vector<16x128xf32> to vector<1x1x16x128xf32>
    tpu.vector_store %arg5[%c0_142, %c7, %c0_143, %c0_144], %207 {strides = array<i32>} : memref<1x16x16x128xf32, #tpu.memory_space<vmem>>, vector<1x1x16x128xf32>,
    %cst_145 = arith.constant dense<0.000000e+00> : vector<128xf32>
    %208 = vector.multi_reduction <add>, %204, %cst_145 [0] : vector<16x128xf32> to vector<128xf32>
    %209 = vector.shape_cast %208 : vector<128xf32> to vector<1x128xf32>
    %210 = arith.addf %199, %209 : vector<1x128xf32>
    %211 = arith.mulf %204, %204 : vector<16x128xf32>
    %cst_146 = arith.constant dense<0.000000e+00> : vector<128xf32>
    %212 = vector.multi_reduction <add>, %211, %cst_146 [0] : vector<16x128xf32> to vector<128xf32>
    %213 = vector.shape_cast %212 : vector<128xf32> to vector<1x128xf32>
    %214 = arith.addf %203, %213 : vector<1x128xf32>
    %215 = vector.extract_strided_slice %124 {offsets = [144, 0], sizes = [16, 128], strides = [1, 1]} : vector<288x128xf32> to vector<16x128xf32>
    %c0_147 = arith.constant 0 : index
    %c8 = arith.constant 8 : index
    %c0_148 = arith.constant 0 : index
    %c0_149 = arith.constant 0 : index
    %216 = vector.load %arg5[%c0_147, %c8, %c0_148, %c0_149] : memref<1x16x16x128xf32, #tpu.memory_space<vmem>>, vector<1x1x16x128xf32>
    %217 = vector.shape_cast %216 : vector<1x1x16x128xf32> to vector<16x128xf32>
    %218 = vector.shape_cast %215 : vector<16x128xf32> to vector<1x1x16x128xf32>
    tpu.vector_store %arg5[%c0_147, %c8, %c0_148, %c0_149], %218 {strides = array<i32>} : memref<1x16x16x128xf32, #tpu.memory_space<vmem>>, vector<1x1x16x128xf32>,
    %cst_150 = arith.constant dense<0.000000e+00> : vector<128xf32>
    %219 = vector.multi_reduction <add>, %215, %cst_150 [0] : vector<16x128xf32> to vector<128xf32>
    %220 = vector.shape_cast %219 : vector<128xf32> to vector<1x128xf32>
    %221 = arith.addf %210, %220 : vector<1x128xf32>
    %222 = arith.mulf %215, %215 : vector<16x128xf32>
    %cst_151 = arith.constant dense<0.000000e+00> : vector<128xf32>
    %223 = vector.multi_reduction <add>, %222, %cst_151 [0] : vector<16x128xf32> to vector<128xf32>
    %224 = vector.shape_cast %223 : vector<128xf32> to vector<1x128xf32>
    %225 = arith.addf %214, %224 : vector<1x128xf32>
    %226 = vector.extract_strided_slice %124 {offsets = [162, 0], sizes = [16, 128], strides = [1, 1]} : vector<288x128xf32> to vector<16x128xf32>
    %c0_152 = arith.constant 0 : index
    %c9 = arith.constant 9 : index
    %c0_153 = arith.constant 0 : index
    %c0_154 = arith.constant 0 : index
    %227 = vector.load %arg5[%c0_152, %c9, %c0_153, %c0_154] : memref<1x16x16x128xf32, #tpu.memory_space<vmem>>, vector<1x1x16x128xf32>
    %228 = vector.shape_cast %227 : vector<1x1x16x128xf32> to vector<16x128xf32>
    %229 = vector.shape_cast %226 : vector<16x128xf32> to vector<1x1x16x128xf32>
    tpu.vector_store %arg5[%c0_152, %c9, %c0_153, %c0_154], %229 {strides = array<i32>} : memref<1x16x16x128xf32, #tpu.memory_space<vmem>>, vector<1x1x16x128xf32>,
    %cst_155 = arith.constant dense<0.000000e+00> : vector<128xf32>
    %230 = vector.multi_reduction <add>, %226, %cst_155 [0] : vector<16x128xf32> to vector<128xf32>
    %231 = vector.shape_cast %230 : vector<128xf32> to vector<1x128xf32>
    %232 = arith.addf %221, %231 : vector<1x128xf32>
    %233 = arith.mulf %226, %226 : vector<16x128xf32>
    %cst_156 = arith.constant dense<0.000000e+00> : vector<128xf32>
    %234 = vector.multi_reduction <add>, %233, %cst_156 [0] : vector<16x128xf32> to vector<128xf32>
    %235 = vector.shape_cast %234 : vector<128xf32> to vector<1x128xf32>
    %236 = arith.addf %225, %235 : vector<1x128xf32>
    %237 = vector.extract_strided_slice %124 {offsets = [180, 0], sizes = [16, 128], strides = [1, 1]} : vector<288x128xf32> to vector<16x128xf32>
    %c0_157 = arith.constant 0 : index
    %c10 = arith.constant 10 : index
    %c0_158 = arith.constant 0 : index
    %c0_159 = arith.constant 0 : index
    %238 = vector.load %arg5[%c0_157, %c10, %c0_158, %c0_159] : memref<1x16x16x128xf32, #tpu.memory_space<vmem>>, vector<1x1x16x128xf32>
    %239 = vector.shape_cast %238 : vector<1x1x16x128xf32> to vector<16x128xf32>
    %240 = vector.shape_cast %237 : vector<16x128xf32> to vector<1x1x16x128xf32>
    tpu.vector_store %arg5[%c0_157, %c10, %c0_158, %c0_159], %240 {strides = array<i32>} : memref<1x16x16x128xf32, #tpu.memory_space<vmem>>, vector<1x1x16x128xf32>,
    %cst_160 = arith.constant dense<0.000000e+00> : vector<128xf32>
    %241 = vector.multi_reduction <add>, %237, %cst_160 [0] : vector<16x128xf32> to vector<128xf32>
    %242 = vector.shape_cast %241 : vector<128xf32> to vector<1x128xf32>
    %243 = arith.addf %232, %242 : vector<1x128xf32>
    %244 = arith.mulf %237, %237 : vector<16x128xf32>
    %cst_161 = arith.constant dense<0.000000e+00> : vector<128xf32>
    %245 = vector.multi_reduction <add>, %244, %cst_161 [0] : vector<16x128xf32> to vector<128xf32>
    %246 = vector.shape_cast %245 : vector<128xf32> to vector<1x128xf32>
    %247 = arith.addf %236, %246 : vector<1x128xf32>
    %248 = vector.extract_strided_slice %124 {offsets = [198, 0], sizes = [16, 128], strides = [1, 1]} : vector<288x128xf32> to vector<16x128xf32>
    %c0_162 = arith.constant 0 : index
    %c11 = arith.constant 11 : index
    %c0_163 = arith.constant 0 : index
    %c0_164 = arith.constant 0 : index
    %249 = vector.load %arg5[%c0_162, %c11, %c0_163, %c0_164] : memref<1x16x16x128xf32, #tpu.memory_space<vmem>>, vector<1x1x16x128xf32>
    %250 = vector.shape_cast %249 : vector<1x1x16x128xf32> to vector<16x128xf32>
    %251 = vector.shape_cast %248 : vector<16x128xf32> to vector<1x1x16x128xf32>
    tpu.vector_store %arg5[%c0_162, %c11, %c0_163, %c0_164], %251 {strides = array<i32>} : memref<1x16x16x128xf32, #tpu.memory_space<vmem>>, vector<1x1x16x128xf32>,
    %cst_165 = arith.constant dense<0.000000e+00> : vector<128xf32>
    %252 = vector.multi_reduction <add>, %248, %cst_165 [0] : vector<16x128xf32> to vector<128xf32>
    %253 = vector.shape_cast %252 : vector<128xf32> to vector<1x128xf32>
    %254 = arith.addf %243, %253 : vector<1x128xf32>
    %255 = arith.mulf %248, %248 : vector<16x128xf32>
    %cst_166 = arith.constant dense<0.000000e+00> : vector<128xf32>
    %256 = vector.multi_reduction <add>, %255, %cst_166 [0] : vector<16x128xf32> to vector<128xf32>
    %257 = vector.shape_cast %256 : vector<128xf32> to vector<1x128xf32>
    %258 = arith.addf %247, %257 : vector<1x128xf32>
    %259 = vector.extract_strided_slice %124 {offsets = [216, 0], sizes = [16, 128], strides = [1, 1]} : vector<288x128xf32> to vector<16x128xf32>
    %c0_167 = arith.constant 0 : index
    %c12 = arith.constant 12 : index
    %c0_168 = arith.constant 0 : index
    %c0_169 = arith.constant 0 : index
    %260 = vector.load %arg5[%c0_167, %c12, %c0_168, %c0_169] : memref<1x16x16x128xf32, #tpu.memory_space<vmem>>, vector<1x1x16x128xf32>
    %261 = vector.shape_cast %260 : vector<1x1x16x128xf32> to vector<16x128xf32>
    %262 = vector.shape_cast %259 : vector<16x128xf32> to vector<1x1x16x128xf32>
    tpu.vector_store %arg5[%c0_167, %c12, %c0_168, %c0_169], %262 {strides = array<i32>} : memref<1x16x16x128xf32, #tpu.memory_space<vmem>>, vector<1x1x16x128xf32>,
    %cst_170 = arith.constant dense<0.000000e+00> : vector<128xf32>
    %263 = vector.multi_reduction <add>, %259, %cst_170 [0] : vector<16x128xf32> to vector<128xf32>
    %264 = vector.shape_cast %263 : vector<128xf32> to vector<1x128xf32>
    %265 = arith.addf %254, %264 : vector<1x128xf32>
    %266 = arith.mulf %259, %259 : vector<16x128xf32>
    %cst_171 = arith.constant dense<0.000000e+00> : vector<128xf32>
    %267 = vector.multi_reduction <add>, %266, %cst_171 [0] : vector<16x128xf32> to vector<128xf32>
    %268 = vector.shape_cast %267 : vector<128xf32> to vector<1x128xf32>
    %269 = arith.addf %258, %268 : vector<1x128xf32>
    %270 = vector.extract_strided_slice %124 {offsets = [234, 0], sizes = [16, 128], strides = [1, 1]} : vector<288x128xf32> to vector<16x128xf32>
    %c0_172 = arith.constant 0 : index
    %c13 = arith.constant 13 : index
    %c0_173 = arith.constant 0 : index
    %c0_174 = arith.constant 0 : index
    %271 = vector.load %arg5[%c0_172, %c13, %c0_173, %c0_174] : memref<1x16x16x128xf32, #tpu.memory_space<vmem>>, vector<1x1x16x128xf32>
    %272 = vector.shape_cast %271 : vector<1x1x16x128xf32> to vector<16x128xf32>
    %273 = vector.shape_cast %270 : vector<16x128xf32> to vector<1x1x16x128xf32>
    tpu.vector_store %arg5[%c0_172, %c13, %c0_173, %c0_174], %273 {strides = array<i32>} : memref<1x16x16x128xf32, #tpu.memory_space<vmem>>, vector<1x1x16x128xf32>,
    %cst_175 = arith.constant dense<0.000000e+00> : vector<128xf32>
    %274 = vector.multi_reduction <add>, %270, %cst_175 [0] : vector<16x128xf32> to vector<128xf32>
    %275 = vector.shape_cast %274 : vector<128xf32> to vector<1x128xf32>
    %276 = arith.addf %265, %275 : vector<1x128xf32>
    %277 = arith.mulf %270, %270 : vector<16x128xf32>
    %cst_176 = arith.constant dense<0.000000e+00> : vector<128xf32>
    %278 = vector.multi_reduction <add>, %277, %cst_176 [0] : vector<16x128xf32> to vector<128xf32>
    %279 = vector.shape_cast %278 : vector<128xf32> to vector<1x128xf32>
    %280 = arith.addf %269, %279 : vector<1x128xf32>
    %281 = vector.extract_strided_slice %124 {offsets = [252, 0], sizes = [16, 128], strides = [1, 1]} : vector<288x128xf32> to vector<16x128xf32>
    %c0_177 = arith.constant 0 : index
    %c14 = arith.constant 14 : index
    %c0_178 = arith.constant 0 : index
    %c0_179 = arith.constant 0 : index
    %282 = vector.load %arg5[%c0_177, %c14, %c0_178, %c0_179] : memref<1x16x16x128xf32, #tpu.memory_space<vmem>>, vector<1x1x16x128xf32>
    %283 = vector.shape_cast %282 : vector<1x1x16x128xf32> to vector<16x128xf32>
    %284 = vector.shape_cast %281 : vector<16x128xf32> to vector<1x1x16x128xf32>
    tpu.vector_store %arg5[%c0_177, %c14, %c0_178, %c0_179], %284 {strides = array<i32>} : memref<1x16x16x128xf32, #tpu.memory_space<vmem>>, vector<1x1x16x128xf32>,
    %cst_180 = arith.constant dense<0.000000e+00> : vector<128xf32>
    %285 = vector.multi_reduction <add>, %281, %cst_180 [0] : vector<16x128xf32> to vector<128xf32>
    %286 = vector.shape_cast %285 : vector<128xf32> to vector<1x128xf32>
    %287 = arith.addf %276, %286 : vector<1x128xf32>
    %288 = arith.mulf %281, %281 : vector<16x128xf32>
    %cst_181 = arith.constant dense<0.000000e+00> : vector<128xf32>
    %289 = vector.multi_reduction <add>, %288, %cst_181 [0] : vector<16x128xf32> to vector<128xf32>
    %290 = vector.shape_cast %289 : vector<128xf32> to vector<1x128xf32>
    %291 = arith.addf %280, %290 : vector<1x128xf32>
    %292 = vector.extract_strided_slice %124 {offsets = [270, 0], sizes = [16, 128], strides = [1, 1]} : vector<288x128xf32> to vector<16x128xf32>
    %c0_182 = arith.constant 0 : index
    %c15 = arith.constant 15 : index
    %c0_183 = arith.constant 0 : index
    %c0_184 = arith.constant 0 : index
    %293 = vector.load %arg5[%c0_182, %c15, %c0_183, %c0_184] : memref<1x16x16x128xf32, #tpu.memory_space<vmem>>, vector<1x1x16x128xf32>
    %294 = vector.shape_cast %293 : vector<1x1x16x128xf32> to vector<16x128xf32>
    %295 = vector.shape_cast %292 : vector<16x128xf32> to vector<1x1x16x128xf32>
    tpu.vector_store %arg5[%c0_182, %c15, %c0_183, %c0_184], %295 {strides = array<i32>} : memref<1x16x16x128xf32, #tpu.memory_space<vmem>>, vector<1x1x16x128xf32>,
    %cst_185 = arith.constant dense<0.000000e+00> : vector<128xf32>
    %296 = vector.multi_reduction <add>, %292, %cst_185 [0] : vector<16x128xf32> to vector<128xf32>
    %297 = vector.shape_cast %296 : vector<128xf32> to vector<1x128xf32>
    %298 = arith.addf %287, %297 : vector<1x128xf32>
    %299 = arith.mulf %292, %292 : vector<16x128xf32>
    %cst_186 = arith.constant dense<0.000000e+00> : vector<128xf32>
    %300 = vector.multi_reduction <add>, %299, %cst_186 [0] : vector<16x128xf32> to vector<128xf32>
    %301 = vector.shape_cast %300 : vector<128xf32> to vector<1x128xf32>
    %302 = arith.addf %291, %301 : vector<1x128xf32>
    %303 = tpu.iota {dimensions = array<i32: 0>} : vector<8x128xi32>
    %c0_i32 = arith.constant 0 : i32
    %304 = vector.broadcast %c0_i32 : i32 to vector<8x128xi32>
    %305 = arith.cmpi eq, %303, %304 : vector<8x128xi32>
    %c1_i32 = arith.constant 1 : i32
    %306 = vector.broadcast %c1_i32 : i32 to vector<8x128xi32>
    %307 = arith.cmpi eq, %303, %306 : vector<8x128xi32>
    %cst_187 = arith.constant 0.000000e+00 : f32
    %308 = vector.shape_cast %302 : vector<1x128xf32> to vector<1x128xf32>
    %309 = vector.broadcast %308 : vector<1x128xf32> to vector<8x128xf32>
    %310 = vector.broadcast %cst_187 : f32 to vector<8x128xf32>
    %311 = arith.select %307, %309, %310 : vector<8x128xi1>, vector<8x128xf32>
    %312 = vector.shape_cast %298 : vector<1x128xf32> to vector<1x128xf32>
    %313 = vector.broadcast %312 : vector<1x128xf32> to vector<8x128xf32>
    %314 = arith.select %305, %313, %311 : vector<8x128xi1>, vector<8x128xf32>
    %c0_188 = arith.constant 0 : index
    %c0_189 = arith.constant 0 : index
    %c0_190 = arith.constant 0 : index
    %315 = vector.load %arg6[%c0_188, %c0_189, %c0_190] : memref<1x8x128xf32, #tpu.memory_space<vmem>>, vector<1x8x128xf32>
    %316 = vector.shape_cast %315 : vector<1x8x128xf32> to vector<8x128xf32>
    %317 = vector.shape_cast %314 : vector<8x128xf32> to vector<1x8x128xf32>
    tpu.vector_store %arg6[%c0_188, %c0_189, %c0_190], %317 {strides = array<i32>} : memref<1x8x128xf32, #tpu.memory_space<vmem>>, vector<1x8x128xf32>,
    return
  }
  func.func @transform_0(%arg0: i32) -> (i32, i32, i32, i32) {
    %c0_i32 = arith.constant 0 : i32
    %c0_i32_0 = arith.constant 0 : i32
    %c0_i32_1 = arith.constant 0 : i32
    %c0_i32_2 = arith.constant 0 : i32
    return %arg0, %c0_i32, %c0_i32_0, %c0_i32_1 : i32, i32, i32, i32
  }
  func.func @transform_1(%arg0: i32) -> (i32, i32) {
    %c0_i32 = arith.constant 0 : i32
    %c0_i32_0 = arith.constant 0 : i32
    %c0_i32_1 = arith.constant 0 : i32
    return %c0_i32, %c0_i32_0 : i32, i32
  }
  func.func @transform_2(%arg0: i32) -> (i32, i32) {
    %c0_i32 = arith.constant 0 : i32
    %c0_i32_0 = arith.constant 0 : i32
    %c0_i32_1 = arith.constant 0 : i32
    return %c0_i32, %c0_i32_0 : i32, i32
  }
  func.func @transform_3(%arg0: i32) -> (i32, i32, i32, i32) {
    %c0_i32 = arith.constant 0 : i32
    %c0_i32_0 = arith.constant 0 : i32
    %c0_i32_1 = arith.constant 0 : i32
    %c0_i32_2 = arith.constant 0 : i32
    %c0_i32_3 = arith.constant 0 : i32
    return %c0_i32, %c0_i32_0, %c0_i32_1, %c0_i32_2 : i32, i32, i32, i32
  }
  func.func @transform_4(%arg0: i32) -> (i32, i32, i32, i32) {
    %c0_i32 = arith.constant 0 : i32
    %c0_i32_0 = arith.constant 0 : i32
    %c0_i32_1 = arith.constant 0 : i32
    %c0_i32_2 = arith.constant 0 : i32
    return %arg0, %c0_i32, %c0_i32_0, %c0_i32_1 : i32, i32, i32, i32
  }
  func.func @transform_5(%arg0: i32) -> (i32, i32, i32) {
    %c0_i32 = arith.constant 0 : i32
    %c0_i32_0 = arith.constant 0 : i32
    %c0_i32_1 = arith.constant 0 : i32
    return %arg0, %c0_i32, %c0_i32_0 : i32, i32, i32
  }
}

module attributes {stable_mosaic.version = 11 : i64} {
  func.func @bn_conv1x1_bn_residual_relu_kernel(%arg0: i32, %arg1: memref<128x128xf32, #tpu.memory_space<vmem>>, %arg2: memref<1x128xf32, #tpu.memory_space<vmem>>, %arg3: memref<1x128xf32, #tpu.memory_space<vmem>>, %arg4: memref<128x128xf32, #tpu.memory_space<vmem>>, %arg5: memref<128x128xf32, #tpu.memory_space<vmem>>, %arg6: memref<1x128xf32, #tpu.memory_space<vmem>>, %arg7: memref<1x128xf32, #tpu.memory_space<vmem>>, %arg8: memref<128x128xf32, #tpu.memory_space<vmem>>) attributes {dimension_semantics = [#tpu.dimension_semantics<parallel>], iteration_bounds = array<i64: 4>, scalar_prefetch = 0 : i64, scratch_operands = 0 : i64, tpu.core_type = #tpu.core_type<tc>, window_params = [{transform_indices = @transform_0, window_bounds = array<i64: 128, 128>}, {pipeline_mode = #tpu.pipeline_mode<synchronous>, transform_indices = @transform_1, window_bounds = array<i64: 1, 128>}, {pipeline_mode = #tpu.pipeline_mode<synchronous>, transform_indices = @transform_2, window_bounds = array<i64: 1, 128>}, {pipeline_mode = #tpu.pipeline_mode<synchronous>, transform_indices = @transform_3, window_bounds = array<i64: 128, 128>}, {transform_indices = @transform_4, window_bounds = array<i64: 128, 128>}, {pipeline_mode = #tpu.pipeline_mode<synchronous>, transform_indices = @transform_5, window_bounds = array<i64: 1, 128>}, {pipeline_mode = #tpu.pipeline_mode<synchronous>, transform_indices = @transform_6, window_bounds = array<i64: 1, 128>}, {transform_indices = @transform_7, window_bounds = array<i64: 128, 128>}]} {
    %c0 = arith.constant 0 : index
    %c0_0 = arith.constant 0 : index
    %0 = vector.load %arg1[%c0, %c0_0] : memref<128x128xf32, #tpu.memory_space<vmem>>, vector<128x128xf32>
    %c0_1 = arith.constant 0 : index
    %c0_2 = arith.constant 0 : index
    %1 = vector.load %arg2[%c0_1, %c0_2] : memref<1x128xf32, #tpu.memory_space<vmem>>, vector<1x128xf32>
    %2 = vector.broadcast %1 : vector<1x128xf32> to vector<128x128xf32>
    %3 = arith.mulf %0, %2 : vector<128x128xf32>
    %c0_3 = arith.constant 0 : index
    %c0_4 = arith.constant 0 : index
    %4 = vector.load %arg3[%c0_3, %c0_4] : memref<1x128xf32, #tpu.memory_space<vmem>>, vector<1x128xf32>
    %5 = vector.broadcast %4 : vector<1x128xf32> to vector<128x128xf32>
    %6 = arith.addf %3, %5 : vector<128x128xf32>
    %cst = arith.constant 0.000000e+00 : f32
    %7 = vector.broadcast %cst : f32 to vector<128x128xf32>
    %8 = arith.maximumf %6, %7 : vector<128x128xf32>
    %c0_5 = arith.constant 0 : index
    %c0_6 = arith.constant 0 : index
    %9 = vector.load %arg4[%c0_5, %c0_6] : memref<128x128xf32, #tpu.memory_space<vmem>>, vector<128x128xf32>
    %cst_7 = arith.constant dense<0.000000e+00> : vector<128x128xf32>
    %10 = tpu.matmul %8, %9, %cst_7 {dimension_numbers = #tpu.dot_dimension_numbers<[1], [0], [0], [1], [0, 0, 1, 1], [], []>} : vector<128x128xf32>, vector<128x128xf32>, vector<128x128xf32> -> vector<128x128xf32>
    %c0_8 = arith.constant 0 : index
    %c0_9 = arith.constant 0 : index
    %11 = vector.load %arg6[%c0_8, %c0_9] : memref<1x128xf32, #tpu.memory_space<vmem>>, vector<1x128xf32>
    %12 = vector.broadcast %11 : vector<1x128xf32> to vector<128x128xf32>
    %13 = arith.mulf %10, %12 : vector<128x128xf32>
    %c0_10 = arith.constant 0 : index
    %c0_11 = arith.constant 0 : index
    %14 = vector.load %arg7[%c0_10, %c0_11] : memref<1x128xf32, #tpu.memory_space<vmem>>, vector<1x128xf32>
    %15 = vector.broadcast %14 : vector<1x128xf32> to vector<128x128xf32>
    %16 = arith.addf %13, %15 : vector<128x128xf32>
    %c0_12 = arith.constant 0 : index
    %c0_13 = arith.constant 0 : index
    %17 = vector.load %arg5[%c0_12, %c0_13] : memref<128x128xf32, #tpu.memory_space<vmem>>, vector<128x128xf32>
    %18 = arith.addf %16, %17 : vector<128x128xf32>
    %cst_14 = arith.constant 0.000000e+00 : f32
    %19 = vector.broadcast %cst_14 : f32 to vector<128x128xf32>
    %20 = arith.maximumf %18, %19 : vector<128x128xf32>
    %c0_15 = arith.constant 0 : index
    %c0_16 = arith.constant 0 : index
    %21 = vector.load %arg8[%c0_15, %c0_16] : memref<128x128xf32, #tpu.memory_space<vmem>>, vector<128x128xf32>
    tpu.vector_store %arg8[%c0_15, %c0_16], %20 {strides = array<i32>} : memref<128x128xf32, #tpu.memory_space<vmem>>, vector<128x128xf32>,
    return
  }
  func.func @transform_0(%arg0: i32) -> (i32, i32) {
    %c0_i32 = arith.constant 0 : i32
    %c0_i32_0 = arith.constant 0 : i32
    return %arg0, %c0_i32 : i32, i32
  }
  func.func @transform_1(%arg0: i32) -> (i32, i32) {
    %c0_i32 = arith.constant 0 : i32
    %c0_i32_0 = arith.constant 0 : i32
    %c0_i32_1 = arith.constant 0 : i32
    return %c0_i32, %c0_i32_0 : i32, i32
  }
  func.func @transform_2(%arg0: i32) -> (i32, i32) {
    %c0_i32 = arith.constant 0 : i32
    %c0_i32_0 = arith.constant 0 : i32
    %c0_i32_1 = arith.constant 0 : i32
    return %c0_i32, %c0_i32_0 : i32, i32
  }
  func.func @transform_3(%arg0: i32) -> (i32, i32) {
    %c0_i32 = arith.constant 0 : i32
    %c0_i32_0 = arith.constant 0 : i32
    %c0_i32_1 = arith.constant 0 : i32
    return %c0_i32, %c0_i32_0 : i32, i32
  }
  func.func @transform_4(%arg0: i32) -> (i32, i32) {
    %c0_i32 = arith.constant 0 : i32
    %c0_i32_0 = arith.constant 0 : i32
    return %arg0, %c0_i32 : i32, i32
  }
  func.func @transform_5(%arg0: i32) -> (i32, i32) {
    %c0_i32 = arith.constant 0 : i32
    %c0_i32_0 = arith.constant 0 : i32
    %c0_i32_1 = arith.constant 0 : i32
    return %c0_i32, %c0_i32_0 : i32, i32
  }
  func.func @transform_6(%arg0: i32) -> (i32, i32) {
    %c0_i32 = arith.constant 0 : i32
    %c0_i32_0 = arith.constant 0 : i32
    %c0_i32_1 = arith.constant 0 : i32
    return %c0_i32, %c0_i32_0 : i32, i32
  }
  func.func @transform_7(%arg0: i32) -> (i32, i32) {
    %c0_i32 = arith.constant 0 : i32
    %c0_i32_0 = arith.constant 0 : i32
    return %arg0, %c0_i32 : i32, i32
  }
}

</mosaic_0001>

<llo_original>
// kernel: bottleneck_forward.7
$region0: #{bottleneck_forward.7}
  #allocation0 [shape = 'u32[]', space=smem, size = 0x4, offset = 0x4, fixed_abs, tag = 'smem constant byte address 0x4 - core index']
  #allocation1 [shape = 'u32[72,128]{1,0:T(1,128)}', space=vmem, size = 0x9000, scoped, tag = 'internal scratch']
  %s0 = inlined_call_operand.vmem [shape: f32[512,128], index: 0, kind: input, shape index: {}]
  %s1 = inlined_call_operand.vmem [shape: f32[1,128], index: 1, kind: input, shape index: {}]
  %s2 = inlined_call_operand.vmem [shape: f32[1,128], index: 2, kind: input, shape index: {}]
  %s3 = inlined_call_operand.vmem [shape: f32[128,128], index: 3, kind: input, shape index: {}]
  %s4 = inlined_call_operand.vmem [shape: f32[512,128], index: 4, kind: input, shape index: {}, may-alias: {4,7}]
  %s5 = inlined_call_operand.vmem [shape: f32[1,128], index: 5, kind: input, shape index: {}]
  %s6 = inlined_call_operand.vmem [shape: f32[1,128], index: 6, kind: input, shape index: {}]
  %s7 = inlined_call_operand.vmem [shape: f32[512,128], index: 7, kind: output, shape index: {}, may-alias: {4,7}]
  %s8 = sld [smem:[#allocation0]]
  $region61: #{bottleneck_forward.7} parent=0
    _
  %s10 = ssub.s32 1, %s8
  %s11 = scalar_select 0, %s10, %s8
  loop: start=0, step=1, limit=6
  $region2: #{bottleneck_forward.7} parent=0 // loop_pre_header
    _
  $region3: #{bottleneck_forward.7} parent=0 // loop_header
    %s13 = sphi 0, %s17
    %p14 = scmp.ge.s32.totalorder %s13, 6
    %s23 = sphi 0, %s25
    %s26 = sphi 0, %s23
    %s27 = sphi 0, %s26
    %s43 = sphi 0, %s27
    %s47 = sphi 0, %s47
    %s49 = sphi 0, %s47
    %s50 = sphi 0, %s49
    %s64 = sphi 0, %s50
    %s68 = sphi 0, %s68
    %s70 = sphi 0, %s68
    %s71 = sphi 0, %s70
    %s85 = sphi 0, %s71
    %s89 = sphi 0, %s89
    %s91 = sphi 0, %s89
    %s92 = sphi 0, %s91
    %s106 = sphi 0, %s92
    %s112 = sphi 0, %s114
    %s115 = sphi 0, %s112
    %s116 = sphi 0, %s115
    %s132 = sphi 0, %s116
    %s136 = sphi 0, %s136
    %s138 = sphi 0, %s136
    %s139 = sphi 0, %s138
    %s153 = sphi 0, %s139
    %s157 = sphi 0, %s157
    %s159 = sphi 0, %s157
    %s160 = sphi 0, %s159
    %s174 = sphi 0, %s160
    %s180 = sphi 0, %s182
    %s183 = sphi 0, %s180
    %s184 = sphi 0, %s183
    %s200 = sphi 0, %s184
  $region4: #{bottleneck_forward.7} parent=0 // loop_header_branch
    %16 = sbr.rel (%p14) target = $region8
  $region5: #{bottleneck_forward.7} parent=0 // loop_body
    %s18 = ssub.s32 %s13, 1
    %s19 = ssub.s32 %s13, 2
    %s20 = sadd.s32 %s13, 1
    %s21 = ssub.s32 %s13, %s20
    %p22 = scmp.eq.s32.totalorder %s21, 0
    %s24 = sadd.s32 %s23, 1
    %s25 = scalar_select %p22, %s23, %s24
    %p28 = pneg %p22
    %p29 = scmp.eq.s32.totalorder %s13, 3
    %p30 = por %p28, %p29
    %p31 = scmp.ne.s32.totalorder %s23, %s26
    %p32 = scmp.eq.s32.totalorder %s13, 0
    %p33 = por %p31, %p32
    %p34 = scmp.ne.s32.totalorder %s23, %s26
    %p35 = scmp.eq.s32.totalorder %s18, 3
    %p36 = por %p34, %p35
    %p37 = scmp.ne.s32.totalorder %s26, %s27
    %p38 = scmp.eq.s32.totalorder %s18, 0
    %p39 = por %p37, %p38
    %p40 = scmp.ne.s32.totalorder %s26, %s27
    %p41 = scmp.eq.s32.totalorder %s19, 3
    %p42 = por %p40, %p41
    %p44 = scmp.ne.s32.totalorder %s27, %s43
    %p45 = scmp.eq.s32.totalorder %s19, 0
    %p46 = por %p44, %p45
    %s48 = sadd.s32 %s47, 1
    %p51 = scmp.eq.s32.totalorder %s13, 3
    %p52 = scmp.ne.s32.totalorder %s47, %s49
    %p53 = scmp.eq.s32.totalorder %s13, 0
    %p54 = por %p52, %p53
    %p55 = scmp.ne.s32.totalorder %s47, %s49
    %p56 = scmp.eq.s32.totalorder %s18, 3
    %p57 = por %p55, %p56
    %p58 = scmp.ne.s32.totalorder %s49, %s50
    %p59 = scmp.eq.s32.totalorder %s18, 0
    %p60 = por %p58, %p59
    %p61 = scmp.ne.s32.totalorder %s49, %s50
    %p62 = scmp.eq.s32.totalorder %s19, 3
    %p63 = por %p61, %p62
    %p65 = scmp.ne.s32.totalorder %s50, %s64
    %p66 = scmp.eq.s32.totalorder %s19, 0
    %p67 = por %p65, %p66
    %s69 = sadd.s32 %s68, 1
    %p72 = scmp.eq.s32.totalorder %s13, 3
    %p73 = scmp.ne.s32.totalorder %s68, %s70
    %p74 = scmp.eq.s32.totalorder %s13, 0
    %p75 = por %p73, %p74
    %p76 = scmp.ne.s32.totalorder %s68, %s70
    %p77 = scmp.eq.s32.totalorder %s18, 3
    %p78 = por %p76, %p77
    %p79 = scmp.ne.s32.totalorder %s70, %s71
    %p80 = scmp.eq.s32.totalorder %s18, 0
    %p81 = por %p79, %p80
    %p82 = scmp.ne.s32.totalorder %s70, %s71
    %p83 = scmp.eq.s32.totalorder %s19, 3
    %p84 = por %p82, %p83
    %p86 = scmp.ne.s32.totalorder %s71, %s85
    %p87 = scmp.eq.s32.totalorder %s19, 0
    %p88 = por %p86, %p87
    %s90 = sadd.s32 %s89, 1
    %p93 = scmp.eq.s32.totalorder %s13, 3
    %p94 = scmp.ne.s32.totalorder %s89, %s91
    %p95 = scmp.eq.s32.totalorder %s13, 0
    %p96 = por %p94, %p95
    %p97 = scmp.ne.s32.totalorder %s89, %s91
    %p98 = scmp.eq.s32.totalorder %s18, 3
    %p99 = por %p97, %p98
    %p100 = scmp.ne.s32.totalorder %s91, %s92
    %p101 = scmp.eq.s32.totalorder %s18, 0
    %p102 = por %p100, %p101
    %p103 = scmp.ne.s32.totalorder %s91, %s92
    %p104 = scmp.eq.s32.totalorder %s19, 3
    %p105 = por %p103, %p104
    %p107 = scmp.ne.s32.totalorder %s92, %s106
    %p108 = scmp.eq.s32.totalorder %s19, 0
    %p109 = por %p107, %p108
    %s110 = ssub.s32 %s13, %s20
    %p111 = scmp.eq.s32.totalorder %s110, 0
    %s113 = sadd.s32 %s112, 1
    %s114 = scalar_select %p111, %s112, %s113
    %p117 = pneg %p111
    %p118 = scmp.eq.s32.totalorder %s13, 3
    %p119 = por %p117, %p118
    %p120 = scmp.ne.s32.totalorder %s112, %s115
    %p121 = scmp.eq.s32.totalorder %s13, 0
    %p122 = por %p120, %p121
    %p123 = scmp.ne.s32.totalorder %s112, %s115
    %p124 = scmp.eq.s32.totalorder %s18, 3
    %p125 = por %p123, %p124
    %p126 = scmp.ne.s32.totalorder %s115, %s116
    %p127 = scmp.eq.s32.totalorder %s18, 0
    %p128 = por %p126, %p127
    %p129 = scmp.ne.s32.totalorder %s115, %s116
    %p130 = scmp.eq.s32.totalorder %s19, 3
    %p131 = por %p129, %p130
    %p133 = scmp.ne.s32.totalorder %s116, %s132
    %p134 = scmp.eq.s32.totalorder %s19, 0
    %p135 = por %p133, %p134
    %s137 = sadd.s32 %s136, 1
    %p140 = scmp.eq.s32.totalorder %s13, 3
    %p141 = scmp.ne.s32.totalorder %s136, %s138
    %p142 = scmp.eq.s32.totalorder %s13, 0
    %p143 = por %p141, %p142
    %p144 = scmp.ne.s32.totalorder %s136, %s138
    %p145 = scmp.eq.s32.totalorder %s18, 3
    %p146 = por %p144, %p145
    %p147 = scmp.ne.s32.totalorder %s138, %s139
    %p148 = scmp.eq.s32.totalorder %s18, 0
    %p149 = por %p147, %p148
    %p150 = scmp.ne.s32.totalorder %s138, %s139
    %p151 = scmp.eq.s32.totalorder %s19, 3
    %p152 = por %p150, %p151
    %p154 = scmp.ne.s32.totalorder %s139, %s153
    %p155 = scmp.eq.s32.totalorder %s19, 0
    %p156 = por %p154, %p155
    %s158 = sadd.s32 %s157, 1
    %p161 = scmp.eq.s32.totalorder %s13, 3
    %p162 = scmp.ne.s32.totalorder %s157, %s159
    %p163 = scmp.eq.s32.totalorder %s13, 0
    %p164 = por %p162, %p163
    %p165 = scmp.ne.s32.totalorder %s157, %s159
    %p166 = scmp.eq.s32.totalorder %s18, 3
    %p167 = por %p165, %p166
    %p168 = scmp.ne.s32.totalorder %s159, %s160
    %p169 = scmp.eq.s32.totalorder %s18, 0
    %p170 = por %p168, %p169
    %p171 = scmp.ne.s32.totalorder %s159, %s160
    %p172 = scmp.eq.s32.totalorder %s19, 3
    %p173 = por %p171, %p172
    %p175 = scmp.ne.s32.totalorder %s160, %s174
    %p176 = scmp.eq.s32.totalorder %s19, 0
    %p177 = por %p175, %p176
    %s178 = ssub.s32 %s13, %s20
    %p179 = scmp.eq.s32.totalorder %s178, 0
    %s181 = sadd.s32 %s180, 1
    %s182 = scalar_select %p179, %s180, %s181
    %p185 = pneg %p179
    %p186 = scmp.eq.s32.totalorder %s13, 3
    %p187 = por %p185, %p186
    %p188 = scmp.ne.s32.totalorder %s180, %s183
    %p189 = scmp.eq.s32.totalorder %s13, 0
    %p190 = por %p188, %p189
    %p191 = scmp.ne.s32.totalorder %s180, %s183
    %p192 = scmp.eq.s32.totalorder %s18, 3
    %p193 = por %p191, %p192
    %p194 = scmp.ne.s32.totalorder %s183, %s184
    %p195 = scmp.eq.s32.totalorder %s18, 0
    %p196 = por %p194, %p195
    %p197 = scmp.ne.s32.totalorder %s183, %s184
    %p198 = scmp.eq.s32.totalorder %s19, 3
    %p199 = por %p197, %p198
    %p201 = scmp.ne.s32.totalorder %s184, %s200
    %p202 = scmp.eq.s32.totalorder %s19, 0
    %p203 = por %p201, %p202
    %p204 = scmp.le.s32.totalorder 1, %s13
    %p205 = scmp.lt.s32.totalorder %s13, 5
    %p206 = pnand %p204, %p205
    %p207 = pneg %p206
    // Predicated region
    $region9: #{bottleneck_forward.7} parent=5 // pred_check
      _
    $region10: #{bottleneck_forward.7} parent=5 // pred_check_branch
      %209 = sbr.rel (%p206) target = $region12
    $region11: #{bottleneck_forward.7} parent=5 // pred_region
      %s210 = ssub.s32 %s13, 1
      // Predicated region
      $region13: #{bottleneck_forward.7} parent=11 // pred_check
        %p211 = pneg %p60
      $region14: #{bottleneck_forward.7} parent=11 // pred_check_branch
        %213 = sbr.rel (%p211) target = $region16
      $region15: #{bottleneck_forward.7} parent=11 // pred_region
        _
      $region16: #{bottleneck_forward.7} parent=11 // pred_fallthru
        _
      // Predicated region
      $region17: #{bottleneck_forward.7} parent=11 // pred_check
        %p214 = pneg %p81
      $region18: #{bottleneck_forward.7} parent=11 // pred_check_branch
        %216 = sbr.rel (%p214) target = $region20
      $region19: #{bottleneck_forward.7} parent=11 // pred_region
        _
      $region20: #{bottleneck_forward.7} parent=11 // pred_fallthru
        _
      // Predicated region
      $region21: #{bottleneck_forward.7} parent=11 // pred_check
        %p217 = pneg %p102
      $region22: #{bottleneck_forward.7} parent=11 // pred_check_branch
        %219 = sbr.rel (%p217) target = $region24
      $region23: #{bottleneck_forward.7} parent=11 // pred_region
        _
      $region24: #{bottleneck_forward.7} parent=11 // pred_fallthru
        _
      // Predicated region
      $region25: #{bottleneck_forward.7} parent=11 // pred_check
        %p220 = pneg %p149
      $region26: #{bottleneck_forward.7} parent=11 // pred_check_branch
        %222 = sbr.rel (%p220) target = $region28
      $region27: #{bottleneck_forward.7} parent=11 // pred_region
        _
      $region28: #{bottleneck_forward.7} parent=11 // pred_fallthru
        _
      // Predicated region
      $region29: #{bottleneck_forward.7} parent=11 // pred_check
        %p223 = pneg %p170
      $region30: #{bottleneck_forward.7} parent=11 // pred_check_branch
        %225 = sbr.rel (%p223) target = $region32
      $region31: #{bottleneck_forward.7} parent=11 // pred_region
        _
      $region32: #{bottleneck_forward.7} parent=11 // pred_fallthru
        _
    $region12: #{bottleneck_forward.7} parent=5 // pred_fallthru
      _
    %p226 = scmp.lt.s32.totalorder %s13, 4
    // Predicated region
    $region33: #{bottleneck_forward.7} parent=5 // pred_check
      %p227 = pneg %p226
    $region34: #{bottleneck_forward.7} parent=5 // pred_check_branch
      %229 = sbr.rel (%p227) target = $region36
    $region35: #{bottleneck_forward.7} parent=5 // pred_region
      // Predicated region
      $region37: #{bottleneck_forward.7} parent=35 // pred_check
        %p230 = pneg %p33
      $region38: #{bottleneck_forward.7} parent=35 // pred_check_branch
        %232 = sbr.rel (%p230) target = $region40
      $region39: #{bottleneck_forward.7} parent=35 // pred_region
        %s233 = smul.u32 16, %s13
        %p234 = scmp.lt.s32.totalorder %s233, 63
        %s235 = scalar_select %p234, %s233, 63
        %s236 = smul.addr %s235, 8
        %s237 = scalar_lea.vmem %s0, %s236
        %s238 = smul.u32 16, %s13
      $region40: #{bottleneck_forward.7} parent=35 // pred_fallthru
        _
      // Predicated region
      $region41: #{bottleneck_forward.7} parent=35 // pred_check
        %p239 = pneg %p122
      $region42: #{bottleneck_forward.7} parent=35 // pred_check_branch
        %241 = sbr.rel (%p239) target = $region44
      $region43: #{bottleneck_forward.7} parent=35 // pred_region
        %s242 = smul.u32 16, %s13
        %p243 = scmp.lt.s32.totalorder %s242, 63
        %s244 = scalar_select %p243, %s242, 63
        %s245 = smul.addr %s244, 8
        %s246 = scalar_lea.vmem %s4, %s245
        %s247 = smul.u32 16, %s13
      $region44: #{bottleneck_forward.7} parent=35 // pred_fallthru
        _
    $region36: #{bottleneck_forward.7} parent=5 // pred_fallthru
      _
    %p248 = scmp.le.s32.totalorder 1, %s13
    %p249 = scmp.lt.s32.totalorder %s13, 5
    %p250 = pnand %p248, %p249
    %p251 = pneg %p250
    // Predicated region
    $region45: #{bottleneck_forward.7} parent=5 // pred_check
      _
    $region46: #{bottleneck_forward.7} parent=5 // pred_check_branch
      %253 = sbr.rel (%p250) target = $region48
    $region47: #{bottleneck_forward.7} parent=5 // pred_region
      %s254 = ssub.s32 %s13, 1
      %s255 = smul.u32 16, %s18
      %p256 = scmp.lt.s32.totalorder %s255, 63
      %s257 = scalar_select %p256, %s255, 63
      %s258 = smul.addr %s257, 8
      %s259 = scalar_lea.vmem %s0, %s258
      %p260 = pneg %p39
      %p261 = pneg %p36
      %p262 = pneg %p60
      %p263 = pneg %p57
      %p264 = pneg %p81
      %p265 = pneg %p78
      %p266 = pneg %p102
      %p267 = pneg %p99
      %s268 = smul.u32 16, %s18
      %p269 = scmp.lt.s32.totalorder %s268, 63
      %s270 = scalar_select %p269, %s268, 63
      %s271 = smul.addr %s270, 8
      %s272 = scalar_lea.vmem %s4, %s271
      %p273 = pneg %p128
      %p274 = pneg %p125
      %p275 = pneg %p149
      %p276 = pneg %p146
      %p277 = pneg %p170
      %p278 = pneg %p167
      %p279 = pneg %p196
      %p280 = pneg %p193
      %s281 = smul.u32 16, %s18
      %p282 = scmp.lt.s32.totalorder %s281, 63
      %s283 = scalar_select %p282, %s281, 63
      %s284 = smul.addr %s283, 8
      %s285 = scalar_lea.vmem %s7, %s284
      %s286 = smul.u32 16, %s18
      %p287 = scmp.lt.s32.totalorder %s286, 63
      %s288 = scalar_select %p287, %s286, 63
      %s289 = smul.addr %s288, 8
      %s290 = scalar_lea.vmem %s0, %s289
      %s291 = smul.u32 16, %s18
      %s292 = smul.u32 16, %s18
      %p293 = scmp.lt.s32.totalorder %s292, 63
      %s294 = scalar_select %p293, %s292, 63
      %s295 = smul.addr %s294, 8
      %s296 = scalar_lea.vmem %s4, %s295
      %s297 = smul.u32 16, %s18
      %s298 = smul.u32 16, %s18
      %p299 = scmp.lt.s32.totalorder %s298, 63
      %s300 = scalar_select %p299, %s298, 63
      %s301 = smul.addr %s300, 8
      %s302 = scalar_lea.vmem %s7, %s301
      %s303 = smul.u32 16, %s18
      %v304 = vld [vmem:[%s290] sm:$0xff]
      %v305 = vld [vmem:[%s290 + $0x8] sm:$0xff]
      %v306 = vld [vmem:[%s290 + $0x10] sm:$0xff]
      %v307 = vld [vmem:[%s290 + $0x18] sm:$0xff]
      %v308 = vld [vmem:[%s290 + $0x20] sm:$0xff]
      %v309 = vld [vmem:[%s290 + $0x28] sm:$0xff]
      %v310 = vld [vmem:[%s290 + $0x30] sm:$0xff]
      %v311 = vld [vmem:[%s290 + $0x38] sm:$0xff]
      %v312 = vld [vmem:[%s290 + $0x40] sm:$0xff]
      %v313 = vld [vmem:[%s290 + $0x48] sm:$0xff]
      %v314 = vld [vmem:[%s290 + $0x50] sm:$0xff]
      %v315 = vld [vmem:[%s290 + $0x58] sm:$0xff]
      %v316 = vld [vmem:[%s290 + $0x60] sm:$0xff]
      %v317 = vld [vmem:[%s290 + $0x68] sm:$0xff]
      %v318 = vld [vmem:[%s290 + $0x70] sm:$0xff]
      %v319 = vld [vmem:[%s290 + $0x78] sm:$0xff]
      %v320 = vld [vmem:[%s1] sm:$0x1]
      %v322 = vperm.slane %v320, 0
      %v324 = vmul.f32 %v304, %v322
      %v325 = vmul.f32 %v305, %v322
      %v326 = vmul.f32 %v306, %v322
      %v327 = vmul.f32 %v307, %v322
      %v328 = vmul.f32 %v308, %v322
      %v329 = vmul.f32 %v309, %v322
      %v330 = vmul.f32 %v310, %v322
      %v331 = vmul.f32 %v311, %v322
      %v332 = vmul.f32 %v312, %v322
      %v333 = vmul.f32 %v313, %v322
      %v334 = vmul.f32 %v314, %v322
      %v335 = vmul.f32 %v315, %v322
      %v336 = vmul.f32 %v316, %v322
      %v337 = vmul.f32 %v317, %v322
      %v338 = vmul.f32 %v318, %v322
      %v339 = vmul.f32 %v319, %v322
      %v340 = vld [vmem:[%s2] sm:$0x1]
      %v342 = vperm.slane %v340, 0
      %v344 = vadd.f32 %v324, %v342
      %v345 = vadd.f32 %v325, %v342
      %v346 = vadd.f32 %v326, %v342
      %v347 = vadd.f32 %v327, %v342
      %v348 = vadd.f32 %v328, %v342
      %v349 = vadd.f32 %v329, %v342
      %v350 = vadd.f32 %v330, %v342
      %v351 = vadd.f32 %v331, %v342
      %v352 = vadd.f32 %v332, %v342
      %v353 = vadd.f32 %v333, %v342
      %v354 = vadd.f32 %v334, %v342
      %v355 = vadd.f32 %v335, %v342
      %v356 = vadd.f32 %v336, %v342
      %v357 = vadd.f32 %v337, %v342
      %v358 = vadd.f32 %v338, %v342
      %v359 = vadd.f32 %v339, %v342
      %v360 = vmax.f32 %v344, 0.0
      %v361 = vmax.f32 %v345, 0.0
      %v362 = vmax.f32 %v346, 0.0
      %v363 = vmax.f32 %v347, 0.0
      %v364 = vmax.f32 %v348, 0.0
      %v365 = vmax.f32 %v349, 0.0
      %v366 = vmax.f32 %v350, 0.0
      %v367 = vmax.f32 %v351, 0.0
      %v368 = vmax.f32 %v352, 0.0
      %v369 = vmax.f32 %v353, 0.0
      %v370 = vmax.f32 %v354, 0.0
      %v371 = vmax.f32 %v355, 0.0
      %v372 = vmax.f32 %v356, 0.0
      %v373 = vmax.f32 %v357, 0.0
      %v374 = vmax.f32 %v358, 0.0
      %v375 = vmax.f32 %v359, 0.0
      %v376 = vld [vmem:[%s3] sm:$0xff]
      %v377 = vld [vmem:[%s3 + $0x8] sm:$0xff]
      %v378 = vld [vmem:[%s3 + $0x10] sm:$0xff]
      %v379 = vld [vmem:[%s3 + $0x18] sm:$0xff]
      %v380 = vld [vmem:[%s3 + $0x20] sm:$0xff]
      %v381 = vld [vmem:[%s3 + $0x28] sm:$0xff]
      %v382 = vld [vmem:[%s3 + $0x30] sm:$0xff]
      %v383 = vld [vmem:[%s3 + $0x38] sm:$0xff]
      %v384 = vld [vmem:[%s3 + $0x40] sm:$0xff]
      %v385 = vld [vmem:[%s3 + $0x48] sm:$0xff]
      %v386 = vld [vmem:[%s3 + $0x50] sm:$0xff]
      %v387 = vld [vmem:[%s3 + $0x58] sm:$0xff]
      %v388 = vld [vmem:[%s3 + $0x60] sm:$0xff]
      %v389 = vld [vmem:[%s3 + $0x68] sm:$0xff]
      %v390 = vld [vmem:[%s3 + $0x70] sm:$0xff]
      %v391 = vld [vmem:[%s3 + $0x78] sm:$0xff]
      %392 = vmatpush.msra.mxu0 %v391
      %393 = vmatpush.msra.mxu0 %v390
      %394 = vmatpush.msra.mxu0 %v389
      %395 = vmatpush.msra.mxu0 %v388
      %396 = vmatpush.msra.mxu0 %v387
      %397 = vmatpush.msra.mxu0 %v386
      %398 = vmatpush.msra.mxu0 %v385
      %399 = vmatpush.msra.mxu0 %v384
      %400 = vmatpush.msra.mxu0 %v383
      %401 = vmatpush.msra.mxu0 %v382
      %402 = vmatpush.msra.mxu0 %v381
      %403 = vmatpush.msra.mxu0 %v380
      %404 = vmatpush.msra.mxu0 %v379
      %405 = vmatpush.msra.mxu0 %v378
      %406 = vmatpush.msra.mxu0 %v377
      %407 = vmatpush.msra.mxu0 %v376
      %408 = vmatmul.f32.gmra.mxu0 %v360
      %v409 = vpop.f32.mrf.mxu0
      %v410 = vadd.f32 0.0, %v409
      %411 = vmatmul.f32.gmra.mxu0 %v361
      %v412 = vpop.f32.mrf.mxu0
      %v413 = vadd.f32 0.0, %v412
      %414 = vmatmul.f32.gmra.mxu0 %v362
      %v415 = vpop.f32.mrf.mxu0
      %v416 = vadd.f32 0.0, %v415
      %417 = vmatmul.f32.gmra.mxu0 %v363
      %v418 = vpop.f32.mrf.mxu0
      %v419 = vadd.f32 0.0, %v418
      %420 = vmatmul.f32.gmra.mxu0 %v364
      %v421 = vpop.f32.mrf.mxu0
      %v422 = vadd.f32 0.0, %v421
      %423 = vmatmul.f32.gmra.mxu0 %v365
      %v424 = vpop.f32.mrf.mxu0
      %v425 = vadd.f32 0.0, %v424
      %426 = vmatmul.f32.gmra.mxu0 %v366
      %v427 = vpop.f32.mrf.mxu0
      %v428 = vadd.f32 0.0, %v427
      %429 = vmatmul.f32.gmra.mxu0 %v367
      %v430 = vpop.f32.mrf.mxu0
      %v431 = vadd.f32 0.0, %v430
      %432 = vmatmul.f32.gmra.mxu0 %v368
      %v433 = vpop.f32.mrf.mxu0
      %v434 = vadd.f32 0.0, %v433
      %435 = vmatmul.f32.gmra.mxu0 %v369
      %v436 = vpop.f32.mrf.mxu0
      %v437 = vadd.f32 0.0, %v436
      %438 = vmatmul.f32.gmra.mxu0 %v370
      %v439 = vpop.f32.mrf.mxu0
      %v440 = vadd.f32 0.0, %v439
      %441 = vmatmul.f32.gmra.mxu0 %v371
      %v442 = vpop.f32.mrf.mxu0
      %v443 = vadd.f32 0.0, %v442
      %444 = vmatmul.f32.gmra.mxu0 %v372
      %v445 = vpop.f32.mrf.mxu0
      %v446 = vadd.f32 0.0, %v445
      %447 = vmatmul.f32.gmra.mxu0 %v373
      %v448 = vpop.f32.mrf.mxu0
      %v449 = vadd.f32 0.0, %v448
      %450 = vmatmul.f32.gmra.mxu0 %v374
      %v451 = vpop.f32.mrf.mxu0
      %v452 = vadd.f32 0.0, %v451
      %453 = vmatmul.f32.gmra.mxu0 %v375
      %v454 = vpop.f32.mrf.mxu0
      %v455 = vadd.f32 0.0, %v454
      %456 = vdwg.mxu0
      %v457 = vld [vmem:[%s5] sm:$0x1]
      %v459 = vperm.slane %v457, 0
      %v461 = vmul.f32 %v410, %v459
      %v462 = vmul.f32 %v413, %v459
      %v463 = vmul.f32 %v416, %v459
      %v464 = vmul.f32 %v419, %v459
      %v465 = vmul.f32 %v422, %v459
      %v466 = vmul.f32 %v425, %v459
      %v467 = vmul.f32 %v428, %v459
      %v468 = vmul.f32 %v431, %v459
      %v469 = vmul.f32 %v434, %v459
      %v470 = vmul.f32 %v437, %v459
      %v471 = vmul.f32 %v440, %v459
      %v472 = vmul.f32 %v443, %v459
      %v473 = vmul.f32 %v446, %v459
      %v474 = vmul.f32 %v449, %v459
      %v475 = vmul.f32 %v452, %v459
      %v476 = vmul.f32 %v455, %v459
      %v477 = vld [vmem:[%s6] sm:$0x1]
      %v479 = vperm.slane %v477, 0
      %v481 = vadd.f32 %v461, %v479
      %v482 = vadd.f32 %v462, %v479
      %v483 = vadd.f32 %v463, %v479
      %v484 = vadd.f32 %v464, %v479
      %v485 = vadd.f32 %v465, %v479
      %v486 = vadd.f32 %v466, %v479
      %v487 = vadd.f32 %v467, %v479
      %v488 = vadd.f32 %v468, %v479
      %v489 = vadd.f32 %v469, %v479
      %v490 = vadd.f32 %v470, %v479
      %v491 = vadd.f32 %v471, %v479
      %v492 = vadd.f32 %v472, %v479
      %v493 = vadd.f32 %v473, %v479
      %v494 = vadd.f32 %v474, %v479
      %v495 = vadd.f32 %v475, %v479
      %v496 = vadd.f32 %v476, %v479
      %v497 = vld [vmem:[%s296] sm:$0xff]
      %v498 = vld [vmem:[%s296 + $0x8] sm:$0xff]
      %v499 = vld [vmem:[%s296 + $0x10] sm:$0xff]
      %v500 = vld [vmem:[%s296 + $0x18] sm:$0xff]
      %v501 = vld [vmem:[%s296 + $0x20] sm:$0xff]
      %v502 = vld [vmem:[%s296 + $0x28] sm:$0xff]
      %v503 = vld [vmem:[%s296 + $0x30] sm:$0xff]
      %v504 = vld [vmem:[%s296 + $0x38] sm:$0xff]
      %v505 = vld [vmem:[%s296 + $0x40] sm:$0xff]
      %v506 = vld [vmem:[%s296 + $0x48] sm:$0xff]
      %v507 = vld [vmem:[%s296 + $0x50] sm:$0xff]
      %v508 = vld [vmem:[%s296 + $0x58] sm:$0xff]
      %v509 = vld [vmem:[%s296 + $0x60] sm:$0xff]
      %v510 = vld [vmem:[%s296 + $0x68] sm:$0xff]
      %v511 = vld [vmem:[%s296 + $0x70] sm:$0xff]
      %v512 = vld [vmem:[%s296 + $0x78] sm:$0xff]
      %v513 = vadd.f32 %v481, %v497
      %v514 = vadd.f32 %v482, %v498
      %v515 = vadd.f32 %v483, %v499
      %v516 = vadd.f32 %v484, %v500
      %v517 = vadd.f32 %v485, %v501
      %v518 = vadd.f32 %v486, %v502
      %v519 = vadd.f32 %v487, %v503
      %v520 = vadd.f32 %v488, %v504
      %v521 = vadd.f32 %v489, %v505
      %v522 = vadd.f32 %v490, %v506
      %v523 = vadd.f32 %v491, %v507
      %v524 = vadd.f32 %v492, %v508
      %v525 = vadd.f32 %v493, %v509
      %v526 = vadd.f32 %v494, %v510
      %v527 = vadd.f32 %v495, %v511
      %v528 = vadd.f32 %v496, %v512
      %v529 = vmax.f32 %v513, 0.0
      %v530 = vmax.f32 %v514, 0.0
      %v531 = vmax.f32 %v515, 0.0
      %v532 = vmax.f32 %v516, 0.0
      %v533 = vmax.f32 %v517, 0.0
      %v534 = vmax.f32 %v518, 0.0
      %v535 = vmax.f32 %v519, 0.0
      %v536 = vmax.f32 %v520, 0.0
      %v537 = vmax.f32 %v521, 0.0
      %v538 = vmax.f32 %v522, 0.0
      %v539 = vmax.f32 %v523, 0.0
      %v540 = vmax.f32 %v524, 0.0
      %v541 = vmax.f32 %v525, 0.0
      %v542 = vmax.f32 %v526, 0.0
      %v543 = vmax.f32 %v527, 0.0
      %v544 = vmax.f32 %v528, 0.0
      %545 = vst [vmem:[%s302] sm:$0xff] %v529
      %546 = vst [vmem:[%s302 + $0x8] sm:$0xff] %v530
      %547 = vst [vmem:[%s302 + $0x10] sm:$0xff] %v531
      %548 = vst [vmem:[%s302 + $0x18] sm:$0xff] %v532
      %549 = vst [vmem:[%s302 + $0x20] sm:$0xff] %v533
      %550 = vst [vmem:[%s302 + $0x28] sm:$0xff] %v534
      %551 = vst [vmem:[%s302 + $0x30] sm:$0xff] %v535
      %552 = vst [vmem:[%s302 + $0x38] sm:$0xff] %v536
      %553 = vst [vmem:[%s302 + $0x40] sm:$0xff] %v537
      %554 = vst [vmem:[%s302 + $0x48] sm:$0xff] %v538
      %555 = vst [vmem:[%s302 + $0x50] sm:$0xff] %v539
      %556 = vst [vmem:[%s302 + $0x58] sm:$0xff] %v540
      %557 = vst [vmem:[%s302 + $0x60] sm:$0xff] %v541
      %558 = vst [vmem:[%s302 + $0x68] sm:$0xff] %v542
      %559 = vst [vmem:[%s302 + $0x70] sm:$0xff] %v543
      %560 = vst [vmem:[%s302 + $0x78] sm:$0xff] %v544
      %s561 = smul.u32 16, %s18
      %p562 = scmp.lt.s32.totalorder %s561, 63
      %s563 = scalar_select %p562, %s561, 63
      %s564 = smul.addr %s563, 8
      %s565 = scalar_lea.vmem %s7, %s564
      // Predicated region
      $region49: #{bottleneck_forward.7} parent=47 // pred_check
        %p566 = pneg %p193
      $region50: #{bottleneck_forward.7} parent=47 // pred_check_branch
        %568 = sbr.rel (%p566) target = $region52
      $region51: #{bottleneck_forward.7} parent=47 // pred_region
        %s569 = smul.u32 16, %s18
      $region52: #{bottleneck_forward.7} parent=47 // pred_fallthru
        _
    $region48: #{bottleneck_forward.7} parent=5 // pred_fallthru
      _
    %p570 = scmp.le.s32.totalorder 2, %s13
    // Predicated region
    $region53: #{bottleneck_forward.7} parent=5 // pred_check
      %p571 = pneg %p570
    $region54: #{bottleneck_forward.7} parent=5 // pred_check_branch
      %573 = sbr.rel (%p571) target = $region56
    $region55: #{bottleneck_forward.7} parent=5 // pred_region
      %s574 = ssub.s32 %s13, 2
      // Predicated region
      $region57: #{bottleneck_forward.7} parent=55 // pred_check
        %p575 = pneg %p199
      $region58: #{bottleneck_forward.7} parent=55 // pred_check_branch
        %577 = sbr.rel (%p575) target = $region60
      $region59: #{bottleneck_forward.7} parent=55 // pred_region
        %s578 = smul.u32 16, %s19
        %p579 = scmp.lt.s32.totalorder %s578, 63
        %s580 = scalar_select %p579, %s578, 63
        %s581 = smul.addr %s580, 8
        %s582 = scalar_lea.vmem %s7, %s581
      $region60: #{bottleneck_forward.7} parent=55 // pred_fallthru
        _
    $region56: #{bottleneck_forward.7} parent=5 // pred_fallthru
      _
  $region6: #{bottleneck_forward.7} parent=0 // loop_footer
    %s17 = sadd.s32 1, %s13
  $region7: #{bottleneck_forward.7} parent=0 // loop_footer_branch
    %12 = sbr.rel target = $region3
  $region8: #{bottleneck_forward.7} parent=0 // loop_exit
    _

// kernel: bottleneck_forward.4
$region0: #{bottleneck_forward.4}
  #allocation0 [shape = 'u32[]', space=smem, size = 0x4, offset = 0x4, fixed_abs, tag = 'smem constant byte address 0x4 - core index']
  #allocation1 [shape = 'u32[72,128]{1,0:T(1,128)}', space=vmem, size = 0x9000, scoped, tag = 'internal scratch']
  %s0 = inlined_call_operand.vmem [shape: f32[512,128], index: 0, kind: input, shape index: {}]
  %s1 = inlined_call_operand.vmem [shape: f32[128,128], index: 1, kind: input, shape index: {}]
  %s2 = inlined_call_operand.vmem [shape: f32[512,128], index: 2, kind: output, shape index: {0}]
  %s3 = inlined_call_operand.vmem [shape: f32[4,8,128], index: 3, kind: output, shape index: {1}]
  %4 = xla_tuple %s2, %s3
  %s5 = sld [smem:[#allocation0]]
  $region49: #{bottleneck_forward.4} parent=0
    _
  %s7 = ssub.s32 1, %s5
  %s8 = scalar_select 0, %s7, %s5
  loop: start=0, step=1, limit=6
  $region2: #{bottleneck_forward.4} parent=0 // loop_pre_header
    _
  $region3: #{bottleneck_forward.4} parent=0 // loop_header
    %s10 = sphi 0, %s14
    %p11 = scmp.ge.s32.totalorder %s10, 6
    %s20 = sphi 0, %s22
    %s23 = sphi 0, %s20
    %s24 = sphi 0, %s23
    %s40 = sphi 0, %s24
    %s44 = sphi 0, %s44
    %s46 = sphi 0, %s44
    %s47 = sphi 0, %s46
    %s61 = sphi 0, %s47
    %s67 = sphi 0, %s69
    %s70 = sphi 0, %s67
    %s71 = sphi 0, %s70
    %s87 = sphi 0, %s71
    %s93 = sphi 0, %s95
    %s96 = sphi 0, %s93
    %s97 = sphi 0, %s96
    %s113 = sphi 0, %s97
  $region4: #{bottleneck_forward.4} parent=0 // loop_header_branch
    %13 = sbr.rel (%p11) target = $region8
  $region5: #{bottleneck_forward.4} parent=0 // loop_body
    %s15 = ssub.s32 %s10, 1
    %s16 = ssub.s32 %s10, 2
    %s17 = sadd.s32 %s10, 1
    %s18 = ssub.s32 %s10, %s17
    %p19 = scmp.eq.s32.totalorder %s18, 0
    %s21 = sadd.s32 %s20, 1
    %s22 = scalar_select %p19, %s20, %s21
    %p25 = pneg %p19
    %p26 = scmp.eq.s32.totalorder %s10, 3
    %p27 = por %p25, %p26
    %p28 = scmp.ne.s32.totalorder %s20, %s23
    %p29 = scmp.eq.s32.totalorder %s10, 0
    %p30 = por %p28, %p29
    %p31 = scmp.ne.s32.totalorder %s20, %s23
    %p32 = scmp.eq.s32.totalorder %s15, 3
    %p33 = por %p31, %p32
    %p34 = scmp.ne.s32.totalorder %s23, %s24
    %p35 = scmp.eq.s32.totalorder %s15, 0
    %p36 = por %p34, %p35
    %p37 = scmp.ne.s32.totalorder %s23, %s24
    %p38 = scmp.eq.s32.totalorder %s16, 3
    %p39 = por %p37, %p38
    %p41 = scmp.ne.s32.totalorder %s24, %s40
    %p42 = scmp.eq.s32.totalorder %s16, 0
    %p43 = por %p41, %p42
    %s45 = sadd.s32 %s44, 1
    %p48 = scmp.eq.s32.totalorder %s10, 3
    %p49 = scmp.ne.s32.totalorder %s44, %s46
    %p50 = scmp.eq.s32.totalorder %s10, 0
    %p51 = por %p49, %p50
    %p52 = scmp.ne.s32.totalorder %s44, %s46
    %p53 = scmp.eq.s32.totalorder %s15, 3
    %p54 = por %p52, %p53
    %p55 = scmp.ne.s32.totalorder %s46, %s47
    %p56 = scmp.eq.s32.totalorder %s15, 0
    %p57 = por %p55, %p56
    %p58 = scmp.ne.s32.totalorder %s46, %s47
    %p59 = scmp.eq.s32.totalorder %s16, 3
    %p60 = por %p58, %p59
    %p62 = scmp.ne.s32.totalorder %s47, %s61
    %p63 = scmp.eq.s32.totalorder %s16, 0
    %p64 = por %p62, %p63
    %s65 = ssub.s32 %s10, %s17
    %p66 = scmp.eq.s32.totalorder %s65, 0
    %s68 = sadd.s32 %s67, 1
    %s69 = scalar_select %p66, %s67, %s68
    %p72 = pneg %p66
    %p73 = scmp.eq.s32.totalorder %s10, 3
    %p74 = por %p72, %p73
    %p75 = scmp.ne.s32.totalorder %s67, %s70
    %p76 = scmp.eq.s32.totalorder %s10, 0
    %p77 = por %p75, %p76
    %p78 = scmp.ne.s32.totalorder %s67, %s70
    %p79 = scmp.eq.s32.totalorder %s15, 3
    %p80 = por %p78, %p79
    %p81 = scmp.ne.s32.totalorder %s70, %s71
    %p82 = scmp.eq.s32.totalorder %s15, 0
    %p83 = por %p81, %p82
    %p84 = scmp.ne.s32.totalorder %s70, %s71
    %p85 = scmp.eq.s32.totalorder %s16, 3
    %p86 = por %p84, %p85
    %p88 = scmp.ne.s32.totalorder %s71, %s87
    %p89 = scmp.eq.s32.totalorder %s16, 0
    %p90 = por %p88, %p89
    %s91 = ssub.s32 %s10, %s17
    %p92 = scmp.eq.s32.totalorder %s91, 0
    %s94 = sadd.s32 %s93, 1
    %s95 = scalar_select %p92, %s93, %s94
    %p98 = pneg %p92
    %p99 = scmp.eq.s32.totalorder %s10, 3
    %p100 = por %p98, %p99
    %p101 = scmp.ne.s32.totalorder %s93, %s96
    %p102 = scmp.eq.s32.totalorder %s10, 0
    %p103 = por %p101, %p102
    %p104 = scmp.ne.s32.totalorder %s93, %s96
    %p105 = scmp.eq.s32.totalorder %s15, 3
    %p106 = por %p104, %p105
    %p107 = scmp.ne.s32.totalorder %s96, %s97
    %p108 = scmp.eq.s32.totalorder %s15, 0
    %p109 = por %p107, %p108
    %p110 = scmp.ne.s32.totalorder %s96, %s97
    %p111 = scmp.eq.s32.totalorder %s16, 3
    %p112 = por %p110, %p111
    %p114 = scmp.ne.s32.totalorder %s97, %s113
    %p115 = scmp.eq.s32.totalorder %s16, 0
    %p116 = por %p114, %p115
    %p117 = scmp.le.s32.totalorder 1, %s10
    %p118 = scmp.lt.s32.totalorder %s10, 5
    %p119 = pnand %p117, %p118
    %p120 = pneg %p119
    // Predicated region
    $region9: #{bottleneck_forward.4} parent=5 // pred_check
      _
    $region10: #{bottleneck_forward.4} parent=5 // pred_check_branch
      %122 = sbr.rel (%p119) target = $region12
    $region11: #{bottleneck_forward.4} parent=5 // pred_region
      %s123 = ssub.s32 %s10, 1
      // Predicated region
      $region13: #{bottleneck_forward.4} parent=11 // pred_check
        %p124 = pneg %p57
      $region14: #{bottleneck_forward.4} parent=11 // pred_check_branch
        %126 = sbr.rel (%p124) target = $region16
      $region15: #{bottleneck_forward.4} parent=11 // pred_region
        _
      $region16: #{bottleneck_forward.4} parent=11 // pred_fallthru
        _
    $region12: #{bottleneck_forward.4} parent=5 // pred_fallthru
      _
    %p127 = scmp.lt.s32.totalorder %s10, 4
    // Predicated region
    $region17: #{bottleneck_forward.4} parent=5 // pred_check
      %p128 = pneg %p127
    $region18: #{bottleneck_forward.4} parent=5 // pred_check_branch
      %130 = sbr.rel (%p128) target = $region20
    $region19: #{bottleneck_forward.4} parent=5 // pred_region
      // Predicated region
      $region21: #{bottleneck_forward.4} parent=19 // pred_check
        %p131 = pneg %p30
      $region22: #{bottleneck_forward.4} parent=19 // pred_check_branch
        %133 = sbr.rel (%p131) target = $region24
      $region23: #{bottleneck_forward.4} parent=19 // pred_region
        %s134 = smul.u32 16, %s10
        %p135 = scmp.lt.s32.totalorder %s134, 63
        %s136 = scalar_select %p135, %s134, 63
        %s137 = smul.addr %s136, 8
        %s138 = scalar_lea.vmem %s0, %s137
        %s139 = smul.u32 16, %s10
      $region24: #{bottleneck_forward.4} parent=19 // pred_fallthru
        _
    $region20: #{bottleneck_forward.4} parent=5 // pred_fallthru
      _
    %p140 = scmp.le.s32.totalorder 1, %s10
    %p141 = scmp.lt.s32.totalorder %s10, 5
    %p142 = pnand %p140, %p141
    %p143 = pneg %p142
    // Predicated region
    $region25: #{bottleneck_forward.4} parent=5 // pred_check
      _
    $region26: #{bottleneck_forward.4} parent=5 // pred_check_branch
      %145 = sbr.rel (%p142) target = $region28
    $region27: #{bottleneck_forward.4} parent=5 // pred_region
      %s146 = ssub.s32 %s10, 1
      %s147 = smul.u32 16, %s15
      %p148 = scmp.lt.s32.totalorder %s147, 63
      %s149 = scalar_select %p148, %s147, 63
      %s150 = smul.addr %s149, 8
      %s151 = scalar_lea.vmem %s0, %s150
      %p152 = pneg %p36
      %p153 = pneg %p33
      %p154 = pneg %p57
      %p155 = pneg %p54
      %p156 = pneg %p83
      %p157 = pneg %p80
      %s158 = smul.u32 16, %s15
      %p159 = scmp.lt.s32.totalorder %s158, 63
      %s160 = scalar_select %p159, %s158, 63
      %s161 = smul.addr %s160, 8
      %s162 = scalar_lea.vmem %s2, %s161
      %p163 = pneg %p109
      %p164 = pneg %p106
      %p165 = scmp.lt.s32.totalorder %s15, 3
      %s166 = scalar_select %p165, %s15, 3
      %s167 = smul.addr %s166, 8
      %s168 = scalar_lea.vmem %s3, %s167
      %s169 = smul.u32 16, %s15
      %p170 = scmp.lt.s32.totalorder %s169, 63
      %s171 = scalar_select %p170, %s169, 63
      %s172 = smul.addr %s171, 8
      %s173 = scalar_lea.vmem %s0, %s172
      %s174 = smul.u32 16, %s15
      %s175 = smul.u32 16, %s15
      %p176 = scmp.lt.s32.totalorder %s175, 63
      %s177 = scalar_select %p176, %s175, 63
      %s178 = smul.addr %s177, 8
      %s179 = scalar_lea.vmem %s2, %s178
      %s180 = smul.u32 16, %s15
      %p181 = scmp.lt.s32.totalorder %s15, 3
      %s182 = scalar_select %p181, %s15, 3
      %s183 = smul.addr %s182, 8
      %s184 = scalar_lea.vmem %s3, %s183
      %v185 = vld [vmem:[%s173] sm:$0xff]
      %v186 = vld [vmem:[%s173 + $0x8] sm:$0xff]
      %v187 = vld [vmem:[%s173 + $0x10] sm:$0xff]
      %v188 = vld [vmem:[%s173 + $0x18] sm:$0xff]
      %v189 = vld [vmem:[%s173 + $0x20] sm:$0xff]
      %v190 = vld [vmem:[%s173 + $0x28] sm:$0xff]
      %v191 = vld [vmem:[%s173 + $0x30] sm:$0xff]
      %v192 = vld [vmem:[%s173 + $0x38] sm:$0xff]
      %v193 = vld [vmem:[%s173 + $0x40] sm:$0xff]
      %v194 = vld [vmem:[%s173 + $0x48] sm:$0xff]
      %v195 = vld [vmem:[%s173 + $0x50] sm:$0xff]
      %v196 = vld [vmem:[%s173 + $0x58] sm:$0xff]
      %v197 = vld [vmem:[%s173 + $0x60] sm:$0xff]
      %v198 = vld [vmem:[%s173 + $0x68] sm:$0xff]
      %v199 = vld [vmem:[%s173 + $0x70] sm:$0xff]
      %v200 = vld [vmem:[%s173 + $0x78] sm:$0xff]
      %v201 = vld [vmem:[%s1] sm:$0xff]
      %v202 = vld [vmem:[%s1 + $0x8] sm:$0xff]
      %v203 = vld [vmem:[%s1 + $0x10] sm:$0xff]
      %v204 = vld [vmem:[%s1 + $0x18] sm:$0xff]
      %v205 = vld [vmem:[%s1 + $0x20] sm:$0xff]
      %v206 = vld [vmem:[%s1 + $0x28] sm:$0xff]
      %v207 = vld [vmem:[%s1 + $0x30] sm:$0xff]
      %v208 = vld [vmem:[%s1 + $0x38] sm:$0xff]
      %v209 = vld [vmem:[%s1 + $0x40] sm:$0xff]
      %v210 = vld [vmem:[%s1 + $0x48] sm:$0xff]
      %v211 = vld [vmem:[%s1 + $0x50] sm:$0xff]
      %v212 = vld [vmem:[%s1 + $0x58] sm:$0xff]
      %v213 = vld [vmem:[%s1 + $0x60] sm:$0xff]
      %v214 = vld [vmem:[%s1 + $0x68] sm:$0xff]
      %v215 = vld [vmem:[%s1 + $0x70] sm:$0xff]
      %v216 = vld [vmem:[%s1 + $0x78] sm:$0xff]
      %217 = vmatpush.msra.mxu0 %v216
      %218 = vmatpush.msra.mxu0 %v215
      %219 = vmatpush.msra.mxu0 %v214
      %220 = vmatpush.msra.mxu0 %v213
      %221 = vmatpush.msra.mxu0 %v212
      %222 = vmatpush.msra.mxu0 %v211
      %223 = vmatpush.msra.mxu0 %v210
      %224 = vmatpush.msra.mxu0 %v209
      %225 = vmatpush.msra.mxu0 %v208
      %226 = vmatpush.msra.mxu0 %v207
      %227 = vmatpush.msra.mxu0 %v206
      %228 = vmatpush.msra.mxu0 %v205
      %229 = vmatpush.msra.mxu0 %v204
      %230 = vmatpush.msra.mxu0 %v203
      %231 = vmatpush.msra.mxu0 %v202
      %232 = vmatpush.msra.mxu0 %v201
      %233 = vmatmul.f32.gmra.mxu0 %v185
      %v234 = vpop.f32.mrf.mxu0
      %v235 = vadd.f32 0.0, %v234
      %236 = vmatmul.f32.gmra.mxu0 %v186
      %v237 = vpop.f32.mrf.mxu0
      %v238 = vadd.f32 0.0, %v237
      %239 = vmatmul.f32.gmra.mxu0 %v187
      %v240 = vpop.f32.mrf.mxu0
      %v241 = vadd.f32 0.0, %v240
      %242 = vmatmul.f32.gmra.mxu0 %v188
      %v243 = vpop.f32.mrf.mxu0
      %v244 = vadd.f32 0.0, %v243
      %245 = vmatmul.f32.gmra.mxu0 %v189
      %v246 = vpop.f32.mrf.mxu0
      %v247 = vadd.f32 0.0, %v246
      %248 = vmatmul.f32.gmra.mxu0 %v190
      %v249 = vpop.f32.mrf.mxu0
      %v250 = vadd.f32 0.0, %v249
      %251 = vmatmul.f32.gmra.mxu0 %v191
      %v252 = vpop.f32.mrf.mxu0
      %v253 = vadd.f32 0.0, %v252
      %254 = vmatmul.f32.gmra.mxu0 %v192
      %v255 = vpop.f32.mrf.mxu0
      %v256 = vadd.f32 0.0, %v255
      %257 = vmatmul.f32.gmra.mxu0 %v193
      %v258 = vpop.f32.mrf.mxu0
      %v259 = vadd.f32 0.0, %v258
      %260 = vmatmul.f32.gmra.mxu0 %v194
      %v261 = vpop.f32.mrf.mxu0
      %v262 = vadd.f32 0.0, %v261
      %263 = vmatmul.f32.gmra.mxu0 %v195
      %v264 = vpop.f32.mrf.mxu0
      %v265 = vadd.f32 0.0, %v264
      %266 = vmatmul.f32.gmra.mxu0 %v196
      %v267 = vpop.f32.mrf.mxu0
      %v268 = vadd.f32 0.0, %v267
      %269 = vmatmul.f32.gmra.mxu0 %v197
      %v270 = vpop.f32.mrf.mxu0
      %v271 = vadd.f32 0.0, %v270
      %272 = vmatmul.f32.gmra.mxu0 %v198
      %v273 = vpop.f32.mrf.mxu0
      %v274 = vadd.f32 0.0, %v273
      %275 = vmatmul.f32.gmra.mxu0 %v199
      %v276 = vpop.f32.mrf.mxu0
      %v277 = vadd.f32 0.0, %v276
      %278 = vmatmul.f32.gmra.mxu0 %v200
      %v279 = vpop.f32.mrf.mxu0
      %v280 = vadd.f32 0.0, %v279
      %281 = vdwg.mxu0
      %282 = vst [vmem:[%s179] sm:$0xff] %v235
      %283 = vst [vmem:[%s179 + $0x8] sm:$0xff] %v238
      %284 = vst [vmem:[%s179 + $0x10] sm:$0xff] %v241
      %285 = vst [vmem:[%s179 + $0x18] sm:$0xff] %v244
      %286 = vst [vmem:[%s179 + $0x20] sm:$0xff] %v247
      %287 = vst [vmem:[%s179 + $0x28] sm:$0xff] %v250
      %288 = vst [vmem:[%s179 + $0x30] sm:$0xff] %v253
      %289 = vst [vmem:[%s179 + $0x38] sm:$0xff] %v256
      %290 = vst [vmem:[%s179 + $0x40] sm:$0xff] %v259
      %291 = vst [vmem:[%s179 + $0x48] sm:$0xff] %v262
      %292 = vst [vmem:[%s179 + $0x50] sm:$0xff] %v265
      %293 = vst [vmem:[%s179 + $0x58] sm:$0xff] %v268
      %294 = vst [vmem:[%s179 + $0x60] sm:$0xff] %v271
      %295 = vst [vmem:[%s179 + $0x68] sm:$0xff] %v274
      %296 = vst [vmem:[%s179 + $0x70] sm:$0xff] %v277
      %297 = vst [vmem:[%s179 + $0x78] sm:$0xff] %v280
      %v298 = vadd.f32 %v235, %v238
      %v299 = vadd.f32 %v298, %v241
      %v300 = vadd.f32 %v299, %v244
      %v301 = vadd.f32 %v300, %v247
      %v302 = vadd.f32 %v301, %v250
      %v303 = vadd.f32 %v302, %v253
      %v304 = vadd.f32 %v303, %v256
      %v305 = vadd.f32 %v304, %v259
      %v306 = vadd.f32 %v305, %v262
      %v307 = vadd.f32 %v306, %v265
      %v308 = vadd.f32 %v307, %v268
      %v309 = vadd.f32 %v308, %v271
      %v310 = vadd.f32 %v309, %v274
      %v311 = vadd.f32 %v310, %v277
      %v312 = vadd.f32 %v311, %v280
      %v313 = vrot.slane %v312, 4
      %v314 = vadd.f32 %v312, %v313
      %v315 = vrot.slane %v314, 2
      %v316 = vadd.f32 %v314, %v315
      %v317 = vrot.slane %v316, 1
      %v318 = vadd.f32 %v316, %v317
      %v319 = vmul.f32 %v235, %v235
      %v320 = vmul.f32 %v238, %v238
      %v321 = vmul.f32 %v241, %v241
      %v322 = vmul.f32 %v244, %v244
      %v323 = vmul.f32 %v247, %v247
      %v324 = vmul.f32 %v250, %v250
      %v325 = vmul.f32 %v253, %v253
      %v326 = vmul.f32 %v256, %v256
      %v327 = vmul.f32 %v259, %v259
      %v328 = vmul.f32 %v262, %v262
      %v329 = vmul.f32 %v265, %v265
      %v330 = vmul.f32 %v268, %v268
      %v331 = vmul.f32 %v271, %v271
      %v332 = vmul.f32 %v274, %v274
      %v333 = vmul.f32 %v277, %v277
      %v334 = vmul.f32 %v280, %v280
      %v335 = vadd.f32 %v319, %v320
      %v336 = vadd.f32 %v335, %v321
      %v337 = vadd.f32 %v336, %v322
      %v338 = vadd.f32 %v337, %v323
      %v339 = vadd.f32 %v338, %v324
      %v340 = vadd.f32 %v339, %v325
      %v341 = vadd.f32 %v340, %v326
      %v342 = vadd.f32 %v341, %v327
      %v343 = vadd.f32 %v342, %v328
      %v344 = vadd.f32 %v343, %v329
      %v345 = vadd.f32 %v344, %v330
      %v346 = vadd.f32 %v345, %v331
      %v347 = vadd.f32 %v346, %v332
      %v348 = vadd.f32 %v347, %v333
      %v349 = vadd.f32 %v348, %v334
      %v350 = vrot.slane %v349, 4
      %v351 = vadd.f32 %v349, %v350
      %v352 = vrot.slane %v351, 2
      %v353 = vadd.f32 %v351, %v352
      %v354 = vrot.slane %v353, 1
      %v355 = vadd.f32 %v353, %v354
      %v356 = vlaneseq
      %v357 = vshrl.u32 %v356, 7
      %vm358 = vcmp.eq.s32.totalorder %v357, 0
      %vm359 = vcmp.eq.s32.totalorder %v357, 1
      %v360 = vsel %vm359, %v355, 0.0
      %v361 = vsel %vm358, %v318, %v360
      %362 = vst [vmem:[%s184] sm:$0xff] %v361
      %s363 = smul.u32 16, %s15
      %p364 = scmp.lt.s32.totalorder %s363, 63
      %s365 = scalar_select %p364, %s363, 63
      %s366 = smul.addr %s365, 8
      %s367 = scalar_lea.vmem %s2, %s366
      %p368 = scmp.lt.s32.totalorder %s15, 3
      %s369 = scalar_select %p368, %s15, 3
      %s370 = smul.addr %s369, 8
      %s371 = scalar_lea.vmem %s3, %s370
      // Predicated region
      $region29: #{bottleneck_forward.4} parent=27 // pred_check
        %p372 = pneg %p80
      $region30: #{bottleneck_forward.4} parent=27 // pred_check_branch
        %374 = sbr.rel (%p372) target = $region32
      $region31: #{bottleneck_forward.4} parent=27 // pred_region
        %s375 = smul.u32 16, %s15
      $region32: #{bottleneck_forward.4} parent=27 // pred_fallthru
        _
      // Predicated region
      $region33: #{bottleneck_forward.4} parent=27 // pred_check
        %p376 = pneg %p106
      $region34: #{bottleneck_forward.4} parent=27 // pred_check_branch
        %378 = sbr.rel (%p376) target = $region36
      $region35: #{bottleneck_forward.4} parent=27 // pred_region
        _
      $region36: #{bottleneck_forward.4} parent=27 // pred_fallthru
        _
    $region28: #{bottleneck_forward.4} parent=5 // pred_fallthru
      _
    %p379 = scmp.le.s32.totalorder 2, %s10
    // Predicated region
    $region37: #{bottleneck_forward.4} parent=5 // pred_check
      %p380 = pneg %p379
    $region38: #{bottleneck_forward.4} parent=5 // pred_check_branch
      %382 = sbr.rel (%p380) target = $region40
    $region39: #{bottleneck_forward.4} parent=5 // pred_region
      %s383 = ssub.s32 %s10, 2
      // Predicated region
      $region41: #{bottleneck_forward.4} parent=39 // pred_check
        %p384 = pneg %p86
      $region42: #{bottleneck_forward.4} parent=39 // pred_check_branch
        %386 = sbr.rel (%p384) target = $region44
      $region43: #{bottleneck_forward.4} parent=39 // pred_region
        %s387 = smul.u32 16, %s16
        %p388 = scmp.lt.s32.totalorder %s387, 63
        %s389 = scalar_select %p388, %s387, 63
        %s390 = smul.addr %s389, 8
        %s391 = scalar_lea.vmem %s2, %s390
      $region44: #{bottleneck_forward.4} parent=39 // pred_fallthru
        _
      // Predicated region
      $region45: #{bottleneck_forward.4} parent=39 // pred_check
        %p392 = pneg %p112
      $region46: #{bottleneck_forward.4} parent=39 // pred_check_branch
        %394 = sbr.rel (%p392) target = $region48
      $region47: #{bottleneck_forward.4} parent=39 // pred_region
        %p395 = scmp.lt.s32.totalorder %s16, 3
        %s396 = scalar_select %p395, %s16, 3
        %s397 = smul.addr %s396, 8
        %s398 = scalar_lea.vmem %s3, %s397
      $region48: #{bottleneck_forward.4} parent=39 // pred_fallthru
        _
    $region40: #{bottleneck_forward.4} parent=5 // pred_fallthru
      _
  $region6: #{bottleneck_forward.4} parent=0 // loop_footer
    %s14 = sadd.s32 1, %s10
  $region7: #{bottleneck_forward.4} parent=0 // loop_footer_branch
    %9 = sbr.rel target = $region3
  $region8: #{bottleneck_forward.4} parent=0 // loop_exit
    _

// kernel: bottleneck_forward.6
$region0: #{bottleneck_forward.6}
  #allocation0 [shape = 'u32[]', space=smem, size = 0x4, offset = 0x4, fixed_abs, tag = 'smem constant byte address 0x4 - core index']
  #allocation1 [shape = 'u32[72,128]{1,0:T(1,128)}', space=vmem, size = 0x9000, scoped, tag = 'internal scratch']
  %s0 = inlined_call_operand.vmem [shape: f32[512,128], index: 0, kind: input, shape index: {}]
  %s1 = inlined_call_operand.vmem [shape: f32[1,128], index: 1, kind: input, shape index: {}]
  %s2 = inlined_call_operand.vmem [shape: f32[1,128], index: 2, kind: input, shape index: {}]
  %s3 = inlined_call_operand.vmem [shape: f32[128,128], index: 3, kind: input, shape index: {}]
  %s4 = inlined_call_operand.vmem [shape: f32[4,8,128], index: 4, kind: output, shape index: {}]
  %s5 = sld [smem:[#allocation0]]
  $region49: #{bottleneck_forward.6} parent=0
    _
  %s7 = ssub.s32 1, %s5
  %s8 = scalar_select 0, %s7, %s5
  loop: start=0, step=1, limit=6
  $region2: #{bottleneck_forward.6} parent=0 // loop_pre_header
    _
  $region3: #{bottleneck_forward.6} parent=0 // loop_header
    %s10 = sphi 0, %s14
    %p11 = scmp.ge.s32.totalorder %s10, 6
    %s20 = sphi 0, %s22
    %s23 = sphi 0, %s20
    %s24 = sphi 0, %s23
    %s40 = sphi 0, %s24
    %s44 = sphi 0, %s44
    %s46 = sphi 0, %s44
    %s47 = sphi 0, %s46
    %s61 = sphi 0, %s47
    %s65 = sphi 0, %s65
    %s67 = sphi 0, %s65
    %s68 = sphi 0, %s67
    %s82 = sphi 0, %s68
    %s86 = sphi 0, %s86
    %s88 = sphi 0, %s86
    %s89 = sphi 0, %s88
    %s103 = sphi 0, %s89
    %s109 = sphi 0, %s111
    %s112 = sphi 0, %s109
    %s113 = sphi 0, %s112
    %s129 = sphi 0, %s113
  $region4: #{bottleneck_forward.6} parent=0 // loop_header_branch
    %13 = sbr.rel (%p11) target = $region8
  $region5: #{bottleneck_forward.6} parent=0 // loop_body
    %s15 = ssub.s32 %s10, 1
    %s16 = ssub.s32 %s10, 2
    %s17 = sadd.s32 %s10, 1
    %s18 = ssub.s32 %s10, %s17
    %p19 = scmp.eq.s32.totalorder %s18, 0
    %s21 = sadd.s32 %s20, 1
    %s22 = scalar_select %p19, %s20, %s21
    %p25 = pneg %p19
    %p26 = scmp.eq.s32.totalorder %s10, 3
    %p27 = por %p25, %p26
    %p28 = scmp.ne.s32.totalorder %s20, %s23
    %p29 = scmp.eq.s32.totalorder %s10, 0
    %p30 = por %p28, %p29
    %p31 = scmp.ne.s32.totalorder %s20, %s23
    %p32 = scmp.eq.s32.totalorder %s15, 3
    %p33 = por %p31, %p32
    %p34 = scmp.ne.s32.totalorder %s23, %s24
    %p35 = scmp.eq.s32.totalorder %s15, 0
    %p36 = por %p34, %p35
    %p37 = scmp.ne.s32.totalorder %s23, %s24
    %p38 = scmp.eq.s32.totalorder %s16, 3
    %p39 = por %p37, %p38
    %p41 = scmp.ne.s32.totalorder %s24, %s40
    %p42 = scmp.eq.s32.totalorder %s16, 0
    %p43 = por %p41, %p42
    %s45 = sadd.s32 %s44, 1
    %p48 = scmp.eq.s32.totalorder %s10, 3
    %p49 = scmp.ne.s32.totalorder %s44, %s46
    %p50 = scmp.eq.s32.totalorder %s10, 0
    %p51 = por %p49, %p50
    %p52 = scmp.ne.s32.totalorder %s44, %s46
    %p53 = scmp.eq.s32.totalorder %s15, 3
    %p54 = por %p52, %p53
    %p55 = scmp.ne.s32.totalorder %s46, %s47
    %p56 = scmp.eq.s32.totalorder %s15, 0
    %p57 = por %p55, %p56
    %p58 = scmp.ne.s32.totalorder %s46, %s47
    %p59 = scmp.eq.s32.totalorder %s16, 3
    %p60 = por %p58, %p59
    %p62 = scmp.ne.s32.totalorder %s47, %s61
    %p63 = scmp.eq.s32.totalorder %s16, 0
    %p64 = por %p62, %p63
    %s66 = sadd.s32 %s65, 1
    %p69 = scmp.eq.s32.totalorder %s10, 3
    %p70 = scmp.ne.s32.totalorder %s65, %s67
    %p71 = scmp.eq.s32.totalorder %s10, 0
    %p72 = por %p70, %p71
    %p73 = scmp.ne.s32.totalorder %s65, %s67
    %p74 = scmp.eq.s32.totalorder %s15, 3
    %p75 = por %p73, %p74
    %p76 = scmp.ne.s32.totalorder %s67, %s68
    %p77 = scmp.eq.s32.totalorder %s15, 0
    %p78 = por %p76, %p77
    %p79 = scmp.ne.s32.totalorder %s67, %s68
    %p80 = scmp.eq.s32.totalorder %s16, 3
    %p81 = por %p79, %p80
    %p83 = scmp.ne.s32.totalorder %s68, %s82
    %p84 = scmp.eq.s32.totalorder %s16, 0
    %p85 = por %p83, %p84
    %s87 = sadd.s32 %s86, 1
    %p90 = scmp.eq.s32.totalorder %s10, 3
    %p91 = scmp.ne.s32.totalorder %s86, %s88
    %p92 = scmp.eq.s32.totalorder %s10, 0
    %p93 = por %p91, %p92
    %p94 = scmp.ne.s32.totalorder %s86, %s88
    %p95 = scmp.eq.s32.totalorder %s15, 3
    %p96 = por %p94, %p95
    %p97 = scmp.ne.s32.totalorder %s88, %s89
    %p98 = scmp.eq.s32.totalorder %s15, 0
    %p99 = por %p97, %p98
    %p100 = scmp.ne.s32.totalorder %s88, %s89
    %p101 = scmp.eq.s32.totalorder %s16, 3
    %p102 = por %p100, %p101
    %p104 = scmp.ne.s32.totalorder %s89, %s103
    %p105 = scmp.eq.s32.totalorder %s16, 0
    %p106 = por %p104, %p105
    %s107 = ssub.s32 %s10, %s17
    %p108 = scmp.eq.s32.totalorder %s107, 0
    %s110 = sadd.s32 %s109, 1
    %s111 = scalar_select %p108, %s109, %s110
    %p114 = pneg %p108
    %p115 = scmp.eq.s32.totalorder %s10, 3
    %p116 = por %p114, %p115
    %p117 = scmp.ne.s32.totalorder %s109, %s112
    %p118 = scmp.eq.s32.totalorder %s10, 0
    %p119 = por %p117, %p118
    %p120 = scmp.ne.s32.totalorder %s109, %s112
    %p121 = scmp.eq.s32.totalorder %s15, 3
    %p122 = por %p120, %p121
    %p123 = scmp.ne.s32.totalorder %s112, %s113
    %p124 = scmp.eq.s32.totalorder %s15, 0
    %p125 = por %p123, %p124
    %p126 = scmp.ne.s32.totalorder %s112, %s113
    %p127 = scmp.eq.s32.totalorder %s16, 3
    %p128 = por %p126, %p127
    %p130 = scmp.ne.s32.totalorder %s113, %s129
    %p131 = scmp.eq.s32.totalorder %s16, 0
    %p132 = por %p130, %p131
    %p133 = scmp.le.s32.totalorder 1, %s10
    %p134 = scmp.lt.s32.totalorder %s10, 5
    %p135 = pnand %p133, %p134
    %p136 = pneg %p135
    // Predicated region
    $region9: #{bottleneck_forward.6} parent=5 // pred_check
      _
    $region10: #{bottleneck_forward.6} parent=5 // pred_check_branch
      %138 = sbr.rel (%p135) target = $region12
    $region11: #{bottleneck_forward.6} parent=5 // pred_region
      %s139 = ssub.s32 %s10, 1
      // Predicated region
      $region13: #{bottleneck_forward.6} parent=11 // pred_check
        %p140 = pneg %p57
      $region14: #{bottleneck_forward.6} parent=11 // pred_check_branch
        %142 = sbr.rel (%p140) target = $region16
      $region15: #{bottleneck_forward.6} parent=11 // pred_region
        _
      $region16: #{bottleneck_forward.6} parent=11 // pred_fallthru
        _
      // Predicated region
      $region17: #{bottleneck_forward.6} parent=11 // pred_check
        %p143 = pneg %p78
      $region18: #{bottleneck_forward.6} parent=11 // pred_check_branch
        %145 = sbr.rel (%p143) target = $region20
      $region19: #{bottleneck_forward.6} parent=11 // pred_region
        _
      $region20: #{bottleneck_forward.6} parent=11 // pred_fallthru
        _
      // Predicated region
      $region21: #{bottleneck_forward.6} parent=11 // pred_check
        %p146 = pneg %p99
      $region22: #{bottleneck_forward.6} parent=11 // pred_check_branch
        %148 = sbr.rel (%p146) target = $region24
      $region23: #{bottleneck_forward.6} parent=11 // pred_region
        _
      $region24: #{bottleneck_forward.6} parent=11 // pred_fallthru
        _
    $region12: #{bottleneck_forward.6} parent=5 // pred_fallthru
      _
    %p149 = scmp.lt.s32.totalorder %s10, 4
    // Predicated region
    $region25: #{bottleneck_forward.6} parent=5 // pred_check
      %p150 = pneg %p149
    $region26: #{bottleneck_forward.6} parent=5 // pred_check_branch
      %152 = sbr.rel (%p150) target = $region28
    $region27: #{bottleneck_forward.6} parent=5 // pred_region
      // Predicated region
      $region29: #{bottleneck_forward.6} parent=27 // pred_check
        %p153 = pneg %p30
      $region30: #{bottleneck_forward.6} parent=27 // pred_check_branch
        %155 = sbr.rel (%p153) target = $region32
      $region31: #{bottleneck_forward.6} parent=27 // pred_region
        %s156 = smul.u32 16, %s10
        %p157 = scmp.lt.s32.totalorder %s156, 63
        %s158 = scalar_select %p157, %s156, 63
        %s159 = smul.addr %s158, 8
        %s160 = scalar_lea.vmem %s0, %s159
        %s161 = smul.u32 16, %s10
      $region32: #{bottleneck_forward.6} parent=27 // pred_fallthru
        _
    $region28: #{bottleneck_forward.6} parent=5 // pred_fallthru
      _
    %p162 = scmp.le.s32.totalorder 1, %s10
    %p163 = scmp.lt.s32.totalorder %s10, 5
    %p164 = pnand %p162, %p163
    %p165 = pneg %p164
    // Predicated region
    $region33: #{bottleneck_forward.6} parent=5 // pred_check
      _
    $region34: #{bottleneck_forward.6} parent=5 // pred_check_branch
      %167 = sbr.rel (%p164) target = $region36
    $region35: #{bottleneck_forward.6} parent=5 // pred_region
      %s168 = ssub.s32 %s10, 1
      %s169 = smul.u32 16, %s15
      %p170 = scmp.lt.s32.totalorder %s169, 63
      %s171 = scalar_select %p170, %s169, 63
      %s172 = smul.addr %s171, 8
      %s173 = scalar_lea.vmem %s0, %s172
      %p174 = pneg %p36
      %p175 = pneg %p33
      %p176 = pneg %p57
      %p177 = pneg %p54
      %p178 = pneg %p78
      %p179 = pneg %p75
      %p180 = pneg %p99
      %p181 = pneg %p96
      %p182 = pneg %p125
      %p183 = pneg %p122
      %p184 = scmp.lt.s32.totalorder %s15, 3
      %s185 = scalar_select %p184, %s15, 3
      %s186 = smul.addr %s185, 8
      %s187 = scalar_lea.vmem %s4, %s186
      %s188 = smul.u32 16, %s15
      %p189 = scmp.lt.s32.totalorder %s188, 63
      %s190 = scalar_select %p189, %s188, 63
      %s191 = smul.addr %s190, 8
      %s192 = scalar_lea.vmem %s0, %s191
      %s193 = smul.u32 16, %s15
      %p194 = scmp.lt.s32.totalorder %s15, 3
      %s195 = scalar_select %p194, %s15, 3
      %s196 = smul.addr %s195, 8
      %s197 = scalar_lea.vmem %s4, %s196
      %v198 = vld [vmem:[%s192] sm:$0xff]
      %v199 = vld [vmem:[%s192 + $0x8] sm:$0xff]
      %v200 = vld [vmem:[%s192 + $0x10] sm:$0xff]
      %v201 = vld [vmem:[%s192 + $0x18] sm:$0xff]
      %v202 = vld [vmem:[%s192 + $0x20] sm:$0xff]
      %v203 = vld [vmem:[%s192 + $0x28] sm:$0xff]
      %v204 = vld [vmem:[%s192 + $0x30] sm:$0xff]
      %v205 = vld [vmem:[%s192 + $0x38] sm:$0xff]
      %v206 = vld [vmem:[%s192 + $0x40] sm:$0xff]
      %v207 = vld [vmem:[%s192 + $0x48] sm:$0xff]
      %v208 = vld [vmem:[%s192 + $0x50] sm:$0xff]
      %v209 = vld [vmem:[%s192 + $0x58] sm:$0xff]
      %v210 = vld [vmem:[%s192 + $0x60] sm:$0xff]
      %v211 = vld [vmem:[%s192 + $0x68] sm:$0xff]
      %v212 = vld [vmem:[%s192 + $0x70] sm:$0xff]
      %v213 = vld [vmem:[%s192 + $0x78] sm:$0xff]
      %v214 = vld [vmem:[%s1] sm:$0x1]
      %v216 = vperm.slane %v214, 0
      %v218 = vmul.f32 %v198, %v216
      %v219 = vmul.f32 %v199, %v216
      %v220 = vmul.f32 %v200, %v216
      %v221 = vmul.f32 %v201, %v216
      %v222 = vmul.f32 %v202, %v216
      %v223 = vmul.f32 %v203, %v216
      %v224 = vmul.f32 %v204, %v216
      %v225 = vmul.f32 %v205, %v216
      %v226 = vmul.f32 %v206, %v216
      %v227 = vmul.f32 %v207, %v216
      %v228 = vmul.f32 %v208, %v216
      %v229 = vmul.f32 %v209, %v216
      %v230 = vmul.f32 %v210, %v216
      %v231 = vmul.f32 %v211, %v216
      %v232 = vmul.f32 %v212, %v216
      %v233 = vmul.f32 %v213, %v216
      %v234 = vld [vmem:[%s2] sm:$0x1]
      %v236 = vperm.slane %v234, 0
      %v238 = vadd.f32 %v218, %v236
      %v239 = vadd.f32 %v219, %v236
      %v240 = vadd.f32 %v220, %v236
      %v241 = vadd.f32 %v221, %v236
      %v242 = vadd.f32 %v222, %v236
      %v243 = vadd.f32 %v223, %v236
      %v244 = vadd.f32 %v224, %v236
      %v245 = vadd.f32 %v225, %v236
      %v246 = vadd.f32 %v226, %v236
      %v247 = vadd.f32 %v227, %v236
      %v248 = vadd.f32 %v228, %v236
      %v249 = vadd.f32 %v229, %v236
      %v250 = vadd.f32 %v230, %v236
      %v251 = vadd.f32 %v231, %v236
      %v252 = vadd.f32 %v232, %v236
      %v253 = vadd.f32 %v233, %v236
      %v254 = vmax.f32 %v238, 0.0
      %v255 = vmax.f32 %v239, 0.0
      %v256 = vmax.f32 %v240, 0.0
      %v257 = vmax.f32 %v241, 0.0
      %v258 = vmax.f32 %v242, 0.0
      %v259 = vmax.f32 %v243, 0.0
      %v260 = vmax.f32 %v244, 0.0
      %v261 = vmax.f32 %v245, 0.0
      %v262 = vmax.f32 %v246, 0.0
      %v263 = vmax.f32 %v247, 0.0
      %v264 = vmax.f32 %v248, 0.0
      %v265 = vmax.f32 %v249, 0.0
      %v266 = vmax.f32 %v250, 0.0
      %v267 = vmax.f32 %v251, 0.0
      %v268 = vmax.f32 %v252, 0.0
      %v269 = vmax.f32 %v253, 0.0
      %v270 = vld [vmem:[%s3] sm:$0xff]
      %v271 = vld [vmem:[%s3 + $0x8] sm:$0xff]
      %v272 = vld [vmem:[%s3 + $0x10] sm:$0xff]
      %v273 = vld [vmem:[%s3 + $0x18] sm:$0xff]
      %v274 = vld [vmem:[%s3 + $0x20] sm:$0xff]
      %v275 = vld [vmem:[%s3 + $0x28] sm:$0xff]
      %v276 = vld [vmem:[%s3 + $0x30] sm:$0xff]
      %v277 = vld [vmem:[%s3 + $0x38] sm:$0xff]
      %v278 = vld [vmem:[%s3 + $0x40] sm:$0xff]
      %v279 = vld [vmem:[%s3 + $0x48] sm:$0xff]
      %v280 = vld [vmem:[%s3 + $0x50] sm:$0xff]
      %v281 = vld [vmem:[%s3 + $0x58] sm:$0xff]
      %v282 = vld [vmem:[%s3 + $0x60] sm:$0xff]
      %v283 = vld [vmem:[%s3 + $0x68] sm:$0xff]
      %v284 = vld [vmem:[%s3 + $0x70] sm:$0xff]
      %v285 = vld [vmem:[%s3 + $0x78] sm:$0xff]
      %286 = vmatpush.msra.mxu0 %v285
      %287 = vmatpush.msra.mxu0 %v284
      %288 = vmatpush.msra.mxu0 %v283
      %289 = vmatpush.msra.mxu0 %v282
      %290 = vmatpush.msra.mxu0 %v281
      %291 = vmatpush.msra.mxu0 %v280
      %292 = vmatpush.msra.mxu0 %v279
      %293 = vmatpush.msra.mxu0 %v278
      %294 = vmatpush.msra.mxu0 %v277
      %295 = vmatpush.msra.mxu0 %v276
      %296 = vmatpush.msra.mxu0 %v275
      %297 = vmatpush.msra.mxu0 %v274
      %298 = vmatpush.msra.mxu0 %v273
      %299 = vmatpush.msra.mxu0 %v272
      %300 = vmatpush.msra.mxu0 %v271
      %301 = vmatpush.msra.mxu0 %v270
      %302 = vmatmul.f32.gmra.mxu0 %v254
      %v303 = vpop.f32.mrf.mxu0
      %v304 = vadd.f32 0.0, %v303
      %305 = vmatmul.f32.gmra.mxu0 %v255
      %v306 = vpop.f32.mrf.mxu0
      %v307 = vadd.f32 0.0, %v306
      %308 = vmatmul.f32.gmra.mxu0 %v256
      %v309 = vpop.f32.mrf.mxu0
      %v310 = vadd.f32 0.0, %v309
      %311 = vmatmul.f32.gmra.mxu0 %v257
      %v312 = vpop.f32.mrf.mxu0
      %v313 = vadd.f32 0.0, %v312
      %314 = vmatmul.f32.gmra.mxu0 %v258
      %v315 = vpop.f32.mrf.mxu0
      %v316 = vadd.f32 0.0, %v315
      %317 = vmatmul.f32.gmra.mxu0 %v259
      %v318 = vpop.f32.mrf.mxu0
      %v319 = vadd.f32 0.0, %v318
      %320 = vmatmul.f32.gmra.mxu0 %v260
      %v321 = vpop.f32.mrf.mxu0
      %v322 = vadd.f32 0.0, %v321
      %323 = vmatmul.f32.gmra.mxu0 %v261
      %v324 = vpop.f32.mrf.mxu0
      %v325 = vadd.f32 0.0, %v324
      %326 = vmatmul.f32.gmra.mxu0 %v262
      %v327 = vpop.f32.mrf.mxu0
      %v328 = vadd.f32 0.0, %v327
      %329 = vmatmul.f32.gmra.mxu0 %v263
      %v330 = vpop.f32.mrf.mxu0
      %v331 = vadd.f32 0.0, %v330
      %332 = vmatmul.f32.gmra.mxu0 %v264
      %v333 = vpop.f32.mrf.mxu0
      %v334 = vadd.f32 0.0, %v333
      %335 = vmatmul.f32.gmra.mxu0 %v265
      %v336 = vpop.f32.mrf.mxu0
      %v337 = vadd.f32 0.0, %v336
      %338 = vmatmul.f32.gmra.mxu0 %v266
      %v339 = vpop.f32.mrf.mxu0
      %v340 = vadd.f32 0.0, %v339
      %341 = vmatmul.f32.gmra.mxu0 %v267
      %v342 = vpop.f32.mrf.mxu0
      %v343 = vadd.f32 0.0, %v342
      %344 = vmatmul.f32.gmra.mxu0 %v268
      %v345 = vpop.f32.mrf.mxu0
      %v346 = vadd.f32 0.0, %v345
      %347 = vmatmul.f32.gmra.mxu0 %v269
      %v348 = vpop.f32.mrf.mxu0
      %v349 = vadd.f32 0.0, %v348
      %350 = vdwg.mxu0
      %v351 = vadd.f32 %v304, %v307
      %v352 = vadd.f32 %v351, %v310
      %v353 = vadd.f32 %v352, %v313
      %v354 = vadd.f32 %v353, %v316
      %v355 = vadd.f32 %v354, %v319
      %v356 = vadd.f32 %v355, %v322
      %v357 = vadd.f32 %v356, %v325
      %v358 = vadd.f32 %v357, %v328
      %v359 = vadd.f32 %v358, %v331
      %v360 = vadd.f32 %v359, %v334
      %v361 = vadd.f32 %v360, %v337
      %v362 = vadd.f32 %v361, %v340
      %v363 = vadd.f32 %v362, %v343
      %v364 = vadd.f32 %v363, %v346
      %v365 = vadd.f32 %v364, %v349
      %v366 = vrot.slane %v365, 4
      %v367 = vadd.f32 %v365, %v366
      %v368 = vrot.slane %v367, 2
      %v369 = vadd.f32 %v367, %v368
      %v370 = vrot.slane %v369, 1
      %v371 = vadd.f32 %v369, %v370
      %v372 = vmul.f32 %v304, %v304
      %v373 = vmul.f32 %v307, %v307
      %v374 = vmul.f32 %v310, %v310
      %v375 = vmul.f32 %v313, %v313
      %v376 = vmul.f32 %v316, %v316
      %v377 = vmul.f32 %v319, %v319
      %v378 = vmul.f32 %v322, %v322
      %v379 = vmul.f32 %v325, %v325
      %v380 = vmul.f32 %v328, %v328
      %v381 = vmul.f32 %v331, %v331
      %v382 = vmul.f32 %v334, %v334
      %v383 = vmul.f32 %v337, %v337
      %v384 = vmul.f32 %v340, %v340
      %v385 = vmul.f32 %v343, %v343
      %v386 = vmul.f32 %v346, %v346
      %v387 = vmul.f32 %v349, %v349
      %v388 = vadd.f32 %v372, %v373
      %v389 = vadd.f32 %v388, %v374
      %v390 = vadd.f32 %v389, %v375
      %v391 = vadd.f32 %v390, %v376
      %v392 = vadd.f32 %v391, %v377
      %v393 = vadd.f32 %v392, %v378
      %v394 = vadd.f32 %v393, %v379
      %v395 = vadd.f32 %v394, %v380
      %v396 = vadd.f32 %v395, %v381
      %v397 = vadd.f32 %v396, %v382
      %v398 = vadd.f32 %v397, %v383
      %v399 = vadd.f32 %v398, %v384
      %v400 = vadd.f32 %v399, %v385
      %v401 = vadd.f32 %v400, %v386
      %v402 = vadd.f32 %v401, %v387
      %v403 = vrot.slane %v402, 4
      %v404 = vadd.f32 %v402, %v403
      %v405 = vrot.slane %v404, 2
      %v406 = vadd.f32 %v404, %v405
      %v407 = vrot.slane %v406, 1
      %v408 = vadd.f32 %v406, %v407
      %v409 = vlaneseq
      %v410 = vshrl.u32 %v409, 7
      %vm411 = vcmp.eq.s32.totalorder %v410, 0
      %vm412 = vcmp.eq.s32.totalorder %v410, 1
      %v413 = vsel %vm412, %v408, 0.0
      %v414 = vsel %vm411, %v371, %v413
      %415 = vst [vmem:[%s197] sm:$0xff] %v414
      %p416 = scmp.lt.s32.totalorder %s15, 3
      %s417 = scalar_select %p416, %s15, 3
      %s418 = smul.addr %s417, 8
      %s419 = scalar_lea.vmem %s4, %s418
      // Predicated region
      $region37: #{bottleneck_forward.6} parent=35 // pred_check
        %p420 = pneg %p122
      $region38: #{bottleneck_forward.6} parent=35 // pred_check_branch
        %422 = sbr.rel (%p420) target = $region40
      $region39: #{bottleneck_forward.6} parent=35 // pred_region
        _
      $region40: #{bottleneck_forward.6} parent=35 // pred_fallthru
        _
    $region36: #{bottleneck_forward.6} parent=5 // pred_fallthru
      _
    %p423 = scmp.le.s32.totalorder 2, %s10
    // Predicated region
    $region41: #{bottleneck_forward.6} parent=5 // pred_check
      %p424 = pneg %p423
    $region42: #{bottleneck_forward.6} parent=5 // pred_check_branch
      %426 = sbr.rel (%p424) target = $region44
    $region43: #{bottleneck_forward.6} parent=5 // pred_region
      %s427 = ssub.s32 %s10, 2
      // Predicated region
      $region45: #{bottleneck_forward.6} parent=43 // pred_check
        %p428 = pneg %p128
      $region46: #{bottleneck_forward.6} parent=43 // pred_check_branch
        %430 = sbr.rel (%p428) target = $region48
      $region47: #{bottleneck_forward.6} parent=43 // pred_region
        %p431 = scmp.lt.s32.totalorder %s16, 3
        %s432 = scalar_select %p431, %s16, 3
        %s433 = smul.addr %s432, 8
        %s434 = scalar_lea.vmem %s4, %s433
      $region48: #{bottleneck_forward.6} parent=43 // pred_fallthru
        _
    $region44: #{bottleneck_forward.6} parent=5 // pred_fallthru
      _
  $region6: #{bottleneck_forward.6} parent=0 // loop_footer
    %s14 = sadd.s32 1, %s10
  $region7: #{bottleneck_forward.6} parent=0 // loop_footer_branch
    %9 = sbr.rel target = $region3
  $region8: #{bottleneck_forward.6} parent=0 // loop_exit
    _

// kernel: bottleneck_forward.5
$region0: #{bottleneck_forward.5}
  #allocation0 [shape = 'u32[]', space=smem, size = 0x4, offset = 0x4, fixed_abs, tag = 'smem constant byte address 0x4 - core index']
  #allocation1 [shape = 'u32[72,128]{1,0:T(1,128)}', space=vmem, size = 0x9000, scoped, tag = 'internal scratch']
  #allocation2 [shape = 'f32[328,128]{1,0:T(8,128)}', space=vmem, size = 0x29000, scoped, tag = 'scratch operand']
  %s0 = inlined_call_operand.vmem [shape: f32[2,16,16,128], index: 0, kind: input, shape index: {}]
  %s1 = inlined_call_operand.vmem [shape: f32[1,128], index: 1, kind: input, shape index: {}]
  %s2 = inlined_call_operand.vmem [shape: f32[1,128], index: 2, kind: input, shape index: {}]
  %s3 = inlined_call_operand.vmem [shape: f32[3,3,128,128], index: 3, kind: input, shape index: {}]
  %s4 = inlined_call_operand.vmem [shape: f32[2,16,16,128], index: 4, kind: output, shape index: {0}]
  %s5 = inlined_call_operand.vmem [shape: f32[2,8,128], index: 5, kind: output, shape index: {1}]
  %6 = xla_tuple %s4, %s5
  %s7 = sld [smem:[#allocation0]]
  $region57: #{bottleneck_forward.5} parent=0
    _
  %s9 = ssub.s32 1, %s7
  %s10 = scalar_select 0, %s9, %s7
  loop: start=0, step=1, limit=4
  $region2: #{bottleneck_forward.5} parent=0 // loop_pre_header
    _
  $region3: #{bottleneck_forward.5} parent=0 // loop_header
    %s12 = sphi 0, %s16
    %p13 = scmp.ge.s32.totalorder %s12, 4
    %s22 = sphi 0, %s24
    %s25 = sphi 0, %s22
    %s26 = sphi 0, %s25
    %s42 = sphi 0, %s26
    %s46 = sphi 0, %s46
    %s48 = sphi 0, %s46
    %s49 = sphi 0, %s48
    %s63 = sphi 0, %s49
    %s67 = sphi 0, %s67
    %s69 = sphi 0, %s67
    %s70 = sphi 0, %s69
    %s84 = sphi 0, %s70
    %s88 = sphi 0, %s88
    %s90 = sphi 0, %s88
    %s91 = sphi 0, %s90
    %s105 = sphi 0, %s91
    %s111 = sphi 0, %s113
    %s114 = sphi 0, %s111
    %s115 = sphi 0, %s114
    %s131 = sphi 0, %s115
    %s137 = sphi 0, %s139
    %s140 = sphi 0, %s137
    %s141 = sphi 0, %s140
    %s157 = sphi 0, %s141
  $region4: #{bottleneck_forward.5} parent=0 // loop_header_branch
    %15 = sbr.rel (%p13) target = $region8
  $region5: #{bottleneck_forward.5} parent=0 // loop_body
    %s17 = ssub.s32 %s12, 1
    %s18 = ssub.s32 %s12, 2
    %s19 = sadd.s32 %s12, 1
    %s20 = ssub.s32 %s12, %s19
    %p21 = scmp.eq.s32.totalorder %s20, 0
    %s23 = sadd.s32 %s22, 1
    %s24 = scalar_select %p21, %s22, %s23
    %p27 = pneg %p21
    %p28 = scmp.eq.s32.totalorder %s12, 1
    %p29 = por %p27, %p28
    %p30 = scmp.ne.s32.totalorder %s22, %s25
    %p31 = scmp.eq.s32.totalorder %s12, 0
    %p32 = por %p30, %p31
    %p33 = scmp.ne.s32.totalorder %s22, %s25
    %p34 = scmp.eq.s32.totalorder %s17, 1
    %p35 = por %p33, %p34
    %p36 = scmp.ne.s32.totalorder %s25, %s26
    %p37 = scmp.eq.s32.totalorder %s17, 0
    %p38 = por %p36, %p37
    %p39 = scmp.ne.s32.totalorder %s25, %s26
    %p40 = scmp.eq.s32.totalorder %s18, 1
    %p41 = por %p39, %p40
    %p43 = scmp.ne.s32.totalorder %s26, %s42
    %p44 = scmp.eq.s32.totalorder %s18, 0
    %p45 = por %p43, %p44
    %s47 = sadd.s32 %s46, 1
    %p50 = scmp.eq.s32.totalorder %s12, 1
    %p51 = scmp.ne.s32.totalorder %s46, %s48
    %p52 = scmp.eq.s32.totalorder %s12, 0
    %p53 = por %p51, %p52
    %p54 = scmp.ne.s32.totalorder %s46, %s48
    %p55 = scmp.eq.s32.totalorder %s17, 1
    %p56 = por %p54, %p55
    %p57 = scmp.ne.s32.totalorder %s48, %s49
    %p58 = scmp.eq.s32.totalorder %s17, 0
    %p59 = por %p57, %p58
    %p60 = scmp.ne.s32.totalorder %s48, %s49
    %p61 = scmp.eq.s32.totalorder %s18, 1
    %p62 = por %p60, %p61
    %p64 = scmp.ne.s32.totalorder %s49, %s63
    %p65 = scmp.eq.s32.totalorder %s18, 0
    %p66 = por %p64, %p65
    %s68 = sadd.s32 %s67, 1
    %p71 = scmp.eq.s32.totalorder %s12, 1
    %p72 = scmp.ne.s32.totalorder %s67, %s69
    %p73 = scmp.eq.s32.totalorder %s12, 0
    %p74 = por %p72, %p73
    %p75 = scmp.ne.s32.totalorder %s67, %s69
    %p76 = scmp.eq.s32.totalorder %s17, 1
    %p77 = por %p75, %p76
    %p78 = scmp.ne.s32.totalorder %s69, %s70
    %p79 = scmp.eq.s32.totalorder %s17, 0
    %p80 = por %p78, %p79
    %p81 = scmp.ne.s32.totalorder %s69, %s70
    %p82 = scmp.eq.s32.totalorder %s18, 1
    %p83 = por %p81, %p82
    %p85 = scmp.ne.s32.totalorder %s70, %s84
    %p86 = scmp.eq.s32.totalorder %s18, 0
    %p87 = por %p85, %p86
    %s89 = sadd.s32 %s88, 1
    %p92 = scmp.eq.s32.totalorder %s12, 1
    %p93 = scmp.ne.s32.totalorder %s88, %s90
    %p94 = scmp.eq.s32.totalorder %s12, 0
    %p95 = por %p93, %p94
    %p96 = scmp.ne.s32.totalorder %s88, %s90
    %p97 = scmp.eq.s32.totalorder %s17, 1
    %p98 = por %p96, %p97
    %p99 = scmp.ne.s32.totalorder %s90, %s91
    %p100 = scmp.eq.s32.totalorder %s17, 0
    %p101 = por %p99, %p100
    %p102 = scmp.ne.s32.totalorder %s90, %s91
    %p103 = scmp.eq.s32.totalorder %s18, 1
    %p104 = por %p102, %p103
    %p106 = scmp.ne.s32.totalorder %s91, %s105
    %p107 = scmp.eq.s32.totalorder %s18, 0
    %p108 = por %p106, %p107
    %s109 = ssub.s32 %s12, %s19
    %p110 = scmp.eq.s32.totalorder %s109, 0
    %s112 = sadd.s32 %s111, 1
    %s113 = scalar_select %p110, %s111, %s112
    %p116 = pneg %p110
    %p117 = scmp.eq.s32.totalorder %s12, 1
    %p118 = por %p116, %p117
    %p119 = scmp.ne.s32.totalorder %s111, %s114
    %p120 = scmp.eq.s32.totalorder %s12, 0
    %p121 = por %p119, %p120
    %p122 = scmp.ne.s32.totalorder %s111, %s114
    %p123 = scmp.eq.s32.totalorder %s17, 1
    %p124 = por %p122, %p123
    %p125 = scmp.ne.s32.totalorder %s114, %s115
    %p126 = scmp.eq.s32.totalorder %s17, 0
    %p127 = por %p125, %p126
    %p128 = scmp.ne.s32.totalorder %s114, %s115
    %p129 = scmp.eq.s32.totalorder %s18, 1
    %p130 = por %p128, %p129
    %p132 = scmp.ne.s32.totalorder %s115, %s131
    %p133 = scmp.eq.s32.totalorder %s18, 0
    %p134 = por %p132, %p133
    %s135 = ssub.s32 %s12, %s19
    %p136 = scmp.eq.s32.totalorder %s135, 0
    %s138 = sadd.s32 %s137, 1
    %s139 = scalar_select %p136, %s137, %s138
    %p142 = pneg %p136
    %p143 = scmp.eq.s32.totalorder %s12, 1
    %p144 = por %p142, %p143
    %p145 = scmp.ne.s32.totalorder %s137, %s140
    %p146 = scmp.eq.s32.totalorder %s12, 0
    %p147 = por %p145, %p146
    %p148 = scmp.ne.s32.totalorder %s137, %s140
    %p149 = scmp.eq.s32.totalorder %s17, 1
    %p150 = por %p148, %p149
    %p151 = scmp.ne.s32.totalorder %s140, %s141
    %p152 = scmp.eq.s32.totalorder %s17, 0
    %p153 = por %p151, %p152
    %p154 = scmp.ne.s32.totalorder %s140, %s141
    %p155 = scmp.eq.s32.totalorder %s18, 1
    %p156 = por %p154, %p155
    %p158 = scmp.ne.s32.totalorder %s141, %s157
    %p159 = scmp.eq.s32.totalorder %s18, 0
    %p160 = por %p158, %p159
    %p161 = scmp.le.s32.totalorder 1, %s12
    %p162 = scmp.lt.s32.totalorder %s12, 3
    %p163 = pnand %p161, %p162
    %p164 = pneg %p163
    // Predicated region
    $region9: #{bottleneck_forward.5} parent=5 // pred_check
      _
    $region10: #{bottleneck_forward.5} parent=5 // pred_check_branch
      %166 = sbr.rel (%p163) target = $region12
    $region11: #{bottleneck_forward.5} parent=5 // pred_region
      %s167 = ssub.s32 %s12, 1
      // Predicated region
      $region13: #{bottleneck_forward.5} parent=11 // pred_check
        %p168 = pneg %p59
      $region14: #{bottleneck_forward.5} parent=11 // pred_check_branch
        %170 = sbr.rel (%p168) target = $region16
      $region15: #{bottleneck_forward.5} parent=11 // pred_region
        _
      $region16: #{bottleneck_forward.5} parent=11 // pred_fallthru
        _
      // Predicated region
      $region17: #{bottleneck_forward.5} parent=11 // pred_check
        %p171 = pneg %p80
      $region18: #{bottleneck_forward.5} parent=11 // pred_check_branch
        %173 = sbr.rel (%p171) target = $region20
      $region19: #{bottleneck_forward.5} parent=11 // pred_region
        _
      $region20: #{bottleneck_forward.5} parent=11 // pred_fallthru
        _
      // Predicated region
      $region21: #{bottleneck_forward.5} parent=11 // pred_check
        %p174 = pneg %p101
      $region22: #{bottleneck_forward.5} parent=11 // pred_check_branch
        %176 = sbr.rel (%p174) target = $region24
      $region23: #{bottleneck_forward.5} parent=11 // pred_region
        _
      $region24: #{bottleneck_forward.5} parent=11 // pred_fallthru
        _
    $region12: #{bottleneck_forward.5} parent=5 // pred_fallthru
      _
    %p177 = scmp.lt.s32.totalorder %s12, 2
    // Predicated region
    $region25: #{bottleneck_forward.5} parent=5 // pred_check
      %p178 = pneg %p177
    $region26: #{bottleneck_forward.5} parent=5 // pred_check_branch
      %180 = sbr.rel (%p178) target = $region28
    $region27: #{bottleneck_forward.5} parent=5 // pred_region
      // Predicated region
      $region29: #{bottleneck_forward.5} parent=27 // pred_check
        %p181 = pneg %p32
      $region30: #{bottleneck_forward.5} parent=27 // pred_check_branch
        %183 = sbr.rel (%p181) target = $region32
      $region31: #{bottleneck_forward.5} parent=27 // pred_region
        %p184 = scmp.lt.s32.totalorder %s12, 1
        %s185 = scalar_select %p184, %s12, 1
        %s186 = smul.addr %s185, 32
        %s187 = smul.addr %s186, 8
        %s188 = scalar_lea.vmem %s0, %s187
      $region32: #{bottleneck_forward.5} parent=27 // pred_fallthru
        _
    $region28: #{bottleneck_forward.5} parent=5 // pred_fallthru
      _
    %p189 = scmp.le.s32.totalorder 1, %s12
    %p190 = scmp.lt.s32.totalorder %s12, 3
    %p191 = pnand %p189, %p190
    %p192 = pneg %p191
    // Predicated region
    $region33: #{bottleneck_forward.5} parent=5 // pred_check
      _
    $region34: #{bottleneck_forward.5} parent=5 // pred_check_branch
      %194 = sbr.rel (%p191) target = $region36
    $region35: #{bottleneck_forward.5} parent=5 // pred_region
      %s195 = ssub.s32 %s12, 1
      %p196 = scmp.lt.s32.totalorder %s17, 1
      %s197 = scalar_select %p196, %s17, 1
      %s198 = smul.addr %s197, 32
      %s199 = smul.addr %s198, 8
      %s200 = scalar_lea.vmem %s0, %s199
      %p201 = pneg %p38
      %p202 = pneg %p35
      %p203 = pneg %p59
      %p204 = pneg %p56
      %p205 = pneg %p80
      %p206 = pneg %p77
      %p207 = pneg %p101
      %p208 = pneg %p98
      %p209 = pneg %p127
      %p210 = pneg %p124
      %p211 = scmp.lt.s32.totalorder %s17, 1
      %s212 = scalar_select %p211, %s17, 1
      %s213 = smul.addr %s212, 32
      %s214 = smul.addr %s213, 8
      %s215 = scalar_lea.vmem %s4, %s214
      %p216 = pneg %p153
      %p217 = pneg %p150
      %p218 = scmp.lt.s32.totalorder %s17, 1
      %s219 = scalar_select %p218, %s17, 1
      %s220 = smul.addr %s219, 8
      %s221 = scalar_lea.vmem %s5, %s220
      %p222 = scmp.lt.s32.totalorder %s17, 1
      %s223 = scalar_select %p222, %s17, 1
      %s224 = smul.addr %s223, 32
      %s225 = smul.addr %s224, 8
      %s226 = scalar_lea.vmem %s0, %s225
      %p227 = scmp.lt.s32.totalorder %s17, 1
      %s228 = scalar_select %p227, %s17, 1
      %s229 = smul.addr %s228, 32
      %s230 = smul.addr %s229, 8
      %s231 = scalar_lea.vmem %s4, %s230
      %p232 = scmp.lt.s32.totalorder %s17, 1
      %s233 = scalar_select %p232, %s17, 1
      %s234 = smul.addr %s233, 8
      %s235 = scalar_lea.vmem %s5, %s234
      %v236 = vld [vmem:[%s1] sm:$0x1]
      %v237 = vld [vmem:[%s2] sm:$0x1]
      %v238 = vld [vmem:[%s226] sm:$0xff]
      %v239 = vld [vmem:[%s226 + $0x8] sm:$0xff]
      %v240 = vld [vmem:[%s226 + $0x10] sm:$0xff]
      %v241 = vld [vmem:[%s226 + $0x18] sm:$0xff]
      %v242 = vld [vmem:[%s226 + $0x20] sm:$0xff]
      %v243 = vld [vmem:[%s226 + $0x28] sm:$0xff]
      %v244 = vld [vmem:[%s226 + $0x30] sm:$0xff]
      %v245 = vld [vmem:[%s226 + $0x38] sm:$0xff]
      %v246 = vld [vmem:[%s226 + $0x40] sm:$0xff]
      %v247 = vld [vmem:[%s226 + $0x48] sm:$0xff]
      %v248 = vld [vmem:[%s226 + $0x50] sm:$0xff]
      %v249 = vld [vmem:[%s226 + $0x58] sm:$0xff]
      %v250 = vld [vmem:[%s226 + $0x60] sm:$0xff]
      %v251 = vld [vmem:[%s226 + $0x68] sm:$0xff]
      %v252 = vld [vmem:[%s226 + $0x70] sm:$0xff]
      %v253 = vld [vmem:[%s226 + $0x78] sm:$0xff]
      %v254 = vld [vmem:[%s226 + $0x80] sm:$0xff]
      %v255 = vld [vmem:[%s226 + $0x88] sm:$0xff]
      %v256 = vld [vmem:[%s226 + $0x90] sm:$0xff]
      %v257 = vld [vmem:[%s226 + $0x98] sm:$0xff]
      %v258 = vld [vmem:[%s226 + $0xa0] sm:$0xff]
      %v259 = vld [vmem:[%s226 + $0xa8] sm:$0xff]
      %v260 = vld [vmem:[%s226 + $0xb0] sm:$0xff]
      %v261 = vld [vmem:[%s226 + $0xb8] sm:$0xff]
      %v262 = vld [vmem:[%s226 + $0xc0] sm:$0xff]
      %v263 = vld [vmem:[%s226 + $0xc8] sm:$0xff]
      %v264 = vld [vmem:[%s226 + $0xd0] sm:$0xff]
      %v265 = vld [vmem:[%s226 + $0xd8] sm:$0xff]
      %v266 = vld [vmem:[%s226 + $0xe0] sm:$0xff]
      %v267 = vld [vmem:[%s226 + $0xe8] sm:$0xff]
      %v268 = vld [vmem:[%s226 + $0xf0] sm:$0xff]
      %v269 = vld [vmem:[%s226 + $0xf8] sm:$0xff]
      %v271 = vperm.slane %v236, 0
      %v273 = vmul.f32 %v238, %v271
      %v274 = vmul.f32 %v239, %v271
      %v275 = vmul.f32 %v240, %v271
      %v276 = vmul.f32 %v241, %v271
      %v277 = vmul.f32 %v242, %v271
      %v278 = vmul.f32 %v243, %v271
      %v279 = vmul.f32 %v244, %v271
      %v280 = vmul.f32 %v245, %v271
      %v281 = vmul.f32 %v246, %v271
      %v282 = vmul.f32 %v247, %v271
      %v283 = vmul.f32 %v248, %v271
      %v284 = vmul.f32 %v249, %v271
      %v285 = vmul.f32 %v250, %v271
      %v286 = vmul.f32 %v251, %v271
      %v287 = vmul.f32 %v252, %v271
      %v288 = vmul.f32 %v253, %v271
      %v289 = vmul.f32 %v254, %v271
      %v290 = vmul.f32 %v255, %v271
      %v291 = vmul.f32 %v256, %v271
      %v292 = vmul.f32 %v257, %v271
      %v293 = vmul.f32 %v258, %v271
      %v294 = vmul.f32 %v259, %v271
      %v295 = vmul.f32 %v260, %v271
      %v296 = vmul.f32 %v261, %v271
      %v297 = vmul.f32 %v262, %v271
      %v298 = vmul.f32 %v263, %v271
      %v299 = vmul.f32 %v264, %v271
      %v300 = vmul.f32 %v265, %v271
      %v301 = vmul.f32 %v266, %v271
      %v302 = vmul.f32 %v267, %v271
      %v303 = vmul.f32 %v268, %v271
      %v304 = vmul.f32 %v269, %v271
      %v306 = vperm.slane %v237, 0
      %v308 = vadd.f32 %v273, %v306
      %v309 = vadd.f32 %v274, %v306
      %v310 = vadd.f32 %v275, %v306
      %v311 = vadd.f32 %v276, %v306
      %v312 = vadd.f32 %v277, %v306
      %v313 = vadd.f32 %v278, %v306
      %v314 = vadd.f32 %v279, %v306
      %v315 = vadd.f32 %v280, %v306
      %v316 = vadd.f32 %v281, %v306
      %v317 = vadd.f32 %v282, %v306
      %v318 = vadd.f32 %v283, %v306
      %v319 = vadd.f32 %v284, %v306
      %v320 = vadd.f32 %v285, %v306
      %v321 = vadd.f32 %v286, %v306
      %v322 = vadd.f32 %v287, %v306
      %v323 = vadd.f32 %v288, %v306
      %v324 = vadd.f32 %v289, %v306
      %v325 = vadd.f32 %v290, %v306
      %v326 = vadd.f32 %v291, %v306
      %v327 = vadd.f32 %v292, %v306
      %v328 = vadd.f32 %v293, %v306
      %v329 = vadd.f32 %v294, %v306
      %v330 = vadd.f32 %v295, %v306
      %v331 = vadd.f32 %v296, %v306
      %v332 = vadd.f32 %v297, %v306
      %v333 = vadd.f32 %v298, %v306
      %v334 = vadd.f32 %v299, %v306
      %v335 = vadd.f32 %v300, %v306
      %v336 = vadd.f32 %v301, %v306
      %v337 = vadd.f32 %v302, %v306
      %v338 = vadd.f32 %v303, %v306
      %v339 = vadd.f32 %v304, %v306
      %v340 = vmax.f32 %v308, 0.0
      %v341 = vmax.f32 %v309, 0.0
      %v342 = vmax.f32 %v310, 0.0
      %v343 = vmax.f32 %v311, 0.0
      %v344 = vmax.f32 %v312, 0.0
      %v345 = vmax.f32 %v313, 0.0
      %v346 = vmax.f32 %v314, 0.0
      %v347 = vmax.f32 %v315, 0.0
      %v348 = vmax.f32 %v316, 0.0
      %v349 = vmax.f32 %v317, 0.0
      %v350 = vmax.f32 %v318, 0.0
      %v351 = vmax.f32 %v319, 0.0
      %v352 = vmax.f32 %v320, 0.0
      %v353 = vmax.f32 %v321, 0.0
      %v354 = vmax.f32 %v322, 0.0
      %v355 = vmax.f32 %v323, 0.0
      %v356 = vmax.f32 %v324, 0.0
      %v357 = vmax.f32 %v325, 0.0
      %v358 = vmax.f32 %v326, 0.0
      %v359 = vmax.f32 %v327, 0.0
      %v360 = vmax.f32 %v328, 0.0
      %v361 = vmax.f32 %v329, 0.0
      %v362 = vmax.f32 %v330, 0.0
      %v363 = vmax.f32 %v331, 0.0
      %v364 = vmax.f32 %v332, 0.0
      %v365 = vmax.f32 %v333, 0.0
      %v366 = vmax.f32 %v334, 0.0
      %v367 = vmax.f32 %v335, 0.0
      %v368 = vmax.f32 %v336, 0.0
      %v369 = vmax.f32 %v337, 0.0
      %v370 = vmax.f32 %v338, 0.0
      %v371 = vmax.f32 %v339, 0.0
      %372 = vst [vmem:[#allocation2] sm:$0xff] 0.0
      %373 = vst [vmem:[#allocation2 + $0x8] sm:$0xff] 0.0
      %374 = vst [vmem:[#allocation2 + $0x10] sm:$0x7] 0.0
      %375 = vst [vmem:[#allocation2 + $0x13] sm:$0xff] %v340
      %376 = vst [vmem:[#allocation2 + $0x1b] sm:$0xff] %v341
      %377 = vst [vmem:[#allocation2 + $0x23] sm:$0x3] 0.0
      %378 = vst [vmem:[#allocation2 + $0x25] sm:$0xff] %v342
      %379 = vst [vmem:[#allocation2 + $0x2d] sm:$0xff] %v343
      %380 = vst [vmem:[#allocation2 + $0x35] sm:$0x3] 0.0
      %381 = vst [vmem:[#allocation2 + $0x37] sm:$0xff] %v344
      %382 = vst [vmem:[#allocation2 + $0x3f] sm:$0xff] %v345
      %383 = vst [vmem:[#allocation2 + $0x47] sm:$0x3] 0.0
      %384 = vst [vmem:[#allocation2 + $0x49] sm:$0xff] %v346
      %385 = vst [vmem:[#allocation2 + $0x51] sm:$0xff] %v347
      %386 = vst [vmem:[#allocation2 + $0x59] sm:$0x3] 0.0
      %387 = vst [vmem:[#allocation2 + $0x5b] sm:$0xff] %v348
      %388 = vst [vmem:[#allocation2 + $0x63] sm:$0xff] %v349
      %389 = vst [vmem:[#allocation2 + $0x6b] sm:$0x3] 0.0
      %390 = vst [vmem:[#allocation2 + $0x6d] sm:$0xff] %v350
      %391 = vst [vmem:[#allocation2 + $0x75] sm:$0xff] %v351
      %392 = vst [vmem:[#allocation2 + $0x7d] sm:$0x3] 0.0
      %393 = vst [vmem:[#allocation2 + $0x7f] sm:$0xff] %v352
      %394 = vst [vmem:[#allocation2 + $0x87] sm:$0xff] %v353
      %395 = vst [vmem:[#allocation2 + $0x8f] sm:$0x3] 0.0
      %396 = vst [vmem:[#allocation2 + $0x91] sm:$0xff] %v354
      %397 = vst [vmem:[#allocation2 + $0x99] sm:$0xff] %v355
      %398 = vst [vmem:[#allocation2 + $0xa1] sm:$0x3] 0.0
      %399 = vst [vmem:[#allocation2 + $0xa3] sm:$0xff] %v356
      %400 = vst [vmem:[#allocation2 + $0xab] sm:$0xff] %v357
      %401 = vst [vmem:[#allocation2 + $0xb3] sm:$0x3] 0.0
      %402 = vst [vmem:[#allocation2 + $0xb5] sm:$0xff] %v358
      %403 = vst [vmem:[#allocation2 + $0xbd] sm:$0xff] %v359
      %404 = vst [vmem:[#allocation2 + $0xc5] sm:$0x3] 0.0
      %405 = vst [vmem:[#allocation2 + $0xc7] sm:$0xff] %v360
      %406 = vst [vmem:[#allocation2 + $0xcf] sm:$0xff] %v361
      %407 = vst [vmem:[#allocation2 + $0xd7] sm:$0x3] 0.0
      %408 = vst [vmem:[#allocation2 + $0xd9] sm:$0xff] %v362
      %409 = vst [vmem:[#allocation2 + $0xe1] sm:$0xff] %v363
      %410 = vst [vmem:[#allocation2 + $0xe9] sm:$0x3] 0.0
      %411 = vst [vmem:[#allocation2 + $0xeb] sm:$0xff] %v364
      %412 = vst [vmem:[#allocation2 + $0xf3] sm:$0xff] %v365
      %413 = vst [vmem:[#allocation2 + $0xfb] sm:$0x3] 0.0
      %414 = vst [vmem:[#allocation2 + $0xfd] sm:$0xff] %v366
      %415 = vst [vmem:[#allocation2 + $0x105] sm:$0xff] %v367
      %416 = vst [vmem:[#allocation2 + $0x10d] sm:$0x3] 0.0
      %417 = vst [vmem:[#allocation2 + $0x10f] sm:$0xff] %v368
      %418 = vst [vmem:[#allocation2 + $0x117] sm:$0xff] %v369
      %419 = vst [vmem:[#allocation2 + $0x11f] sm:$0x3] 0.0
      %420 = vst [vmem:[#allocation2 + $0x121] sm:$0xff] %v370
      %421 = vst [vmem:[#allocation2 + $0x129] sm:$0xff] %v371
      %422 = vst [vmem:[#allocation2 + $0x131] sm:$0x3] 0.0
      %423 = vst [vmem:[#allocation2 + $0x133] sm:$0xff] 0.0
      %424 = vst [vmem:[#allocation2 + $0x13b] sm:$0xff] 0.0
      %425 = vst [vmem:[#allocation2 + $0x143] sm:$0x1f] 0.0
      %v426 = vld [vmem:[#allocation2] sm:$0xff]
      %v427 = vld [vmem:[#allocation2 + $0x8] sm:$0xff]
      %v428 = vld [vmem:[#allocation2 + $0x10] sm:$0xff]
      %v429 = vld [vmem:[#allocation2 + $0x18] sm:$0xff]
      %v430 = vld [vmem:[#allocation2 + $0x20] sm:$0xff]
      %v431 = vld [vmem:[#allocation2 + $0x28] sm:$0xff]
      %v432 = vld [vmem:[#allocation2 + $0x30] sm:$0xff]
      %v433 = vld [vmem:[#allocation2 + $0x38] sm:$0xff]
      %v434 = vld [vmem:[#allocation2 + $0x40] sm:$0xff]
      %v435 = vld [vmem:[#allocation2 + $0x48] sm:$0xff]
      %v436 = vld [vmem:[#allocation2 + $0x50] sm:$0xff]
      %v437 = vld [vmem:[#allocation2 + $0x58] sm:$0xff]
      %v438 = vld [vmem:[#allocation2 + $0x60] sm:$0xff]
      %v439 = vld [vmem:[#allocation2 + $0x68] sm:$0xff]
      %v440 = vld [vmem:[#allocation2 + $0x70] sm:$0xff]
      %v441 = vld [vmem:[#allocation2 + $0x78] sm:$0xff]
      %v442 = vld [vmem:[#allocation2 + $0x80] sm:$0xff]
      %v443 = vld [vmem:[#allocation2 + $0x88] sm:$0xff]
      %v444 = vld [vmem:[#allocation2 + $0x90] sm:$0xff]
      %v445 = vld [vmem:[#allocation2 + $0x98] sm:$0xff]
      %v446 = vld [vmem:[#allocation2 + $0xa0] sm:$0xff]
      %v447 = vld [vmem:[#allocation2 + $0xa8] sm:$0xff]
      %v448 = vld [vmem:[#allocation2 + $0xb0] sm:$0xff]
      %v449 = vld [vmem:[#allocation2 + $0xb8] sm:$0xff]
      %v450 = vld [vmem:[#allocation2 + $0xc0] sm:$0xff]
      %v451 = vld [vmem:[#allocation2 + $0xc8] sm:$0xff]
      %v452 = vld [vmem:[#allocation2 + $0xd0] sm:$0xff]
      %v453 = vld [vmem:[#allocation2 + $0xd8] sm:$0xff]
      %v454 = vld [vmem:[#allocation2 + $0xe0] sm:$0xff]
      %v455 = vld [vmem:[#allocation2 + $0xe8] sm:$0xff]
      %v456 = vld [vmem:[#allocation2 + $0xf0] sm:$0xff]
      %v457 = vld [vmem:[#allocation2 + $0xf8] sm:$0xff]
      %v458 = vld [vmem:[#allocation2 + $0x100] sm:$0xff]
      %v459 = vld [vmem:[#allocation2 + $0x108] sm:$0xff]
      %v460 = vld [vmem:[#allocation2 + $0x110] sm:$0xff]
      %v461 = vld [vmem:[#allocation2 + $0x118] sm:$0xff]
      %v462 = vld [vmem:[%s3] sm:$0xff]
      %v463 = vld [vmem:[%s3 + $0x8] sm:$0xff]
      %v464 = vld [vmem:[%s3 + $0x10] sm:$0xff]
      %v465 = vld [vmem:[%s3 + $0x18] sm:$0xff]
      %v466 = vld [vmem:[%s3 + $0x20] sm:$0xff]
      %v467 = vld [vmem:[%s3 + $0x28] sm:$0xff]
      %v468 = vld [vmem:[%s3 + $0x30] sm:$0xff]
      %v469 = vld [vmem:[%s3 + $0x38] sm:$0xff]
      %v470 = vld [vmem:[%s3 + $0x40] sm:$0xff]
      %v471 = vld [vmem:[%s3 + $0x48] sm:$0xff]
      %v472 = vld [vmem:[%s3 + $0x50] sm:$0xff]
      %v473 = vld [vmem:[%s3 + $0x58] sm:$0xff]
      %v474 = vld [vmem:[%s3 + $0x60] sm:$0xff]
      %v475 = vld [vmem:[%s3 + $0x68] sm:$0xff]
      %v476 = vld [vmem:[%s3 + $0x70] sm:$0xff]
      %v477 = vld [vmem:[%s3 + $0x78] sm:$0xff]
      %v478 = vld [vmem:[#allocation2 + $0x1] sm:$0xff]
      %v479 = vld [vmem:[#allocation2 + $0x9] sm:$0xff]
      %v480 = vld [vmem:[#allocation2 + $0x11] sm:$0xff]
      %v481 = vld [vmem:[#allocation2 + $0x19] sm:$0xff]
      %v482 = vld [vmem:[#allocation2 + $0x21] sm:$0xff]
      %v483 = vld [vmem:[#allocation2 + $0x29] sm:$0xff]
      %v484 = vld [vmem:[#allocation2 + $0x31] sm:$0xff]
      %v485 = vld [vmem:[#allocation2 + $0x39] sm:$0xff]
      %v486 = vld [vmem:[#allocation2 + $0x41] sm:$0xff]
      %v487 = vld [vmem:[#allocation2 + $0x49] sm:$0xff]
      %v488 = vld [vmem:[#allocation2 + $0x51] sm:$0xff]
      %v489 = vld [vmem:[#allocation2 + $0x59] sm:$0xff]
      %v490 = vld [vmem:[#allocation2 + $0x61] sm:$0xff]
      %v491 = vld [vmem:[#allocation2 + $0x69] sm:$0xff]
      %v492 = vld [vmem:[#allocation2 + $0x71] sm:$0xff]
      %v493 = vld [vmem:[#allocation2 + $0x79] sm:$0xff]
      %v494 = vld [vmem:[#allocation2 + $0x81] sm:$0xff]
      %v495 = vld [vmem:[#allocation2 + $0x89] sm:$0xff]
      %v496 = vld [vmem:[#allocation2 + $0x91] sm:$0xff]
      %v497 = vld [vmem:[#allocation2 + $0x99] sm:$0xff]
      %v498 = vld [vmem:[#allocation2 + $0xa1] sm:$0xff]
      %v499 = vld [vmem:[#allocation2 + $0xa9] sm:$0xff]
      %v500 = vld [vmem:[#allocation2 + $0xb1] sm:$0xff]
      %v501 = vld [vmem:[#allocation2 + $0xb9] sm:$0xff]
      %v502 = vld [vmem:[#allocation2 + $0xc1] sm:$0xff]
      %v503 = vld [vmem:[#allocation2 + $0xc9] sm:$0xff]
      %v504 = vld [vmem:[#allocation2 + $0xd1] sm:$0xff]
      %v505 = vld [vmem:[#allocation2 + $0xd9] sm:$0xff]
      %v506 = vld [vmem:[#allocation2 + $0xe1] sm:$0xff]
      %v507 = vld [vmem:[#allocation2 + $0xe9] sm:$0xff]
      %v508 = vld [vmem:[#allocation2 + $0xf1] sm:$0xff]
      %v509 = vld [vmem:[#allocation2 + $0xf9] sm:$0xff]
      %v510 = vld [vmem:[#allocation2 + $0x101] sm:$0xff]
      %v511 = vld [vmem:[#allocation2 + $0x109] sm:$0xff]
      %v512 = vld [vmem:[#allocation2 + $0x111] sm:$0xff]
      %v513 = vld [vmem:[#allocation2 + $0x119] sm:$0xff]
      %s514 = scalar_lea.vmem %s3, 128
      %v515 = vld [vmem:[%s514] sm:$0xff]
      %v516 = vld [vmem:[%s514 + $0x8] sm:$0xff]
      %v517 = vld [vmem:[%s514 + $0x10] sm:$0xff]
      %v518 = vld [vmem:[%s514 + $0x18] sm:$0xff]
      %v519 = vld [vmem:[%s514 + $0x20] sm:$0xff]
      %v520 = vld [vmem:[%s514 + $0x28] sm:$0xff]
      %v521 = vld [vmem:[%s514 + $0x30] sm:$0xff]
      %v522 = vld [vmem:[%s514 + $0x38] sm:$0xff]
      %v523 = vld [vmem:[%s514 + $0x40] sm:$0xff]
      %v524 = vld [vmem:[%s514 + $0x48] sm:$0xff]
      %v525 = vld [vmem:[%s514 + $0x50] sm:$0xff]
      %v526 = vld [vmem:[%s514 + $0x58] sm:$0xff]
      %v527 = vld [vmem:[%s514 + $0x60] sm:$0xff]
      %v528 = vld [vmem:[%s514 + $0x68] sm:$0xff]
      %v529 = vld [vmem:[%s514 + $0x70] sm:$0xff]
      %v530 = vld [vmem:[%s514 + $0x78] sm:$0xff]
      %531 = vmatpush.msra.mxu0 %v530
      %532 = vmatpush.msra.mxu0 %v529
      %533 = vmatpush.msra.mxu0 %v528
      %534 = vmatpush.msra.mxu0 %v527
      %535 = vmatpush.msra.mxu0 %v526
      %536 = vmatpush.msra.mxu0 %v525
      %537 = vmatpush.msra.mxu0 %v524
      %538 = vmatpush.msra.mxu0 %v523
      %539 = vmatpush.msra.mxu0 %v522
      %540 = vmatpush.msra.mxu0 %v521
      %541 = vmatpush.msra.mxu0 %v520
      %542 = vmatpush.msra.mxu0 %v519
      %543 = vmatpush.msra.mxu0 %v518
      %544 = vmatpush.msra.mxu0 %v517
      %545 = vmatpush.msra.mxu0 %v516
      %546 = vmatpush.msra.mxu0 %v515
      %547 = vmatmul.f32.gmra.mxu0 %v478
      %v548 = vpop.f32.mrf.mxu0
      %v549 = vadd.f32 0.0, %v548
      %550 = vmatmul.f32.gmra.mxu0 %v479
      %v551 = vpop.f32.mrf.mxu0
      %v552 = vadd.f32 0.0, %v551
      %553 = vmatmul.f32.gmra.mxu0 %v480
      %v554 = vpop.f32.mrf.mxu0
      %v555 = vadd.f32 0.0, %v554
      %556 = vmatmul.f32.gmra.mxu0 %v481
      %v557 = vpop.f32.mrf.mxu0
      %v558 = vadd.f32 0.0, %v557
      %559 = vmatmul.f32.gmra.mxu0 %v482
      %v560 = vpop.f32.mrf.mxu0
      %v561 = vadd.f32 0.0, %v560
      %562 = vmatmul.f32.gmra.mxu0 %v483
      %v563 = vpop.f32.mrf.mxu0
      %v564 = vadd.f32 0.0, %v563
      %565 = vmatmul.f32.gmra.mxu0 %v484
      %v566 = vpop.f32.mrf.mxu0
      %v567 = vadd.f32 0.0, %v566
      %568 = vmatmul.f32.gmra.mxu0 %v485
      %v569 = vpop.f32.mrf.mxu0
      %v570 = vadd.f32 0.0, %v569
      %571 = vmatmul.f32.gmra.mxu0 %v486
      %v572 = vpop.f32.mrf.mxu0
      %v573 = vadd.f32 0.0, %v572
      %574 = vmatmul.f32.gmra.mxu0 %v487
      %v575 = vpop.f32.mrf.mxu0
      %v576 = vadd.f32 0.0, %v575
      %577 = vmatmul.f32.gmra.mxu0 %v488
      %v578 = vpop.f32.mrf.mxu0
      %v579 = vadd.f32 0.0, %v578
      %580 = vmatmul.f32.gmra.mxu0 %v489
      %v581 = vpop.f32.mrf.mxu0
      %v582 = vadd.f32 0.0, %v581
      %583 = vmatmul.f32.gmra.mxu0 %v490
      %v584 = vpop.f32.mrf.mxu0
      %v585 = vadd.f32 0.0, %v584
      %586 = vmatmul.f32.gmra.mxu0 %v491
      %v587 = vpop.f32.mrf.mxu0
      %v588 = vadd.f32 0.0, %v587
      %589 = vmatmul.f32.gmra.mxu0 %v492
      %v590 = vpop.f32.mrf.mxu0
      %v591 = vadd.f32 0.0, %v590
      %592 = vmatmul.f32.gmra.mxu0 %v493
      %v593 = vpop.f32.mrf.mxu0
      %v594 = vadd.f32 0.0, %v593
      %595 = vmatmul.f32.gmra.mxu0 %v494
      %v596 = vpop.f32.mrf.mxu0
      %v597 = vadd.f32 0.0, %v596
      %598 = vmatmul.f32.gmra.mxu0 %v495
      %v599 = vpop.f32.mrf.mxu0
      %v600 = vadd.f32 0.0, %v599
      %601 = vmatmul.f32.gmra.mxu0 %v496
      %v602 = vpop.f32.mrf.mxu0
      %v603 = vadd.f32 0.0, %v602
      %604 = vmatmul.f32.gmra.mxu0 %v497
      %v605 = vpop.f32.mrf.mxu0
      %v606 = vadd.f32 0.0, %v605
      %607 = vmatmul.f32.gmra.mxu0 %v498
      %v608 = vpop.f32.mrf.mxu0
      %v609 = vadd.f32 0.0, %v608
      %610 = vmatmul.f32.gmra.mxu0 %v499
      %v611 = vpop.f32.mrf.mxu0
      %v612 = vadd.f32 0.0, %v611
      %613 = vmatmul.f32.gmra.mxu0 %v500
      %v614 = vpop.f32.mrf.mxu0
      %v615 = vadd.f32 0.0, %v614
      %616 = vmatmul.f32.gmra.mxu0 %v501
      %v617 = vpop.f32.mrf.mxu0
      %v618 = vadd.f32 0.0, %v617
      %619 = vmatmul.f32.gmra.mxu0 %v502
      %v620 = vpop.f32.mrf.mxu0
      %v621 = vadd.f32 0.0, %v620
      %622 = vmatmul.f32.gmra.mxu0 %v503
      %v623 = vpop.f32.mrf.mxu0
      %v624 = vadd.f32 0.0, %v623
      %625 = vmatmul.f32.gmra.mxu0 %v504
      %v626 = vpop.f32.mrf.mxu0
      %v627 = vadd.f32 0.0, %v626
      %628 = vmatmul.f32.gmra.mxu0 %v505
      %v629 = vpop.f32.mrf.mxu0
      %v630 = vadd.f32 0.0, %v629
      %631 = vmatmul.f32.gmra.mxu0 %v506
      %v632 = vpop.f32.mrf.mxu0
      %v633 = vadd.f32 0.0, %v632
      %634 = vmatmul.f32.gmra.mxu0 %v507
      %v635 = vpop.f32.mrf.mxu0
      %v636 = vadd.f32 0.0, %v635
      %637 = vmatmul.f32.gmra.mxu0 %v508
      %v638 = vpop.f32.mrf.mxu0
      %v639 = vadd.f32 0.0, %v638
      %640 = vmatmul.f32.gmra.mxu0 %v509
      %v641 = vpop.f32.mrf.mxu0
      %v642 = vadd.f32 0.0, %v641
      %643 = vmatmul.f32.gmra.mxu0 %v510
      %v644 = vpop.f32.mrf.mxu0
      %v645 = vadd.f32 0.0, %v644
      %646 = vmatmul.f32.gmra.mxu0 %v511
      %v647 = vpop.f32.mrf.mxu0
      %v648 = vadd.f32 0.0, %v647
      %649 = vmatmul.f32.gmra.mxu0 %v512
      %v650 = vpop.f32.mrf.mxu0
      %v651 = vadd.f32 0.0, %v650
      %652 = vmatmul.f32.gmra.mxu0 %v513
      %v653 = vpop.f32.mrf.mxu0
      %v654 = vadd.f32 0.0, %v653
      %655 = vdwg.mxu0
      %656 = vmatpush.msra.mxu0 %v477
      %657 = vmatpush.msra.mxu0 %v476
      %658 = vmatpush.msra.mxu0 %v475
      %659 = vmatpush.msra.mxu0 %v474
      %660 = vmatpush.msra.mxu0 %v473
      %661 = vmatpush.msra.mxu0 %v472
      %662 = vmatpush.msra.mxu0 %v471
      %663 = vmatpush.msra.mxu0 %v470
      %664 = vmatpush.msra.mxu0 %v469
      %665 = vmatpush.msra.mxu0 %v468
      %666 = vmatpush.msra.mxu0 %v467
      %667 = vmatpush.msra.mxu0 %v466
      %668 = vmatpush.msra.mxu0 %v465
      %669 = vmatpush.msra.mxu0 %v464
      %670 = vmatpush.msra.mxu0 %v463
      %671 = vmatpush.msra.mxu0 %v462
      %672 = vmatmul.f32.gmra.mxu0 %v426
      %v673 = vpop.f32.mrf.mxu0
      %v674 = vadd.f32 %v549, %v673
      %675 = vmatmul.f32.gmra.mxu0 %v427
      %v676 = vpop.f32.mrf.mxu0
      %v677 = vadd.f32 %v552, %v676
      %678 = vmatmul.f32.gmra.mxu0 %v428
      %v679 = vpop.f32.mrf.mxu0
      %v680 = vadd.f32 %v555, %v679
      %681 = vmatmul.f32.gmra.mxu0 %v429
      %v682 = vpop.f32.mrf.mxu0
      %v683 = vadd.f32 %v558, %v682
      %684 = vmatmul.f32.gmra.mxu0 %v430
      %v685 = vpop.f32.mrf.mxu0
      %v686 = vadd.f32 %v561, %v685
      %687 = vmatmul.f32.gmra.mxu0 %v431
      %v688 = vpop.f32.mrf.mxu0
      %v689 = vadd.f32 %v564, %v688
      %690 = vmatmul.f32.gmra.mxu0 %v432
      %v691 = vpop.f32.mrf.mxu0
      %v692 = vadd.f32 %v567, %v691
      %693 = vmatmul.f32.gmra.mxu0 %v433
      %v694 = vpop.f32.mrf.mxu0
      %v695 = vadd.f32 %v570, %v694
      %696 = vmatmul.f32.gmra.mxu0 %v434
      %v697 = vpop.f32.mrf.mxu0
      %v698 = vadd.f32 %v573, %v697
      %699 = vmatmul.f32.gmra.mxu0 %v435
      %v700 = vpop.f32.mrf.mxu0
      %v701 = vadd.f32 %v576, %v700
      %702 = vmatmul.f32.gmra.mxu0 %v436
      %v703 = vpop.f32.mrf.mxu0
      %v704 = vadd.f32 %v579, %v703
      %705 = vmatmul.f32.gmra.mxu0 %v437
      %v706 = vpop.f32.mrf.mxu0
      %v707 = vadd.f32 %v582, %v706
      %708 = vmatmul.f32.gmra.mxu0 %v438
      %v709 = vpop.f32.mrf.mxu0
      %v710 = vadd.f32 %v585, %v709
      %711 = vmatmul.f32.gmra.mxu0 %v439
      %v712 = vpop.f32.mrf.mxu0
      %v713 = vadd.f32 %v588, %v712
      %714 = vmatmul.f32.gmra.mxu0 %v440
      %v715 = vpop.f32.mrf.mxu0
      %v716 = vadd.f32 %v591, %v715
      %717 = vmatmul.f32.gmra.mxu0 %v441
      %v718 = vpop.f32.mrf.mxu0
      %v719 = vadd.f32 %v594, %v718
      %720 = vmatmul.f32.gmra.mxu0 %v442
      %v721 = vpop.f32.mrf.mxu0
      %v722 = vadd.f32 %v597, %v721
      %723 = vmatmul.f32.gmra.mxu0 %v443
      %v724 = vpop.f32.mrf.mxu0
      %v725 = vadd.f32 %v600, %v724
      %726 = vmatmul.f32.gmra.mxu0 %v444
      %v727 = vpop.f32.mrf.mxu0
      %v728 = vadd.f32 %v603, %v727
      %729 = vmatmul.f32.gmra.mxu0 %v445
      %v730 = vpop.f32.mrf.mxu0
      %v731 = vadd.f32 %v606, %v730
      %732 = vmatmul.f32.gmra.mxu0 %v446
      %v733 = vpop.f32.mrf.mxu0
      %v734 = vadd.f32 %v609, %v733
      %735 = vmatmul.f32.gmra.mxu0 %v447
      %v736 = vpop.f32.mrf.mxu0
      %v737 = vadd.f32 %v612, %v736
      %738 = vmatmul.f32.gmra.mxu0 %v448
      %v739 = vpop.f32.mrf.mxu0
      %v740 = vadd.f32 %v615, %v739
      %741 = vmatmul.f32.gmra.mxu0 %v449
      %v742 = vpop.f32.mrf.mxu0
      %v743 = vadd.f32 %v618, %v742
      %744 = vmatmul.f32.gmra.mxu0 %v450
      %v745 = vpop.f32.mrf.mxu0
      %v746 = vadd.f32 %v621, %v745
      %747 = vmatmul.f32.gmra.mxu0 %v451
      %v748 = vpop.f32.mrf.mxu0
      %v749 = vadd.f32 %v624, %v748
      %750 = vmatmul.f32.gmra.mxu0 %v452
      %v751 = vpop.f32.mrf.mxu0
      %v752 = vadd.f32 %v627, %v751
      %753 = vmatmul.f32.gmra.mxu0 %v453
      %v754 = vpop.f32.mrf.mxu0
      %v755 = vadd.f32 %v630, %v754
      %756 = vmatmul.f32.gmra.mxu0 %v454
      %v757 = vpop.f32.mrf.mxu0
      %v758 = vadd.f32 %v633, %v757
      %759 = vmatmul.f32.gmra.mxu0 %v455
      %v760 = vpop.f32.mrf.mxu0
      %v761 = vadd.f32 %v636, %v760
      %762 = vmatmul.f32.gmra.mxu0 %v456
      %v763 = vpop.f32.mrf.mxu0
      %v764 = vadd.f32 %v639, %v763
      %765 = vmatmul.f32.gmra.mxu0 %v457
      %v766 = vpop.f32.mrf.mxu0
      %v767 = vadd.f32 %v642, %v766
      %768 = vmatmul.f32.gmra.mxu0 %v458
      %v769 = vpop.f32.mrf.mxu0
      %v770 = vadd.f32 %v645, %v769
      %771 = vmatmul.f32.gmra.mxu0 %v459
      %v772 = vpop.f32.mrf.mxu0
      %v773 = vadd.f32 %v648, %v772
      %774 = vmatmul.f32.gmra.mxu0 %v460
      %v775 = vpop.f32.mrf.mxu0
      %v776 = vadd.f32 %v651, %v775
      %777 = vmatmul.f32.gmra.mxu0 %v461
      %v778 = vpop.f32.mrf.mxu0
      %v779 = vadd.f32 %v654, %v778
      %780 = vdwg.mxu0
      %v781 = vld [vmem:[#allocation2 + $0x2] sm:$0xff]
      %v782 = vld [vmem:[#allocation2 + $0xa] sm:$0xff]
      %v783 = vld [vmem:[#allocation2 + $0x12] sm:$0xff]
      %v784 = vld [vmem:[#allocation2 + $0x1a] sm:$0xff]
      %v785 = vld [vmem:[#allocation2 + $0x22] sm:$0xff]
      %v786 = vld [vmem:[#allocation2 + $0x2a] sm:$0xff]
      %v787 = vld [vmem:[#allocation2 + $0x32] sm:$0xff]
      %v788 = vld [vmem:[#allocation2 + $0x3a] sm:$0xff]
      %v789 = vld [vmem:[#allocation2 + $0x42] sm:$0xff]
      %v790 = vld [vmem:[#allocation2 + $0x4a] sm:$0xff]
      %v791 = vld [vmem:[#allocation2 + $0x52] sm:$0xff]
      %v792 = vld [vmem:[#allocation2 + $0x5a] sm:$0xff]
      %v793 = vld [vmem:[#allocation2 + $0x62] sm:$0xff]
      %v794 = vld [vmem:[#allocation2 + $0x6a] sm:$0xff]
      %v795 = vld [vmem:[#allocation2 + $0x72] sm:$0xff]
      %v796 = vld [vmem:[#allocation2 + $0x7a] sm:$0xff]
      %v797 = vld [vmem:[#allocation2 + $0x82] sm:$0xff]
      %v798 = vld [vmem:[#allocation2 + $0x8a] sm:$0xff]
      %v799 = vld [vmem:[#allocation2 + $0x92] sm:$0xff]
      %v800 = vld [vmem:[#allocation2 + $0x9a] sm:$0xff]
      %v801 = vld [vmem:[#allocation2 + $0xa2] sm:$0xff]
      %v802 = vld [vmem:[#allocation2 + $0xaa] sm:$0xff]
      %v803 = vld [vmem:[#allocation2 + $0xb2] sm:$0xff]
      %v804 = vld [vmem:[#allocation2 + $0xba] sm:$0xff]
      %v805 = vld [vmem:[#allocation2 + $0xc2] sm:$0xff]
      %v806 = vld [vmem:[#allocation2 + $0xca] sm:$0xff]
      %v807 = vld [vmem:[#allocation2 + $0xd2] sm:$0xff]
      %v808 = vld [vmem:[#allocation2 + $0xda] sm:$0xff]
      %v809 = vld [vmem:[#allocation2 + $0xe2] sm:$0xff]
      %v810 = vld [vmem:[#allocation2 + $0xea] sm:$0xff]
      %v811 = vld [vmem:[#allocation2 + $0xf2] sm:$0xff]
      %v812 = vld [vmem:[#allocation2 + $0xfa] sm:$0xff]
      %v813 = vld [vmem:[#allocation2 + $0x102] sm:$0xff]
      %v814 = vld [vmem:[#allocation2 + $0x10a] sm:$0xff]
      %v815 = vld [vmem:[#allocation2 + $0x112] sm:$0xff]
      %v816 = vld [vmem:[#allocation2 + $0x11a] sm:$0xff]
      %s817 = scalar_lea.vmem %s3, 256
      %v818 = vld [vmem:[%s817] sm:$0xff]
      %v819 = vld [vmem:[%s817 + $0x8] sm:$0xff]
      %v820 = vld [vmem:[%s817 + $0x10] sm:$0xff]
      %v821 = vld [vmem:[%s817 + $0x18] sm:$0xff]
      %v822 = vld [vmem:[%s817 + $0x20] sm:$0xff]
      %v823 = vld [vmem:[%s817 + $0x28] sm:$0xff]
      %v824 = vld [vmem:[%s817 + $0x30] sm:$0xff]
      %v825 = vld [vmem:[%s817 + $0x38] sm:$0xff]
      %v826 = vld [vmem:[%s817 + $0x40] sm:$0xff]
      %v827 = vld [vmem:[%s817 + $0x48] sm:$0xff]
      %v828 = vld [vmem:[%s817 + $0x50] sm:$0xff]
      %v829 = vld [vmem:[%s817 + $0x58] sm:$0xff]
      %v830 = vld [vmem:[%s817 + $0x60] sm:$0xff]
      %v831 = vld [vmem:[%s817 + $0x68] sm:$0xff]
      %v832 = vld [vmem:[%s817 + $0x70] sm:$0xff]
      %v833 = vld [vmem:[%s817 + $0x78] sm:$0xff]
      %834 = vmatpush.msra.mxu0 %v833
      %835 = vmatpush.msra.mxu0 %v832
      %836 = vmatpush.msra.mxu0 %v831
      %837 = vmatpush.msra.mxu0 %v830
      %838 = vmatpush.msra.mxu0 %v829
      %839 = vmatpush.msra.mxu0 %v828
      %840 = vmatpush.msra.mxu0 %v827
      %841 = vmatpush.msra.mxu0 %v826
      %842 = vmatpush.msra.mxu0 %v825
      %843 = vmatpush.msra.mxu0 %v824
      %844 = vmatpush.msra.mxu0 %v823
      %845 = vmatpush.msra.mxu0 %v822
      %846 = vmatpush.msra.mxu0 %v821
      %847 = vmatpush.msra.mxu0 %v820
      %848 = vmatpush.msra.mxu0 %v819
      %849 = vmatpush.msra.mxu0 %v818
      %850 = vmatmul.f32.gmra.mxu0 %v781
      %v851 = vpop.f32.mrf.mxu0
      %v852 = vadd.f32 0.0, %v851
      %853 = vmatmul.f32.gmra.mxu0 %v782
      %v854 = vpop.f32.mrf.mxu0
      %v855 = vadd.f32 0.0, %v854
      %856 = vmatmul.f32.gmra.mxu0 %v783
      %v857 = vpop.f32.mrf.mxu0
      %v858 = vadd.f32 0.0, %v857
      %859 = vmatmul.f32.gmra.mxu0 %v784
      %v860 = vpop.f32.mrf.mxu0
      %v861 = vadd.f32 0.0, %v860
      %862 = vmatmul.f32.gmra.mxu0 %v785
      %v863 = vpop.f32.mrf.mxu0
      %v864 = vadd.f32 0.0, %v863
      %865 = vmatmul.f32.gmra.mxu0 %v786
      %v866 = vpop.f32.mrf.mxu0
      %v867 = vadd.f32 0.0, %v866
      %868 = vmatmul.f32.gmra.mxu0 %v787
      %v869 = vpop.f32.mrf.mxu0
      %v870 = vadd.f32 0.0, %v869
      %871 = vmatmul.f32.gmra.mxu0 %v788
      %v872 = vpop.f32.mrf.mxu0
      %v873 = vadd.f32 0.0, %v872
      %874 = vmatmul.f32.gmra.mxu0 %v789
      %v875 = vpop.f32.mrf.mxu0
      %v876 = vadd.f32 0.0, %v875
      %877 = vmatmul.f32.gmra.mxu0 %v790
      %v878 = vpop.f32.mrf.mxu0
      %v879 = vadd.f32 0.0, %v878
      %880 = vmatmul.f32.gmra.mxu0 %v791
      %v881 = vpop.f32.mrf.mxu0
      %v882 = vadd.f32 0.0, %v881
      %883 = vmatmul.f32.gmra.mxu0 %v792
      %v884 = vpop.f32.mrf.mxu0
      %v885 = vadd.f32 0.0, %v884
      %886 = vmatmul.f32.gmra.mxu0 %v793
      %v887 = vpop.f32.mrf.mxu0
      %v888 = vadd.f32 0.0, %v887
      %889 = vmatmul.f32.gmra.mxu0 %v794
      %v890 = vpop.f32.mrf.mxu0
      %v891 = vadd.f32 0.0, %v890
      %892 = vmatmul.f32.gmra.mxu0 %v795
      %v893 = vpop.f32.mrf.mxu0
      %v894 = vadd.f32 0.0, %v893
      %895 = vmatmul.f32.gmra.mxu0 %v796
      %v896 = vpop.f32.mrf.mxu0
      %v897 = vadd.f32 0.0, %v896
      %898 = vmatmul.f32.gmra.mxu0 %v797
      %v899 = vpop.f32.mrf.mxu0
      %v900 = vadd.f32 0.0, %v899
      %901 = vmatmul.f32.gmra.mxu0 %v798
      %v902 = vpop.f32.mrf.mxu0
      %v903 = vadd.f32 0.0, %v902
      %904 = vmatmul.f32.gmra.mxu0 %v799
      %v905 = vpop.f32.mrf.mxu0
      %v906 = vadd.f32 0.0, %v905
      %907 = vmatmul.f32.gmra.mxu0 %v800
      %v908 = vpop.f32.mrf.mxu0
      %v909 = vadd.f32 0.0, %v908
      %910 = vmatmul.f32.gmra.mxu0 %v801
      %v911 = vpop.f32.mrf.mxu0
      %v912 = vadd.f32 0.0, %v911
      %913 = vmatmul.f32.gmra.mxu0 %v802
      %v914 = vpop.f32.mrf.mxu0
      %v915 = vadd.f32 0.0, %v914
      %916 = vmatmul.f32.gmra.mxu0 %v803
      %v917 = vpop.f32.mrf.mxu0
      %v918 = vadd.f32 0.0, %v917
      %919 = vmatmul.f32.gmra.mxu0 %v804
      %v920 = vpop.f32.mrf.mxu0
      %v921 = vadd.f32 0.0, %v920
      %922 = vmatmul.f32.gmra.mxu0 %v805
      %v923 = vpop.f32.mrf.mxu0
      %v924 = vadd.f32 0.0, %v923
      %925 = vmatmul.f32.gmra.mxu0 %v806
      %v926 = vpop.f32.mrf.mxu0
      %v927 = vadd.f32 0.0, %v926
      %928 = vmatmul.f32.gmra.mxu0 %v807
      %v929 = vpop.f32.mrf.mxu0
      %v930 = vadd.f32 0.0, %v929
      %931 = vmatmul.f32.gmra.mxu0 %v808
      %v932 = vpop.f32.mrf.mxu0
      %v933 = vadd.f32 0.0, %v932
      %934 = vmatmul.f32.gmra.mxu0 %v809
      %v935 = vpop.f32.mrf.mxu0
      %v936 = vadd.f32 0.0, %v935
      %937 = vmatmul.f32.gmra.mxu0 %v810
      %v938 = vpop.f32.mrf.mxu0
      %v939 = vadd.f32 0.0, %v938
      %940 = vmatmul.f32.gmra.mxu0 %v811
      %v941 = vpop.f32.mrf.mxu0
      %v942 = vadd.f32 0.0, %v941
      %943 = vmatmul.f32.gmra.mxu0 %v812
      %v944 = vpop.f32.mrf.mxu0
      %v945 = vadd.f32 0.0, %v944
      %946 = vmatmul.f32.gmra.mxu0 %v813
      %v947 = vpop.f32.mrf.mxu0
      %v948 = vadd.f32 0.0, %v947
      %949 = vmatmul.f32.gmra.mxu0 %v814
      %v950 = vpop.f32.mrf.mxu0
      %v951 = vadd.f32 0.0, %v950
      %952 = vmatmul.f32.gmra.mxu0 %v815
      %v953 = vpop.f32.mrf.mxu0
      %v954 = vadd.f32 0.0, %v953
      %955 = vmatmul.f32.gmra.mxu0 %v816
      %v956 = vpop.f32.mrf.mxu0
      %v957 = vadd.f32 0.0, %v956
      %958 = vdwg.mxu0
      %v959 = vadd.f32 %v674, %v852
      %v960 = vadd.f32 %v677, %v855
      %v961 = vadd.f32 %v680, %v858
      %v962 = vadd.f32 %v683, %v861
      %v963 = vadd.f32 %v686, %v864
      %v964 = vadd.f32 %v689, %v867
      %v965 = vadd.f32 %v692, %v870
      %v966 = vadd.f32 %v695, %v873
      %v967 = vadd.f32 %v698, %v876
      %v968 = vadd.f32 %v701, %v879
      %v969 = vadd.f32 %v704, %v882
      %v970 = vadd.f32 %v707, %v885
      %v971 = vadd.f32 %v710, %v888
      %v972 = vadd.f32 %v713, %v891
      %v973 = vadd.f32 %v716, %v894
      %v974 = vadd.f32 %v719, %v897
      %v975 = vadd.f32 %v722, %v900
      %v976 = vadd.f32 %v725, %v903
      %v977 = vadd.f32 %v728, %v906
      %v978 = vadd.f32 %v731, %v909
      %v979 = vadd.f32 %v734, %v912
      %v980 = vadd.f32 %v737, %v915
      %v981 = vadd.f32 %v740, %v918
      %v982 = vadd.f32 %v743, %v921
      %v983 = vadd.f32 %v746, %v924
      %v984 = vadd.f32 %v749, %v927
      %v985 = vadd.f32 %v752, %v930
      %v986 = vadd.f32 %v755, %v933
      %v987 = vadd.f32 %v758, %v936
      %v988 = vadd.f32 %v761, %v939
      %v989 = vadd.f32 %v764, %v942
      %v990 = vadd.f32 %v767, %v945
      %v991 = vadd.f32 %v770, %v948
      %v992 = vadd.f32 %v773, %v951
      %v993 = vadd.f32 %v776, %v954
      %v994 = vadd.f32 %v779, %v957
      %v995 = vld [vmem:[#allocation2 + $0x12] sm:$0xff]
      %v996 = vld [vmem:[#allocation2 + $0x1a] sm:$0xff]
      %v997 = vld [vmem:[#allocation2 + $0x22] sm:$0xff]
      %v998 = vld [vmem:[#allocation2 + $0x2a] sm:$0xff]
      %v999 = vld [vmem:[#allocation2 + $0x32] sm:$0xff]
      %v1000 = vld [vmem:[#allocation2 + $0x3a] sm:$0xff]
      %v1001 = vld [vmem:[#allocation2 + $0x42] sm:$0xff]
      %v1002 = vld [vmem:[#allocation2 + $0x4a] sm:$0xff]
      %v1003 = vld [vmem:[#allocation2 + $0x52] sm:$0xff]
      %v1004 = vld [vmem:[#allocation2 + $0x5a] sm:$0xff]
      %v1005 = vld [vmem:[#allocation2 + $0x62] sm:$0xff]
      %v1006 = vld [vmem:[#allocation2 + $0x6a] sm:$0xff]
      %v1007 = vld [vmem:[#allocation2 + $0x72] sm:$0xff]
      %v1008 = vld [vmem:[#allocation2 + $0x7a] sm:$0xff]
      %v1009 = vld [vmem:[#allocation2 + $0x82] sm:$0xff]
      %v1010 = vld [vmem:[#allocation2 + $0x8a] sm:$0xff]
      %v1011 = vld [vmem:[#allocation2 + $0x92] sm:$0xff]
      %v1012 = vld [vmem:[#allocation2 + $0x9a] sm:$0xff]
      %v1013 = vld [vmem:[#allocation2 + $0xa2] sm:$0xff]
      %v1014 = vld [vmem:[#allocation2 + $0xaa] sm:$0xff]
      %v1015 = vld [vmem:[#allocation2 + $0xb2] sm:$0xff]
      %v1016 = vld [vmem:[#allocation2 + $0xba] sm:$0xff]
      %v1017 = vld [vmem:[#allocation2 + $0xc2] sm:$0xff]
      %v1018 = vld [vmem:[#allocation2 + $0xca] sm:$0xff]
      %v1019 = vld [vmem:[#allocation2 + $0xd2] sm:$0xff]
      %v1020 = vld [vmem:[#allocation2 + $0xda] sm:$0xff]
      %v1021 = vld [vmem:[#allocation2 + $0xe2] sm:$0xff]
      %v1022 = vld [vmem:[#allocation2 + $0xea] sm:$0xff]
      %v1023 = vld [vmem:[#allocation2 + $0xf2] sm:$0xff]
      %v1024 = vld [vmem:[#allocation2 + $0xfa] sm:$0xff]
      %v1025 = vld [vmem:[#allocation2 + $0x102] sm:$0xff]
      %v1026 = vld [vmem:[#allocation2 + $0x10a] sm:$0xff]
      %v1027 = vld [vmem:[#allocation2 + $0x112] sm:$0xff]
      %v1028 = vld [vmem:[#allocation2 + $0x11a] sm:$0xff]
      %v1029 = vld [vmem:[#allocation2 + $0x122] sm:$0xff]
      %v1030 = vld [vmem:[#allocation2 + $0x12a] sm:$0xff]
      %s1031 = scalar_lea.vmem %s3, 384
      %v1032 = vld [vmem:[%s1031] sm:$0xff]
      %v1033 = vld [vmem:[%s1031 + $0x8] sm:$0xff]
      %v1034 = vld [vmem:[%s1031 + $0x10] sm:$0xff]
      %v1035 = vld [vmem:[%s1031 + $0x18] sm:$0xff]
      %v1036 = vld [vmem:[%s1031 + $0x20] sm:$0xff]
      %v1037 = vld [vmem:[%s1031 + $0x28] sm:$0xff]
      %v1038 = vld [vmem:[%s1031 + $0x30] sm:$0xff]
      %v1039 = vld [vmem:[%s1031 + $0x38] sm:$0xff]
      %v1040 = vld [vmem:[%s1031 + $0x40] sm:$0xff]
      %v1041 = vld [vmem:[%s1031 + $0x48] sm:$0xff]
      %v1042 = vld [vmem:[%s1031 + $0x50] sm:$0xff]
      %v1043 = vld [vmem:[%s1031 + $0x58] sm:$0xff]
      %v1044 = vld [vmem:[%s1031 + $0x60] sm:$0xff]
      %v1045 = vld [vmem:[%s1031 + $0x68] sm:$0xff]
      %v1046 = vld [vmem:[%s1031 + $0x70] sm:$0xff]
      %v1047 = vld [vmem:[%s1031 + $0x78] sm:$0xff]
      %1048 = vmatpush.msra.mxu0 %v1047
      %1049 = vmatpush.msra.mxu0 %v1046
      %1050 = vmatpush.msra.mxu0 %v1045
      %1051 = vmatpush.msra.mxu0 %v1044
      %1052 = vmatpush.msra.mxu0 %v1043
      %1053 = vmatpush.msra.mxu0 %v1042
      %1054 = vmatpush.msra.mxu0 %v1041
      %1055 = vmatpush.msra.mxu0 %v1040
      %1056 = vmatpush.msra.mxu0 %v1039
      %1057 = vmatpush.msra.mxu0 %v1038
      %1058 = vmatpush.msra.mxu0 %v1037
      %1059 = vmatpush.msra.mxu0 %v1036
      %1060 = vmatpush.msra.mxu0 %v1035
      %1061 = vmatpush.msra.mxu0 %v1034
      %1062 = vmatpush.msra.mxu0 %v1033
      %1063 = vmatpush.msra.mxu0 %v1032
      %1064 = vmatmul.f32.gmra.mxu0 %v995
      %v1065 = vpop.f32.mrf.mxu0
      %v1066 = vadd.f32 0.0, %v1065
      %1067 = vmatmul.f32.gmra.mxu0 %v996
      %v1068 = vpop.f32.mrf.mxu0
      %v1069 = vadd.f32 0.0, %v1068
      %1070 = vmatmul.f32.gmra.mxu0 %v997
      %v1071 = vpop.f32.mrf.mxu0
      %v1072 = vadd.f32 0.0, %v1071
      %1073 = vmatmul.f32.gmra.mxu0 %v998
      %v1074 = vpop.f32.mrf.mxu0
      %v1075 = vadd.f32 0.0, %v1074
      %1076 = vmatmul.f32.gmra.mxu0 %v999
      %v1077 = vpop.f32.mrf.mxu0
      %v1078 = vadd.f32 0.0, %v1077
      %1079 = vmatmul.f32.gmra.mxu0 %v1000
      %v1080 = vpop.f32.mrf.mxu0
      %v1081 = vadd.f32 0.0, %v1080
      %1082 = vmatmul.f32.gmra.mxu0 %v1001
      %v1083 = vpop.f32.mrf.mxu0
      %v1084 = vadd.f32 0.0, %v1083
      %1085 = vmatmul.f32.gmra.mxu0 %v1002
      %v1086 = vpop.f32.mrf.mxu0
      %v1087 = vadd.f32 0.0, %v1086
      %1088 = vmatmul.f32.gmra.mxu0 %v1003
      %v1089 = vpop.f32.mrf.mxu0
      %v1090 = vadd.f32 0.0, %v1089
      %1091 = vmatmul.f32.gmra.mxu0 %v1004
      %v1092 = vpop.f32.mrf.mxu0
      %v1093 = vadd.f32 0.0, %v1092
      %1094 = vmatmul.f32.gmra.mxu0 %v1005
      %v1095 = vpop.f32.mrf.mxu0
      %v1096 = vadd.f32 0.0, %v1095
      %1097 = vmatmul.f32.gmra.mxu0 %v1006
      %v1098 = vpop.f32.mrf.mxu0
      %v1099 = vadd.f32 0.0, %v1098
      %1100 = vmatmul.f32.gmra.mxu0 %v1007
      %v1101 = vpop.f32.mrf.mxu0
      %v1102 = vadd.f32 0.0, %v1101
      %1103 = vmatmul.f32.gmra.mxu0 %v1008
      %v1104 = vpop.f32.mrf.mxu0
      %v1105 = vadd.f32 0.0, %v1104
      %1106 = vmatmul.f32.gmra.mxu0 %v1009
      %v1107 = vpop.f32.mrf.mxu0
      %v1108 = vadd.f32 0.0, %v1107
      %1109 = vmatmul.f32.gmra.mxu0 %v1010
      %v1110 = vpop.f32.mrf.mxu0
      %v1111 = vadd.f32 0.0, %v1110
      %1112 = vmatmul.f32.gmra.mxu0 %v1011
      %v1113 = vpop.f32.mrf.mxu0
      %v1114 = vadd.f32 0.0, %v1113
      %1115 = vmatmul.f32.gmra.mxu0 %v1012
      %v1116 = vpop.f32.mrf.mxu0
      %v1117 = vadd.f32 0.0, %v1116
      %1118 = vmatmul.f32.gmra.mxu0 %v1013
      %v1119 = vpop.f32.mrf.mxu0
      %v1120 = vadd.f32 0.0, %v1119
      %1121 = vmatmul.f32.gmra.mxu0 %v1014
      %v1122 = vpop.f32.mrf.mxu0
      %v1123 = vadd.f32 0.0, %v1122
      %1124 = vmatmul.f32.gmra.mxu0 %v1015
      %v1125 = vpop.f32.mrf.mxu0
      %v1126 = vadd.f32 0.0, %v1125
      %1127 = vmatmul.f32.gmra.mxu0 %v1016
      %v1128 = vpop.f32.mrf.mxu0
      %v1129 = vadd.f32 0.0, %v1128
      %1130 = vmatmul.f32.gmra.mxu0 %v1017
      %v1131 = vpop.f32.mrf.mxu0
      %v1132 = vadd.f32 0.0, %v1131
      %1133 = vmatmul.f32.gmra.mxu0 %v1018
      %v1134 = vpop.f32.mrf.mxu0
      %v1135 = vadd.f32 0.0, %v1134
      %1136 = vmatmul.f32.gmra.mxu0 %v1019
      %v1137 = vpop.f32.mrf.mxu0
      %v1138 = vadd.f32 0.0, %v1137
      %1139 = vmatmul.f32.gmra.mxu0 %v1020
      %v1140 = vpop.f32.mrf.mxu0
      %v1141 = vadd.f32 0.0, %v1140
      %1142 = vmatmul.f32.gmra.mxu0 %v1021
      %v1143 = vpop.f32.mrf.mxu0
      %v1144 = vadd.f32 0.0, %v1143
      %1145 = vmatmul.f32.gmra.mxu0 %v1022
      %v1146 = vpop.f32.mrf.mxu0
      %v1147 = vadd.f32 0.0, %v1146
      %1148 = vmatmul.f32.gmra.mxu0 %v1023
      %v1149 = vpop.f32.mrf.mxu0
      %v1150 = vadd.f32 0.0, %v1149
      %1151 = vmatmul.f32.gmra.mxu0 %v1024
      %v1152 = vpop.f32.mrf.mxu0
      %v1153 = vadd.f32 0.0, %v1152
      %1154 = vmatmul.f32.gmra.mxu0 %v1025
      %v1155 = vpop.f32.mrf.mxu0
      %v1156 = vadd.f32 0.0, %v1155
      %1157 = vmatmul.f32.gmra.mxu0 %v1026
      %v1158 = vpop.f32.mrf.mxu0
      %v1159 = vadd.f32 0.0, %v1158
      %1160 = vmatmul.f32.gmra.mxu0 %v1027
      %v1161 = vpop.f32.mrf.mxu0
      %v1162 = vadd.f32 0.0, %v1161
      %1163 = vmatmul.f32.gmra.mxu0 %v1028
      %v1164 = vpop.f32.mrf.mxu0
      %v1165 = vadd.f32 0.0, %v1164
      %1166 = vmatmul.f32.gmra.mxu0 %v1029
      %v1167 = vpop.f32.mrf.mxu0
      %v1168 = vadd.f32 0.0, %v1167
      %1169 = vmatmul.f32.gmra.mxu0 %v1030
      %v1170 = vpop.f32.mrf.mxu0
      %v1171 = vadd.f32 0.0, %v1170
      %1172 = vdwg.mxu0
      %v1173 = vadd.f32 %v959, %v1066
      %v1174 = vadd.f32 %v960, %v1069
      %v1175 = vadd.f32 %v961, %v1072
      %v1176 = vadd.f32 %v962, %v1075
      %v1177 = vadd.f32 %v963, %v1078
      %v1178 = vadd.f32 %v964, %v1081
      %v1179 = vadd.f32 %v965, %v1084
      %v1180 = vadd.f32 %v966, %v1087
      %v1181 = vadd.f32 %v967, %v1090
      %v1182 = vadd.f32 %v968, %v1093
      %v1183 = vadd.f32 %v969, %v1096
      %v1184 = vadd.f32 %v970, %v1099
      %v1185 = vadd.f32 %v971, %v1102
      %v1186 = vadd.f32 %v972, %v1105
      %v1187 = vadd.f32 %v973, %v1108
      %v1188 = vadd.f32 %v974, %v1111
      %v1189 = vadd.f32 %v975, %v1114
      %v1190 = vadd.f32 %v976, %v1117
      %v1191 = vadd.f32 %v977, %v1120
      %v1192 = vadd.f32 %v978, %v1123
      %v1193 = vadd.f32 %v979, %v1126
      %v1194 = vadd.f32 %v980, %v1129
      %v1195 = vadd.f32 %v981, %v1132
      %v1196 = vadd.f32 %v982, %v1135
      %v1197 = vadd.f32 %v983, %v1138
      %v1198 = vadd.f32 %v984, %v1141
      %v1199 = vadd.f32 %v985, %v1144
      %v1200 = vadd.f32 %v986, %v1147
      %v1201 = vadd.f32 %v987, %v1150
      %v1202 = vadd.f32 %v988, %v1153
      %v1203 = vadd.f32 %v989, %v1156
      %v1204 = vadd.f32 %v990, %v1159
      %v1205 = vadd.f32 %v991, %v1162
      %v1206 = vadd.f32 %v992, %v1165
      %v1207 = vadd.f32 %v993, %v1168
      %v1208 = vadd.f32 %v994, %v1171
      %v1209 = vld [vmem:[#allocation2 + $0x13] sm:$0xff]
      %v1210 = vld [vmem:[#allocation2 + $0x1b] sm:$0xff]
      %v1211 = vld [vmem:[#allocation2 + $0x23] sm:$0xff]
      %v1212 = vld [vmem:[#allocation2 + $0x2b] sm:$0xff]
      %v1213 = vld [vmem:[#allocation2 + $0x33] sm:$0xff]
      %v1214 = vld [vmem:[#allocation2 + $0x3b] sm:$0xff]
      %v1215 = vld [vmem:[#allocation2 + $0x43] sm:$0xff]
      %v1216 = vld [vmem:[#allocation2 + $0x4b] sm:$0xff]
      %v1217 = vld [vmem:[#allocation2 + $0x53] sm:$0xff]
      %v1218 = vld [vmem:[#allocation2 + $0x5b] sm:$0xff]
      %v1219 = vld [vmem:[#allocation2 + $0x63] sm:$0xff]
      %v1220 = vld [vmem:[#allocation2 + $0x6b] sm:$0xff]
      %v1221 = vld [vmem:[#allocation2 + $0x73] sm:$0xff]
      %v1222 = vld [vmem:[#allocation2 + $0x7b] sm:$0xff]
      %v1223 = vld [vmem:[#allocation2 + $0x83] sm:$0xff]
      %v1224 = vld [vmem:[#allocation2 + $0x8b] sm:$0xff]
      %v1225 = vld [vmem:[#allocation2 + $0x93] sm:$0xff]
      %v1226 = vld [vmem:[#allocation2 + $0x9b] sm:$0xff]
      %v1227 = vld [vmem:[#allocation2 + $0xa3] sm:$0xff]
      %v1228 = vld [vmem:[#allocation2 + $0xab] sm:$0xff]
      %v1229 = vld [vmem:[#allocation2 + $0xb3] sm:$0xff]
      %v1230 = vld [vmem:[#allocation2 + $0xbb] sm:$0xff]
      %v1231 = vld [vmem:[#allocation2 + $0xc3] sm:$0xff]
      %v1232 = vld [vmem:[#allocation2 + $0xcb] sm:$0xff]
      %v1233 = vld [vmem:[#allocation2 + $0xd3] sm:$0xff]
      %v1234 = vld [vmem:[#allocation2 + $0xdb] sm:$0xff]
      %v1235 = vld [vmem:[#allocation2 + $0xe3] sm:$0xff]
      %v1236 = vld [vmem:[#allocation2 + $0xeb] sm:$0xff]
      %v1237 = vld [vmem:[#allocation2 + $0xf3] sm:$0xff]
      %v1238 = vld [vmem:[#allocation2 + $0xfb] sm:$0xff]
      %v1239 = vld [vmem:[#allocation2 + $0x103] sm:$0xff]
      %v1240 = vld [vmem:[#allocation2 + $0x10b] sm:$0xff]
      %v1241 = vld [vmem:[#allocation2 + $0x113] sm:$0xff]
      %v1242 = vld [vmem:[#allocation2 + $0x11b] sm:$0xff]
      %v1243 = vld [vmem:[#allocation2 + $0x123] sm:$0xff]
      %v1244 = vld [vmem:[#allocation2 + $0x12b] sm:$0xff]
      %s1245 = scalar_lea.vmem %s3, 512
      %v1246 = vld [vmem:[%s1245] sm:$0xff]
      %v1247 = vld [vmem:[%s1245 + $0x8] sm:$0xff]
      %v1248 = vld [vmem:[%s1245 + $0x10] sm:$0xff]
      %v1249 = vld [vmem:[%s1245 + $0x18] sm:$0xff]
      %v1250 = vld [vmem:[%s1245 + $0x20] sm:$0xff]
      %v1251 = vld [vmem:[%s1245 + $0x28] sm:$0xff]
      %v1252 = vld [vmem:[%s1245 + $0x30] sm:$0xff]
      %v1253 = vld [vmem:[%s1245 + $0x38] sm:$0xff]
      %v1254 = vld [vmem:[%s1245 + $0x40] sm:$0xff]
      %v1255 = vld [vmem:[%s1245 + $0x48] sm:$0xff]
      %v1256 = vld [vmem:[%s1245 + $0x50] sm:$0xff]
      %v1257 = vld [vmem:[%s1245 + $0x58] sm:$0xff]
      %v1258 = vld [vmem:[%s1245 + $0x60] sm:$0xff]
      %v1259 = vld [vmem:[%s1245 + $0x68] sm:$0xff]
      %v1260 = vld [vmem:[%s1245 + $0x70] sm:$0xff]
      %v1261 = vld [vmem:[%s1245 + $0x78] sm:$0xff]
      %1262 = vmatpush.msra.mxu0 %v1261
      %1263 = vmatpush.msra.mxu0 %v1260
      %1264 = vmatpush.msra.mxu0 %v1259
      %1265 = vmatpush.msra.mxu0 %v1258
      %1266 = vmatpush.msra.mxu0 %v1257
      %1267 = vmatpush.msra.mxu0 %v1256
      %1268 = vmatpush.msra.mxu0 %v1255
      %1269 = vmatpush.msra.mxu0 %v1254
      %1270 = vmatpush.msra.mxu0 %v1253
      %1271 = vmatpush.msra.mxu0 %v1252
      %1272 = vmatpush.msra.mxu0 %v1251
      %1273 = vmatpush.msra.mxu0 %v1250
      %1274 = vmatpush.msra.mxu0 %v1249
      %1275 = vmatpush.msra.mxu0 %v1248
      %1276 = vmatpush.msra.mxu0 %v1247
      %1277 = vmatpush.msra.mxu0 %v1246
      %1278 = vmatmul.f32.gmra.mxu0 %v1209
      %v1279 = vpop.f32.mrf.mxu0
      %v1280 = vadd.f32 0.0, %v1279
      %1281 = vmatmul.f32.gmra.mxu0 %v1210
      %v1282 = vpop.f32.mrf.mxu0
      %v1283 = vadd.f32 0.0, %v1282
      %1284 = vmatmul.f32.gmra.mxu0 %v1211
      %v1285 = vpop.f32.mrf.mxu0
      %v1286 = vadd.f32 0.0, %v1285
      %1287 = vmatmul.f32.gmra.mxu0 %v1212
      %v1288 = vpop.f32.mrf.mxu0
      %v1289 = vadd.f32 0.0, %v1288
      %1290 = vmatmul.f32.gmra.mxu0 %v1213
      %v1291 = vpop.f32.mrf.mxu0
      %v1292 = vadd.f32 0.0, %v1291
      %1293 = vmatmul.f32.gmra.mxu0 %v1214
      %v1294 = vpop.f32.mrf.mxu0
      %v1295 = vadd.f32 0.0, %v1294
      %1296 = vmatmul.f32.gmra.mxu0 %v1215
      %v1297 = vpop.f32.mrf.mxu0
      %v1298 = vadd.f32 0.0, %v1297
      %1299 = vmatmul.f32.gmra.mxu0 %v1216
      %v1300 = vpop.f32.mrf.mxu0
      %v1301 = vadd.f32 0.0, %v1300
      %1302 = vmatmul.f32.gmra.mxu0 %v1217
      %v1303 = vpop.f32.mrf.mxu0
      %v1304 = vadd.f32 0.0, %v1303
      %1305 = vmatmul.f32.gmra.mxu0 %v1218
      %v1306 = vpop.f32.mrf.mxu0
      %v1307 = vadd.f32 0.0, %v1306
      %1308 = vmatmul.f32.gmra.mxu0 %v1219
      %v1309 = vpop.f32.mrf.mxu0
      %v1310 = vadd.f32 0.0, %v1309
      %1311 = vmatmul.f32.gmra.mxu0 %v1220
      %v1312 = vpop.f32.mrf.mxu0
      %v1313 = vadd.f32 0.0, %v1312
      %1314 = vmatmul.f32.gmra.mxu0 %v1221
      %v1315 = vpop.f32.mrf.mxu0
      %v1316 = vadd.f32 0.0, %v1315
      %1317 = vmatmul.f32.gmra.mxu0 %v1222
      %v1318 = vpop.f32.mrf.mxu0
      %v1319 = vadd.f32 0.0, %v1318
      %1320 = vmatmul.f32.gmra.mxu0 %v1223
      %v1321 = vpop.f32.mrf.mxu0
      %v1322 = vadd.f32 0.0, %v1321
      %1323 = vmatmul.f32.gmra.mxu0 %v1224
      %v1324 = vpop.f32.mrf.mxu0
      %v1325 = vadd.f32 0.0, %v1324
      %1326 = vmatmul.f32.gmra.mxu0 %v1225
      %v1327 = vpop.f32.mrf.mxu0
      %v1328 = vadd.f32 0.0, %v1327
      %1329 = vmatmul.f32.gmra.mxu0 %v1226
      %v1330 = vpop.f32.mrf.mxu0
      %v1331 = vadd.f32 0.0, %v1330
      %1332 = vmatmul.f32.gmra.mxu0 %v1227
      %v1333 = vpop.f32.mrf.mxu0
      %v1334 = vadd.f32 0.0, %v1333
      %1335 = vmatmul.f32.gmra.mxu0 %v1228
      %v1336 = vpop.f32.mrf.mxu0
      %v1337 = vadd.f32 0.0, %v1336
      %1338 = vmatmul.f32.gmra.mxu0 %v1229
      %v1339 = vpop.f32.mrf.mxu0
      %v1340 = vadd.f32 0.0, %v1339
      %1341 = vmatmul.f32.gmra.mxu0 %v1230
      %v1342 = vpop.f32.mrf.mxu0
      %v1343 = vadd.f32 0.0, %v1342
      %1344 = vmatmul.f32.gmra.mxu0 %v1231
      %v1345 = vpop.f32.mrf.mxu0
      %v1346 = vadd.f32 0.0, %v1345
      %1347 = vmatmul.f32.gmra.mxu0 %v1232
      %v1348 = vpop.f32.mrf.mxu0
      %v1349 = vadd.f32 0.0, %v1348
      %1350 = vmatmul.f32.gmra.mxu0 %v1233
      %v1351 = vpop.f32.mrf.mxu0
      %v1352 = vadd.f32 0.0, %v1351
      %1353 = vmatmul.f32.gmra.mxu0 %v1234
      %v1354 = vpop.f32.mrf.mxu0
      %v1355 = vadd.f32 0.0, %v1354
      %1356 = vmatmul.f32.gmra.mxu0 %v1235
      %v1357 = vpop.f32.mrf.mxu0
      %v1358 = vadd.f32 0.0, %v1357
      %1359 = vmatmul.f32.gmra.mxu0 %v1236
      %v1360 = vpop.f32.mrf.mxu0
      %v1361 = vadd.f32 0.0, %v1360
      %1362 = vmatmul.f32.gmra.mxu0 %v1237
      %v1363 = vpop.f32.mrf.mxu0
      %v1364 = vadd.f32 0.0, %v1363
      %1365 = vmatmul.f32.gmra.mxu0 %v1238
      %v1366 = vpop.f32.mrf.mxu0
      %v1367 = vadd.f32 0.0, %v1366
      %1368 = vmatmul.f32.gmra.mxu0 %v1239
      %v1369 = vpop.f32.mrf.mxu0
      %v1370 = vadd.f32 0.0, %v1369
      %1371 = vmatmul.f32.gmra.mxu0 %v1240
      %v1372 = vpop.f32.mrf.mxu0
      %v1373 = vadd.f32 0.0, %v1372
      %1374 = vmatmul.f32.gmra.mxu0 %v1241
      %v1375 = vpop.f32.mrf.mxu0
      %v1376 = vadd.f32 0.0, %v1375
      %1377 = vmatmul.f32.gmra.mxu0 %v1242
      %v1378 = vpop.f32.mrf.mxu0
      %v1379 = vadd.f32 0.0, %v1378
      %1380 = vmatmul.f32.gmra.mxu0 %v1243
      %v1381 = vpop.f32.mrf.mxu0
      %v1382 = vadd.f32 0.0, %v1381
      %1383 = vmatmul.f32.gmra.mxu0 %v1244
      %v1384 = vpop.f32.mrf.mxu0
      %v1385 = vadd.f32 0.0, %v1384
      %1386 = vdwg.mxu0
      %v1387 = vadd.f32 %v1173, %v1280
      %v1388 = vadd.f32 %v1174, %v1283
      %v1389 = vadd.f32 %v1175, %v1286
      %v1390 = vadd.f32 %v1176, %v1289
      %v1391 = vadd.f32 %v1177, %v1292
      %v1392 = vadd.f32 %v1178, %v1295
      %v1393 = vadd.f32 %v1179, %v1298
      %v1394 = vadd.f32 %v1180, %v1301
      %v1395 = vadd.f32 %v1181, %v1304
      %v1396 = vadd.f32 %v1182, %v1307
      %v1397 = vadd.f32 %v1183, %v1310
      %v1398 = vadd.f32 %v1184, %v1313
      %v1399 = vadd.f32 %v1185, %v1316
      %v1400 = vadd.f32 %v1186, %v1319
      %v1401 = vadd.f32 %v1187, %v1322
      %v1402 = vadd.f32 %v1188, %v1325
      %v1403 = vadd.f32 %v1189, %v1328
      %v1404 = vadd.f32 %v1190, %v1331
      %v1405 = vadd.f32 %v1191, %v1334
      %v1406 = vadd.f32 %v1192, %v1337
      %v1407 = vadd.f32 %v1193, %v1340
      %v1408 = vadd.f32 %v1194, %v1343
      %v1409 = vadd.f32 %v1195, %v1346
      %v1410 = vadd.f32 %v1196, %v1349
      %v1411 = vadd.f32 %v1197, %v1352
      %v1412 = vadd.f32 %v1198, %v1355
      %v1413 = vadd.f32 %v1199, %v1358
      %v1414 = vadd.f32 %v1200, %v1361
      %v1415 = vadd.f32 %v1201, %v1364
      %v1416 = vadd.f32 %v1202, %v1367
      %v1417 = vadd.f32 %v1203, %v1370
      %v1418 = vadd.f32 %v1204, %v1373
      %v1419 = vadd.f32 %v1205, %v1376
      %v1420 = vadd.f32 %v1206, %v1379
      %v1421 = vadd.f32 %v1207, %v1382
      %v1422 = vadd.f32 %v1208, %v1385
      %v1423 = vld [vmem:[#allocation2 + $0x14] sm:$0xff]
      %v1424 = vld [vmem:[#allocation2 + $0x1c] sm:$0xff]
      %v1425 = vld [vmem:[#allocation2 + $0x24] sm:$0xff]
      %v1426 = vld [vmem:[#allocation2 + $0x2c] sm:$0xff]
      %v1427 = vld [vmem:[#allocation2 + $0x34] sm:$0xff]
      %v1428 = vld [vmem:[#allocation2 + $0x3c] sm:$0xff]
      %v1429 = vld [vmem:[#allocation2 + $0x44] sm:$0xff]
      %v1430 = vld [vmem:[#allocation2 + $0x4c] sm:$0xff]
      %v1431 = vld [vmem:[#allocation2 + $0x54] sm:$0xff]
      %v1432 = vld [vmem:[#allocation2 + $0x5c] sm:$0xff]
      %v1433 = vld [vmem:[#allocation2 + $0x64] sm:$0xff]
      %v1434 = vld [vmem:[#allocation2 + $0x6c] sm:$0xff]
      %v1435 = vld [vmem:[#allocation2 + $0x74] sm:$0xff]
      %v1436 = vld [vmem:[#allocation2 + $0x7c] sm:$0xff]
      %v1437 = vld [vmem:[#allocation2 + $0x84] sm:$0xff]
      %v1438 = vld [vmem:[#allocation2 + $0x8c] sm:$0xff]
      %v1439 = vld [vmem:[#allocation2 + $0x94] sm:$0xff]
      %v1440 = vld [vmem:[#allocation2 + $0x9c] sm:$0xff]
      %v1441 = vld [vmem:[#allocation2 + $0xa4] sm:$0xff]
      %v1442 = vld [vmem:[#allocation2 + $0xac] sm:$0xff]
      %v1443 = vld [vmem:[#allocation2 + $0xb4] sm:$0xff]
      %v1444 = vld [vmem:[#allocation2 + $0xbc] sm:$0xff]
      %v1445 = vld [vmem:[#allocation2 + $0xc4] sm:$0xff]
      %v1446 = vld [vmem:[#allocation2 + $0xcc] sm:$0xff]
      %v1447 = vld [vmem:[#allocation2 + $0xd4] sm:$0xff]
      %v1448 = vld [vmem:[#allocation2 + $0xdc] sm:$0xff]
      %v1449 = vld [vmem:[#allocation2 + $0xe4] sm:$0xff]
      %v1450 = vld [vmem:[#allocation2 + $0xec] sm:$0xff]
      %v1451 = vld [vmem:[#allocation2 + $0xf4] sm:$0xff]
      %v1452 = vld [vmem:[#allocation2 + $0xfc] sm:$0xff]
      %v1453 = vld [vmem:[#allocation2 + $0x104] sm:$0xff]
      %v1454 = vld [vmem:[#allocation2 + $0x10c] sm:$0xff]
      %v1455 = vld [vmem:[#allocation2 + $0x114] sm:$0xff]
      %v1456 = vld [vmem:[#allocation2 + $0x11c] sm:$0xff]
      %v1457 = vld [vmem:[#allocation2 + $0x124] sm:$0xff]
      %v1458 = vld [vmem:[#allocation2 + $0x12c] sm:$0xff]
      %s1459 = scalar_lea.vmem %s3, 640
      %v1460 = vld [vmem:[%s1459] sm:$0xff]
      %v1461 = vld [vmem:[%s1459 + $0x8] sm:$0xff]
      %v1462 = vld [vmem:[%s1459 + $0x10] sm:$0xff]
      %v1463 = vld [vmem:[%s1459 + $0x18] sm:$0xff]
      %v1464 = vld [vmem:[%s1459 + $0x20] sm:$0xff]
      %v1465 = vld [vmem:[%s1459 + $0x28] sm:$0xff]
      %v1466 = vld [vmem:[%s1459 + $0x30] sm:$0xff]
      %v1467 = vld [vmem:[%s1459 + $0x38] sm:$0xff]
      %v1468 = vld [vmem:[%s1459 + $0x40] sm:$0xff]
      %v1469 = vld [vmem:[%s1459 + $0x48] sm:$0xff]
      %v1470 = vld [vmem:[%s1459 + $0x50] sm:$0xff]
      %v1471 = vld [vmem:[%s1459 + $0x58] sm:$0xff]
      %v1472 = vld [vmem:[%s1459 + $0x60] sm:$0xff]
      %v1473 = vld [vmem:[%s1459 + $0x68] sm:$0xff]
      %v1474 = vld [vmem:[%s1459 + $0x70] sm:$0xff]
      %v1475 = vld [vmem:[%s1459 + $0x78] sm:$0xff]
      %1476 = vmatpush.msra.mxu0 %v1475
      %1477 = vmatpush.msra.mxu0 %v1474
      %1478 = vmatpush.msra.mxu0 %v1473
      %1479 = vmatpush.msra.mxu0 %v1472
      %1480 = vmatpush.msra.mxu0 %v1471
      %1481 = vmatpush.msra.mxu0 %v1470
      %1482 = vmatpush.msra.mxu0 %v1469
      %1483 = vmatpush.msra.mxu0 %v1468
      %1484 = vmatpush.msra.mxu0 %v1467
      %1485 = vmatpush.msra.mxu0 %v1466
      %1486 = vmatpush.msra.mxu0 %v1465
      %1487 = vmatpush.msra.mxu0 %v1464
      %1488 = vmatpush.msra.mxu0 %v1463
      %1489 = vmatpush.msra.mxu0 %v1462
      %1490 = vmatpush.msra.mxu0 %v1461
      %1491 = vmatpush.msra.mxu0 %v1460
      %1492 = vmatmul.f32.gmra.mxu0 %v1423
      %v1493 = vpop.f32.mrf.mxu0
      %v1494 = vadd.f32 0.0, %v1493
      %1495 = vmatmul.f32.gmra.mxu0 %v1424
      %v1496 = vpop.f32.mrf.mxu0
      %v1497 = vadd.f32 0.0, %v1496
      %1498 = vmatmul.f32.gmra.mxu0 %v1425
      %v1499 = vpop.f32.mrf.mxu0
      %v1500 = vadd.f32 0.0, %v1499
      %1501 = vmatmul.f32.gmra.mxu0 %v1426
      %v1502 = vpop.f32.mrf.mxu0
      %v1503 = vadd.f32 0.0, %v1502
      %1504 = vmatmul.f32.gmra.mxu0 %v1427
      %v1505 = vpop.f32.mrf.mxu0
      %v1506 = vadd.f32 0.0, %v1505
      %1507 = vmatmul.f32.gmra.mxu0 %v1428
      %v1508 = vpop.f32.mrf.mxu0
      %v1509 = vadd.f32 0.0, %v1508
      %1510 = vmatmul.f32.gmra.mxu0 %v1429
      %v1511 = vpop.f32.mrf.mxu0
      %v1512 = vadd.f32 0.0, %v1511
      %1513 = vmatmul.f32.gmra.mxu0 %v1430
      %v1514 = vpop.f32.mrf.mxu0
      %v1515 = vadd.f32 0.0, %v1514
      %1516 = vmatmul.f32.gmra.mxu0 %v1431
      %v1517 = vpop.f32.mrf.mxu0
      %v1518 = vadd.f32 0.0, %v1517
      %1519 = vmatmul.f32.gmra.mxu0 %v1432
      %v1520 = vpop.f32.mrf.mxu0
      %v1521 = vadd.f32 0.0, %v1520
      %1522 = vmatmul.f32.gmra.mxu0 %v1433
      %v1523 = vpop.f32.mrf.mxu0
      %v1524 = vadd.f32 0.0, %v1523
      %1525 = vmatmul.f32.gmra.mxu0 %v1434
      %v1526 = vpop.f32.mrf.mxu0
      %v1527 = vadd.f32 0.0, %v1526
      %1528 = vmatmul.f32.gmra.mxu0 %v1435
      %v1529 = vpop.f32.mrf.mxu0
      %v1530 = vadd.f32 0.0, %v1529
      %1531 = vmatmul.f32.gmra.mxu0 %v1436
      %v1532 = vpop.f32.mrf.mxu0
      %v1533 = vadd.f32 0.0, %v1532
      %1534 = vmatmul.f32.gmra.mxu0 %v1437
      %v1535 = vpop.f32.mrf.mxu0
      %v1536 = vadd.f32 0.0, %v1535
      %1537 = vmatmul.f32.gmra.mxu0 %v1438
      %v1538 = vpop.f32.mrf.mxu0
      %v1539 = vadd.f32 0.0, %v1538
      %1540 = vmatmul.f32.gmra.mxu0 %v1439
      %v1541 = vpop.f32.mrf.mxu0
      %v1542 = vadd.f32 0.0, %v1541
      %1543 = vmatmul.f32.gmra.mxu0 %v1440
      %v1544 = vpop.f32.mrf.mxu0
      %v1545 = vadd.f32 0.0, %v1544
      %1546 = vmatmul.f32.gmra.mxu0 %v1441
      %v1547 = vpop.f32.mrf.mxu0
      %v1548 = vadd.f32 0.0, %v1547
      %1549 = vmatmul.f32.gmra.mxu0 %v1442
      %v1550 = vpop.f32.mrf.mxu0
      %v1551 = vadd.f32 0.0, %v1550
      %1552 = vmatmul.f32.gmra.mxu0 %v1443
      %v1553 = vpop.f32.mrf.mxu0
      %v1554 = vadd.f32 0.0, %v1553
      %1555 = vmatmul.f32.gmra.mxu0 %v1444
      %v1556 = vpop.f32.mrf.mxu0
      %v1557 = vadd.f32 0.0, %v1556
      %1558 = vmatmul.f32.gmra.mxu0 %v1445
      %v1559 = vpop.f32.mrf.mxu0
      %v1560 = vadd.f32 0.0, %v1559
      %1561 = vmatmul.f32.gmra.mxu0 %v1446
      %v1562 = vpop.f32.mrf.mxu0
      %v1563 = vadd.f32 0.0, %v1562
      %1564 = vmatmul.f32.gmra.mxu0 %v1447
      %v1565 = vpop.f32.mrf.mxu0
      %v1566 = vadd.f32 0.0, %v1565
      %1567 = vmatmul.f32.gmra.mxu0 %v1448
      %v1568 = vpop.f32.mrf.mxu0
      %v1569 = vadd.f32 0.0, %v1568
      %1570 = vmatmul.f32.gmra.mxu0 %v1449
      %v1571 = vpop.f32.mrf.mxu0
      %v1572 = vadd.f32 0.0, %v1571
      %1573 = vmatmul.f32.gmra.mxu0 %v1450
      %v1574 = vpop.f32.mrf.mxu0
      %v1575 = vadd.f32 0.0, %v1574
      %1576 = vmatmul.f32.gmra.mxu0 %v1451
      %v1577 = vpop.f32.mrf.mxu0
      %v1578 = vadd.f32 0.0, %v1577
      %1579 = vmatmul.f32.gmra.mxu0 %v1452
      %v1580 = vpop.f32.mrf.mxu0
      %v1581 = vadd.f32 0.0, %v1580
      %1582 = vmatmul.f32.gmra.mxu0 %v1453
      %v1583 = vpop.f32.mrf.mxu0
      %v1584 = vadd.f32 0.0, %v1583
      %1585 = vmatmul.f32.gmra.mxu0 %v1454
      %v1586 = vpop.f32.mrf.mxu0
      %v1587 = vadd.f32 0.0, %v1586
      %1588 = vmatmul.f32.gmra.mxu0 %v1455
      %v1589 = vpop.f32.mrf.mxu0
      %v1590 = vadd.f32 0.0, %v1589
      %1591 = vmatmul.f32.gmra.mxu0 %v1456
      %v1592 = vpop.f32.mrf.mxu0
      %v1593 = vadd.f32 0.0, %v1592
      %1594 = vmatmul.f32.gmra.mxu0 %v1457
      %v1595 = vpop.f32.mrf.mxu0
      %v1596 = vadd.f32 0.0, %v1595
      %1597 = vmatmul.f32.gmra.mxu0 %v1458
      %v1598 = vpop.f32.mrf.mxu0
      %v1599 = vadd.f32 0.0, %v1598
      %1600 = vdwg.mxu0
      %v1601 = vadd.f32 %v1387, %v1494
      %v1602 = vadd.f32 %v1388, %v1497
      %v1603 = vadd.f32 %v1389, %v1500
      %v1604 = vadd.f32 %v1390, %v1503
      %v1605 = vadd.f32 %v1391, %v1506
      %v1606 = vadd.f32 %v1392, %v1509
      %v1607 = vadd.f32 %v1393, %v1512
      %v1608 = vadd.f32 %v1394, %v1515
      %v1609 = vadd.f32 %v1395, %v1518
      %v1610 = vadd.f32 %v1396, %v1521
      %v1611 = vadd.f32 %v1397, %v1524
      %v1612 = vadd.f32 %v1398, %v1527
      %v1613 = vadd.f32 %v1399, %v1530
      %v1614 = vadd.f32 %v1400, %v1533
      %v1615 = vadd.f32 %v1401, %v1536
      %v1616 = vadd.f32 %v1402, %v1539
      %v1617 = vadd.f32 %v1403, %v1542
      %v1618 = vadd.f32 %v1404, %v1545
      %v1619 = vadd.f32 %v1405, %v1548
      %v1620 = vadd.f32 %v1406, %v1551
      %v1621 = vadd.f32 %v1407, %v1554
      %v1622 = vadd.f32 %v1408, %v1557
      %v1623 = vadd.f32 %v1409, %v1560
      %v1624 = vadd.f32 %v1410, %v1563
      %v1625 = vadd.f32 %v1411, %v1566
      %v1626 = vadd.f32 %v1412, %v1569
      %v1627 = vadd.f32 %v1413, %v1572
      %v1628 = vadd.f32 %v1414, %v1575
      %v1629 = vadd.f32 %v1415, %v1578
      %v1630 = vadd.f32 %v1416, %v1581
      %v1631 = vadd.f32 %v1417, %v1584
      %v1632 = vadd.f32 %v1418, %v1587
      %v1633 = vadd.f32 %v1419, %v1590
      %v1634 = vadd.f32 %v1420, %v1593
      %v1635 = vadd.f32 %v1421, %v1596
      %v1636 = vadd.f32 %v1422, %v1599
      %v1637 = vld [vmem:[#allocation2 + $0x24] sm:$0xff]
      %v1638 = vld [vmem:[#allocation2 + $0x2c] sm:$0xff]
      %v1639 = vld [vmem:[#allocation2 + $0x34] sm:$0xff]
      %v1640 = vld [vmem:[#allocation2 + $0x3c] sm:$0xff]
      %v1641 = vld [vmem:[#allocation2 + $0x44] sm:$0xff]
      %v1642 = vld [vmem:[#allocation2 + $0x4c] sm:$0xff]
      %v1643 = vld [vmem:[#allocation2 + $0x54] sm:$0xff]
      %v1644 = vld [vmem:[#allocation2 + $0x5c] sm:$0xff]
      %v1645 = vld [vmem:[#allocation2 + $0x64] sm:$0xff]
      %v1646 = vld [vmem:[#allocation2 + $0x6c] sm:$0xff]
      %v1647 = vld [vmem:[#allocation2 + $0x74] sm:$0xff]
      %v1648 = vld [vmem:[#allocation2 + $0x7c] sm:$0xff]
      %v1649 = vld [vmem:[#allocation2 + $0x84] sm:$0xff]
      %v1650 = vld [vmem:[#allocation2 + $0x8c] sm:$0xff]
      %v1651 = vld [vmem:[#allocation2 + $0x94] sm:$0xff]
      %v1652 = vld [vmem:[#allocation2 + $0x9c] sm:$0xff]
      %v1653 = vld [vmem:[#allocation2 + $0xa4] sm:$0xff]
      %v1654 = vld [vmem:[#allocation2 + $0xac] sm:$0xff]
      %v1655 = vld [vmem:[#allocation2 + $0xb4] sm:$0xff]
      %v1656 = vld [vmem:[#allocation2 + $0xbc] sm:$0xff]
      %v1657 = vld [vmem:[#allocation2 + $0xc4] sm:$0xff]
      %v1658 = vld [vmem:[#allocation2 + $0xcc] sm:$0xff]
      %v1659 = vld [vmem:[#allocation2 + $0xd4] sm:$0xff]
      %v1660 = vld [vmem:[#allocation2 + $0xdc] sm:$0xff]
      %v1661 = vld [vmem:[#allocation2 + $0xe4] sm:$0xff]
      %v1662 = vld [vmem:[#allocation2 + $0xec] sm:$0xff]
      %v1663 = vld [vmem:[#allocation2 + $0xf4] sm:$0xff]
      %v1664 = vld [vmem:[#allocation2 + $0xfc] sm:$0xff]
      %v1665 = vld [vmem:[#allocation2 + $0x104] sm:$0xff]
      %v1666 = vld [vmem:[#allocation2 + $0x10c] sm:$0xff]
      %v1667 = vld [vmem:[#allocation2 + $0x114] sm:$0xff]
      %v1668 = vld [vmem:[#allocation2 + $0x11c] sm:$0xff]
      %v1669 = vld [vmem:[#allocation2 + $0x124] sm:$0xff]
      %v1670 = vld [vmem:[#allocation2 + $0x12c] sm:$0xff]
      %v1671 = vld [vmem:[#allocation2 + $0x134] sm:$0xff]
      %v1672 = vld [vmem:[#allocation2 + $0x13c] sm:$0xff]
      %s1673 = scalar_lea.vmem %s3, 768
      %v1674 = vld [vmem:[%s1673] sm:$0xff]
      %v1675 = vld [vmem:[%s1673 + $0x8] sm:$0xff]
      %v1676 = vld [vmem:[%s1673 + $0x10] sm:$0xff]
      %v1677 = vld [vmem:[%s1673 + $0x18] sm:$0xff]
      %v1678 = vld [vmem:[%s1673 + $0x20] sm:$0xff]
      %v1679 = vld [vmem:[%s1673 + $0x28] sm:$0xff]
      %v1680 = vld [vmem:[%s1673 + $0x30] sm:$0xff]
      %v1681 = vld [vmem:[%s1673 + $0x38] sm:$0xff]
      %v1682 = vld [vmem:[%s1673 + $0x40] sm:$0xff]
      %v1683 = vld [vmem:[%s1673 + $0x48] sm:$0xff]
      %v1684 = vld [vmem:[%s1673 + $0x50] sm:$0xff]
      %v1685 = vld [vmem:[%s1673 + $0x58] sm:$0xff]
      %v1686 = vld [vmem:[%s1673 + $0x60] sm:$0xff]
      %v1687 = vld [vmem:[%s1673 + $0x68] sm:$0xff]
      %v1688 = vld [vmem:[%s1673 + $0x70] sm:$0xff]
      %v1689 = vld [vmem:[%s1673 + $0x78] sm:$0xff]
      %1690 = vmatpush.msra.mxu0 %v1689
      %1691 = vmatpush.msra.mxu0 %v1688
      %1692 = vmatpush.msra.mxu0 %v1687
      %1693 = vmatpush.msra.mxu0 %v1686
      %1694 = vmatpush.msra.mxu0 %v1685
      %1695 = vmatpush.msra.mxu0 %v1684
      %1696 = vmatpush.msra.mxu0 %v1683
      %1697 = vmatpush.msra.mxu0 %v1682
      %1698 = vmatpush.msra.mxu0 %v1681
      %1699 = vmatpush.msra.mxu0 %v1680
      %1700 = vmatpush.msra.mxu0 %v1679
      %1701 = vmatpush.msra.mxu0 %v1678
      %1702 = vmatpush.msra.mxu0 %v1677
      %1703 = vmatpush.msra.mxu0 %v1676
      %1704 = vmatpush.msra.mxu0 %v1675
      %1705 = vmatpush.msra.mxu0 %v1674
      %1706 = vmatmul.f32.gmra.mxu0 %v1637
      %v1707 = vpop.f32.mrf.mxu0
      %v1708 = vadd.f32 0.0, %v1707
      %1709 = vmatmul.f32.gmra.mxu0 %v1638
      %v1710 = vpop.f32.mrf.mxu0
      %v1711 = vadd.f32 0.0, %v1710
      %1712 = vmatmul.f32.gmra.mxu0 %v1639
      %v1713 = vpop.f32.mrf.mxu0
      %v1714 = vadd.f32 0.0, %v1713
      %1715 = vmatmul.f32.gmra.mxu0 %v1640
      %v1716 = vpop.f32.mrf.mxu0
      %v1717 = vadd.f32 0.0, %v1716
      %1718 = vmatmul.f32.gmra.mxu0 %v1641
      %v1719 = vpop.f32.mrf.mxu0
      %v1720 = vadd.f32 0.0, %v1719
      %1721 = vmatmul.f32.gmra.mxu0 %v1642
      %v1722 = vpop.f32.mrf.mxu0
      %v1723 = vadd.f32 0.0, %v1722
      %1724 = vmatmul.f32.gmra.mxu0 %v1643
      %v1725 = vpop.f32.mrf.mxu0
      %v1726 = vadd.f32 0.0, %v1725
      %1727 = vmatmul.f32.gmra.mxu0 %v1644
      %v1728 = vpop.f32.mrf.mxu0
      %v1729 = vadd.f32 0.0, %v1728
      %1730 = vmatmul.f32.gmra.mxu0 %v1645
      %v1731 = vpop.f32.mrf.mxu0
      %v1732 = vadd.f32 0.0, %v1731
      %1733 = vmatmul.f32.gmra.mxu0 %v1646
      %v1734 = vpop.f32.mrf.mxu0
      %v1735 = vadd.f32 0.0, %v1734
      %1736 = vmatmul.f32.gmra.mxu0 %v1647
      %v1737 = vpop.f32.mrf.mxu0
      %v1738 = vadd.f32 0.0, %v1737
      %1739 = vmatmul.f32.gmra.mxu0 %v1648
      %v1740 = vpop.f32.mrf.mxu0
      %v1741 = vadd.f32 0.0, %v1740
      %1742 = vmatmul.f32.gmra.mxu0 %v1649
      %v1743 = vpop.f32.mrf.mxu0
      %v1744 = vadd.f32 0.0, %v1743
      %1745 = vmatmul.f32.gmra.mxu0 %v1650
      %v1746 = vpop.f32.mrf.mxu0
      %v1747 = vadd.f32 0.0, %v1746
      %1748 = vmatmul.f32.gmra.mxu0 %v1651
      %v1749 = vpop.f32.mrf.mxu0
      %v1750 = vadd.f32 0.0, %v1749
      %1751 = vmatmul.f32.gmra.mxu0 %v1652
      %v1752 = vpop.f32.mrf.mxu0
      %v1753 = vadd.f32 0.0, %v1752
      %1754 = vmatmul.f32.gmra.mxu0 %v1653
      %v1755 = vpop.f32.mrf.mxu0
      %v1756 = vadd.f32 0.0, %v1755
      %1757 = vmatmul.f32.gmra.mxu0 %v1654
      %v1758 = vpop.f32.mrf.mxu0
      %v1759 = vadd.f32 0.0, %v1758
      %1760 = vmatmul.f32.gmra.mxu0 %v1655
      %v1761 = vpop.f32.mrf.mxu0
      %v1762 = vadd.f32 0.0, %v1761
      %1763 = vmatmul.f32.gmra.mxu0 %v1656
      %v1764 = vpop.f32.mrf.mxu0
      %v1765 = vadd.f32 0.0, %v1764
      %1766 = vmatmul.f32.gmra.mxu0 %v1657
      %v1767 = vpop.f32.mrf.mxu0
      %v1768 = vadd.f32 0.0, %v1767
      %1769 = vmatmul.f32.gmra.mxu0 %v1658
      %v1770 = vpop.f32.mrf.mxu0
      %v1771 = vadd.f32 0.0, %v1770
      %1772 = vmatmul.f32.gmra.mxu0 %v1659
      %v1773 = vpop.f32.mrf.mxu0
      %v1774 = vadd.f32 0.0, %v1773
      %1775 = vmatmul.f32.gmra.mxu0 %v1660
      %v1776 = vpop.f32.mrf.mxu0
      %v1777 = vadd.f32 0.0, %v1776
      %1778 = vmatmul.f32.gmra.mxu0 %v1661
      %v1779 = vpop.f32.mrf.mxu0
      %v1780 = vadd.f32 0.0, %v1779
      %1781 = vmatmul.f32.gmra.mxu0 %v1662
      %v1782 = vpop.f32.mrf.mxu0
      %v1783 = vadd.f32 0.0, %v1782
      %1784 = vmatmul.f32.gmra.mxu0 %v1663
      %v1785 = vpop.f32.mrf.mxu0
      %v1786 = vadd.f32 0.0, %v1785
      %1787 = vmatmul.f32.gmra.mxu0 %v1664
      %v1788 = vpop.f32.mrf.mxu0
      %v1789 = vadd.f32 0.0, %v1788
      %1790 = vmatmul.f32.gmra.mxu0 %v1665
      %v1791 = vpop.f32.mrf.mxu0
      %v1792 = vadd.f32 0.0, %v1791
      %1793 = vmatmul.f32.gmra.mxu0 %v1666
      %v1794 = vpop.f32.mrf.mxu0
      %v1795 = vadd.f32 0.0, %v1794
      %1796 = vmatmul.f32.gmra.mxu0 %v1667
      %v1797 = vpop.f32.mrf.mxu0
      %v1798 = vadd.f32 0.0, %v1797
      %1799 = vmatmul.f32.gmra.mxu0 %v1668
      %v1800 = vpop.f32.mrf.mxu0
      %v1801 = vadd.f32 0.0, %v1800
      %1802 = vmatmul.f32.gmra.mxu0 %v1669
      %v1803 = vpop.f32.mrf.mxu0
      %v1804 = vadd.f32 0.0, %v1803
      %1805 = vmatmul.f32.gmra.mxu0 %v1670
      %v1806 = vpop.f32.mrf.mxu0
      %v1807 = vadd.f32 0.0, %v1806
      %1808 = vmatmul.f32.gmra.mxu0 %v1671
      %v1809 = vpop.f32.mrf.mxu0
      %v1810 = vadd.f32 0.0, %v1809
      %1811 = vmatmul.f32.gmra.mxu0 %v1672
      %v1812 = vpop.f32.mrf.mxu0
      %v1813 = vadd.f32 0.0, %v1812
      %1814 = vdwg.mxu0
      %v1815 = vadd.f32 %v1601, %v1708
      %v1816 = vadd.f32 %v1602, %v1711
      %v1817 = vadd.f32 %v1603, %v1714
      %v1818 = vadd.f32 %v1604, %v1717
      %v1819 = vadd.f32 %v1605, %v1720
      %v1820 = vadd.f32 %v1606, %v1723
      %v1821 = vadd.f32 %v1607, %v1726
      %v1822 = vadd.f32 %v1608, %v1729
      %v1823 = vadd.f32 %v1609, %v1732
      %v1824 = vadd.f32 %v1610, %v1735
      %v1825 = vadd.f32 %v1611, %v1738
      %v1826 = vadd.f32 %v1612, %v1741
      %v1827 = vadd.f32 %v1613, %v1744
      %v1828 = vadd.f32 %v1614, %v1747
      %v1829 = vadd.f32 %v1615, %v1750
      %v1830 = vadd.f32 %v1616, %v1753
      %v1831 = vadd.f32 %v1617, %v1756
      %v1832 = vadd.f32 %v1618, %v1759
      %v1833 = vadd.f32 %v1619, %v1762
      %v1834 = vadd.f32 %v1620, %v1765
      %v1835 = vadd.f32 %v1621, %v1768
      %v1836 = vadd.f32 %v1622, %v1771
      %v1837 = vadd.f32 %v1623, %v1774
      %v1838 = vadd.f32 %v1624, %v1777
      %v1839 = vadd.f32 %v1625, %v1780
      %v1840 = vadd.f32 %v1626, %v1783
      %v1841 = vadd.f32 %v1627, %v1786
      %v1842 = vadd.f32 %v1628, %v1789
      %v1843 = vadd.f32 %v1629, %v1792
      %v1844 = vadd.f32 %v1630, %v1795
      %v1845 = vadd.f32 %v1631, %v1798
      %v1846 = vadd.f32 %v1632, %v1801
      %v1847 = vadd.f32 %v1633, %v1804
      %v1848 = vadd.f32 %v1634, %v1807
      %v1849 = vadd.f32 %v1635, %v1810
      %v1850 = vadd.f32 %v1636, %v1813
      %v1851 = vld [vmem:[#allocation2 + $0x25] sm:$0xff]
      %v1852 = vld [vmem:[#allocation2 + $0x2d] sm:$0xff]
      %v1853 = vld [vmem:[#allocation2 + $0x35] sm:$0xff]
      %v1854 = vld [vmem:[#allocation2 + $0x3d] sm:$0xff]
      %v1855 = vld [vmem:[#allocation2 + $0x45] sm:$0xff]
      %v1856 = vld [vmem:[#allocation2 + $0x4d] sm:$0xff]
      %v1857 = vld [vmem:[#allocation2 + $0x55] sm:$0xff]
      %v1858 = vld [vmem:[#allocation2 + $0x5d] sm:$0xff]
      %v1859 = vld [vmem:[#allocation2 + $0x65] sm:$0xff]
      %v1860 = vld [vmem:[#allocation2 + $0x6d] sm:$0xff]
      %v1861 = vld [vmem:[#allocation2 + $0x75] sm:$0xff]
      %v1862 = vld [vmem:[#allocation2 + $0x7d] sm:$0xff]
      %v1863 = vld [vmem:[#allocation2 + $0x85] sm:$0xff]
      %v1864 = vld [vmem:[#allocation2 + $0x8d] sm:$0xff]
      %v1865 = vld [vmem:[#allocation2 + $0x95] sm:$0xff]
      %v1866 = vld [vmem:[#allocation2 + $0x9d] sm:$0xff]
      %v1867 = vld [vmem:[#allocation2 + $0xa5] sm:$0xff]
      %v1868 = vld [vmem:[#allocation2 + $0xad] sm:$0xff]
      %v1869 = vld [vmem:[#allocation2 + $0xb5] sm:$0xff]
      %v1870 = vld [vmem:[#allocation2 + $0xbd] sm:$0xff]
      %v1871 = vld [vmem:[#allocation2 + $0xc5] sm:$0xff]
      %v1872 = vld [vmem:[#allocation2 + $0xcd] sm:$0xff]
      %v1873 = vld [vmem:[#allocation2 + $0xd5] sm:$0xff]
      %v1874 = vld [vmem:[#allocation2 + $0xdd] sm:$0xff]
      %v1875 = vld [vmem:[#allocation2 + $0xe5] sm:$0xff]
      %v1876 = vld [vmem:[#allocation2 + $0xed] sm:$0xff]
      %v1877 = vld [vmem:[#allocation2 + $0xf5] sm:$0xff]
      %v1878 = vld [vmem:[#allocation2 + $0xfd] sm:$0xff]
      %v1879 = vld [vmem:[#allocation2 + $0x105] sm:$0xff]
      %v1880 = vld [vmem:[#allocation2 + $0x10d] sm:$0xff]
      %v1881 = vld [vmem:[#allocation2 + $0x115] sm:$0xff]
      %v1882 = vld [vmem:[#allocation2 + $0x11d] sm:$0xff]
      %v1883 = vld [vmem:[#allocation2 + $0x125] sm:$0xff]
      %v1884 = vld [vmem:[#allocation2 + $0x12d] sm:$0xff]
      %v1885 = vld [vmem:[#allocation2 + $0x135] sm:$0xff]
      %v1886 = vld [vmem:[#allocation2 + $0x13d] sm:$0xff]
      %s1887 = scalar_lea.vmem %s3, 896
      %v1888 = vld [vmem:[%s1887] sm:$0xff]
      %v1889 = vld [vmem:[%s1887 + $0x8] sm:$0xff]
      %v1890 = vld [vmem:[%s1887 + $0x10] sm:$0xff]
      %v1891 = vld [vmem:[%s1887 + $0x18] sm:$0xff]
      %v1892 = vld [vmem:[%s1887 + $0x20] sm:$0xff]
      %v1893 = vld [vmem:[%s1887 + $0x28] sm:$0xff]
      %v1894 = vld [vmem:[%s1887 + $0x30] sm:$0xff]
      %v1895 = vld [vmem:[%s1887 + $0x38] sm:$0xff]
      %v1896 = vld [vmem:[%s1887 + $0x40] sm:$0xff]
      %v1897 = vld [vmem:[%s1887 + $0x48] sm:$0xff]
      %v1898 = vld [vmem:[%s1887 + $0x50] sm:$0xff]
      %v1899 = vld [vmem:[%s1887 + $0x58] sm:$0xff]
      %v1900 = vld [vmem:[%s1887 + $0x60] sm:$0xff]
      %v1901 = vld [vmem:[%s1887 + $0x68] sm:$0xff]
      %v1902 = vld [vmem:[%s1887 + $0x70] sm:$0xff]
      %v1903 = vld [vmem:[%s1887 + $0x78] sm:$0xff]
      %1904 = vmatpush.msra.mxu0 %v1903
      %1905 = vmatpush.msra.mxu0 %v1902
      %1906 = vmatpush.msra.mxu0 %v1901
      %1907 = vmatpush.msra.mxu0 %v1900
      %1908 = vmatpush.msra.mxu0 %v1899
      %1909 = vmatpush.msra.mxu0 %v1898
      %1910 = vmatpush.msra.mxu0 %v1897
      %1911 = vmatpush.msra.mxu0 %v1896
      %1912 = vmatpush.msra.mxu0 %v1895
      %1913 = vmatpush.msra.mxu0 %v1894
      %1914 = vmatpush.msra.mxu0 %v1893
      %1915 = vmatpush.msra.mxu0 %v1892
      %1916 = vmatpush.msra.mxu0 %v1891
      %1917 = vmatpush.msra.mxu0 %v1890
      %1918 = vmatpush.msra.mxu0 %v1889
      %1919 = vmatpush.msra.mxu0 %v1888
      %1920 = vmatmul.f32.gmra.mxu0 %v1851
      %v1921 = vpop.f32.mrf.mxu0
      %v1922 = vadd.f32 0.0, %v1921
      %1923 = vmatmul.f32.gmra.mxu0 %v1852
      %v1924 = vpop.f32.mrf.mxu0
      %v1925 = vadd.f32 0.0, %v1924
      %1926 = vmatmul.f32.gmra.mxu0 %v1853
      %v1927 = vpop.f32.mrf.mxu0
      %v1928 = vadd.f32 0.0, %v1927
      %1929 = vmatmul.f32.gmra.mxu0 %v1854
      %v1930 = vpop.f32.mrf.mxu0
      %v1931 = vadd.f32 0.0, %v1930
      %1932 = vmatmul.f32.gmra.mxu0 %v1855
      %v1933 = vpop.f32.mrf.mxu0
      %v1934 = vadd.f32 0.0, %v1933
      %1935 = vmatmul.f32.gmra.mxu0 %v1856
      %v1936 = vpop.f32.mrf.mxu0
      %v1937 = vadd.f32 0.0, %v1936
      %1938 = vmatmul.f32.gmra.mxu0 %v1857
      %v1939 = vpop.f32.mrf.mxu0
      %v1940 = vadd.f32 0.0, %v1939
      %1941 = vmatmul.f32.gmra.mxu0 %v1858
      %v1942 = vpop.f32.mrf.mxu0
      %v1943 = vadd.f32 0.0, %v1942
      %1944 = vmatmul.f32.gmra.mxu0 %v1859
      %v1945 = vpop.f32.mrf.mxu0
      %v1946 = vadd.f32 0.0, %v1945
      %1947 = vmatmul.f32.gmra.mxu0 %v1860
      %v1948 = vpop.f32.mrf.mxu0
      %v1949 = vadd.f32 0.0, %v1948
      %1950 = vmatmul.f32.gmra.mxu0 %v1861
      %v1951 = vpop.f32.mrf.mxu0
      %v1952 = vadd.f32 0.0, %v1951
      %1953 = vmatmul.f32.gmra.mxu0 %v1862
      %v1954 = vpop.f32.mrf.mxu0
      %v1955 = vadd.f32 0.0, %v1954
      %1956 = vmatmul.f32.gmra.mxu0 %v1863
      %v1957 = vpop.f32.mrf.mxu0
      %v1958 = vadd.f32 0.0, %v1957
      %1959 = vmatmul.f32.gmra.mxu0 %v1864
      %v1960 = vpop.f32.mrf.mxu0
      %v1961 = vadd.f32 0.0, %v1960
      %1962 = vmatmul.f32.gmra.mxu0 %v1865
      %v1963 = vpop.f32.mrf.mxu0
      %v1964 = vadd.f32 0.0, %v1963
      %1965 = vmatmul.f32.gmra.mxu0 %v1866
      %v1966 = vpop.f32.mrf.mxu0
      %v1967 = vadd.f32 0.0, %v1966
      %1968 = vmatmul.f32.gmra.mxu0 %v1867
      %v1969 = vpop.f32.mrf.mxu0
      %v1970 = vadd.f32 0.0, %v1969
      %1971 = vmatmul.f32.gmra.mxu0 %v1868
      %v1972 = vpop.f32.mrf.mxu0
      %v1973 = vadd.f32 0.0, %v1972
      %1974 = vmatmul.f32.gmra.mxu0 %v1869
      %v1975 = vpop.f32.mrf.mxu0
      %v1976 = vadd.f32 0.0, %v1975
      %1977 = vmatmul.f32.gmra.mxu0 %v1870
      %v1978 = vpop.f32.mrf.mxu0
      %v1979 = vadd.f32 0.0, %v1978
      %1980 = vmatmul.f32.gmra.mxu0 %v1871
      %v1981 = vpop.f32.mrf.mxu0
      %v1982 = vadd.f32 0.0, %v1981
      %1983 = vmatmul.f32.gmra.mxu0 %v1872
      %v1984 = vpop.f32.mrf.mxu0
      %v1985 = vadd.f32 0.0, %v1984
      %1986 = vmatmul.f32.gmra.mxu0 %v1873
      %v1987 = vpop.f32.mrf.mxu0
      %v1988 = vadd.f32 0.0, %v1987
      %1989 = vmatmul.f32.gmra.mxu0 %v1874
      %v1990 = vpop.f32.mrf.mxu0
      %v1991 = vadd.f32 0.0, %v1990
      %1992 = vmatmul.f32.gmra.mxu0 %v1875
      %v1993 = vpop.f32.mrf.mxu0
      %v1994 = vadd.f32 0.0, %v1993
      %1995 = vmatmul.f32.gmra.mxu0 %v1876
      %v1996 = vpop.f32.mrf.mxu0
      %v1997 = vadd.f32 0.0, %v1996
      %1998 = vmatmul.f32.gmra.mxu0 %v1877
      %v1999 = vpop.f32.mrf.mxu0
      %v2000 = vadd.f32 0.0, %v1999
      %2001 = vmatmul.f32.gmra.mxu0 %v1878
      %v2002 = vpop.f32.mrf.mxu0
      %v2003 = vadd.f32 0.0, %v2002
      %2004 = vmatmul.f32.gmra.mxu0 %v1879
      %v2005 = vpop.f32.mrf.mxu0
      %v2006 = vadd.f32 0.0, %v2005
      %2007 = vmatmul.f32.gmra.mxu0 %v1880
      %v2008 = vpop.f32.mrf.mxu0
      %v2009 = vadd.f32 0.0, %v2008
      %2010 = vmatmul.f32.gmra.mxu0 %v1881
      %v2011 = vpop.f32.mrf.mxu0
      %v2012 = vadd.f32 0.0, %v2011
      %2013 = vmatmul.f32.gmra.mxu0 %v1882
      %v2014 = vpop.f32.mrf.mxu0
      %v2015 = vadd.f32 0.0, %v2014
      %2016 = vmatmul.f32.gmra.mxu0 %v1883
      %v2017 = vpop.f32.mrf.mxu0
      %v2018 = vadd.f32 0.0, %v2017
      %2019 = vmatmul.f32.gmra.mxu0 %v1884
      %v2020 = vpop.f32.mrf.mxu0
      %v2021 = vadd.f32 0.0, %v2020
      %2022 = vmatmul.f32.gmra.mxu0 %v1885
      %v2023 = vpop.f32.mrf.mxu0
      %v2024 = vadd.f32 0.0, %v2023
      %2025 = vmatmul.f32.gmra.mxu0 %v1886
      %v2026 = vpop.f32.mrf.mxu0
      %v2027 = vadd.f32 0.0, %v2026
      %2028 = vdwg.mxu0
      %v2029 = vadd.f32 %v1815, %v1922
      %v2030 = vadd.f32 %v1816, %v1925
      %v2031 = vadd.f32 %v1817, %v1928
      %v2032 = vadd.f32 %v1818, %v1931
      %v2033 = vadd.f32 %v1819, %v1934
      %v2034 = vadd.f32 %v1820, %v1937
      %v2035 = vadd.f32 %v1821, %v1940
      %v2036 = vadd.f32 %v1822, %v1943
      %v2037 = vadd.f32 %v1823, %v1946
      %v2038 = vadd.f32 %v1824, %v1949
      %v2039 = vadd.f32 %v1825, %v1952
      %v2040 = vadd.f32 %v1826, %v1955
      %v2041 = vadd.f32 %v1827, %v1958
      %v2042 = vadd.f32 %v1828, %v1961
      %v2043 = vadd.f32 %v1829, %v1964
      %v2044 = vadd.f32 %v1830, %v1967
      %v2045 = vadd.f32 %v1831, %v1970
      %v2046 = vadd.f32 %v1832, %v1973
      %v2047 = vadd.f32 %v1833, %v1976
      %v2048 = vadd.f32 %v1834, %v1979
      %v2049 = vadd.f32 %v1835, %v1982
      %v2050 = vadd.f32 %v1836, %v1985
      %v2051 = vadd.f32 %v1837, %v1988
      %v2052 = vadd.f32 %v1838, %v1991
      %v2053 = vadd.f32 %v1839, %v1994
      %v2054 = vadd.f32 %v1840, %v1997
      %v2055 = vadd.f32 %v1841, %v2000
      %v2056 = vadd.f32 %v1842, %v2003
      %v2057 = vadd.f32 %v1843, %v2006
      %v2058 = vadd.f32 %v1844, %v2009
      %v2059 = vadd.f32 %v1845, %v2012
      %v2060 = vadd.f32 %v1846, %v2015
      %v2061 = vadd.f32 %v1847, %v2018
      %v2062 = vadd.f32 %v1848, %v2021
      %v2063 = vadd.f32 %v1849, %v2024
      %v2064 = vadd.f32 %v1850, %v2027
      %v2065 = vld [vmem:[#allocation2 + $0x26] sm:$0xff]
      %v2066 = vld [vmem:[#allocation2 + $0x2e] sm:$0xff]
      %v2067 = vld [vmem:[#allocation2 + $0x36] sm:$0xff]
      %v2068 = vld [vmem:[#allocation2 + $0x3e] sm:$0xff]
      %v2069 = vld [vmem:[#allocation2 + $0x46] sm:$0xff]
      %v2070 = vld [vmem:[#allocation2 + $0x4e] sm:$0xff]
      %v2071 = vld [vmem:[#allocation2 + $0x56] sm:$0xff]
      %v2072 = vld [vmem:[#allocation2 + $0x5e] sm:$0xff]
      %v2073 = vld [vmem:[#allocation2 + $0x66] sm:$0xff]
      %v2074 = vld [vmem:[#allocation2 + $0x6e] sm:$0xff]
      %v2075 = vld [vmem:[#allocation2 + $0x76] sm:$0xff]
      %v2076 = vld [vmem:[#allocation2 + $0x7e] sm:$0xff]
      %v2077 = vld [vmem:[#allocation2 + $0x86] sm:$0xff]
      %v2078 = vld [vmem:[#allocation2 + $0x8e] sm:$0xff]
      %v2079 = vld [vmem:[#allocation2 + $0x96] sm:$0xff]
      %v2080 = vld [vmem:[#allocation2 + $0x9e] sm:$0xff]
      %v2081 = vld [vmem:[#allocation2 + $0xa6] sm:$0xff]
      %v2082 = vld [vmem:[#allocation2 + $0xae] sm:$0xff]
      %v2083 = vld [vmem:[#allocation2 + $0xb6] sm:$0xff]
      %v2084 = vld [vmem:[#allocation2 + $0xbe] sm:$0xff]
      %v2085 = vld [vmem:[#allocation2 + $0xc6] sm:$0xff]
      %v2086 = vld [vmem:[#allocation2 + $0xce] sm:$0xff]
      %v2087 = vld [vmem:[#allocation2 + $0xd6] sm:$0xff]
      %v2088 = vld [vmem:[#allocation2 + $0xde] sm:$0xff]
      %v2089 = vld [vmem:[#allocation2 + $0xe6] sm:$0xff]
      %v2090 = vld [vmem:[#allocation2 + $0xee] sm:$0xff]
      %v2091 = vld [vmem:[#allocation2 + $0xf6] sm:$0xff]
      %v2092 = vld [vmem:[#allocation2 + $0xfe] sm:$0xff]
      %v2093 = vld [vmem:[#allocation2 + $0x106] sm:$0xff]
      %v2094 = vld [vmem:[#allocation2 + $0x10e] sm:$0xff]
      %v2095 = vld [vmem:[#allocation2 + $0x116] sm:$0xff]
      %v2096 = vld [vmem:[#allocation2 + $0x11e] sm:$0xff]
      %v2097 = vld [vmem:[#allocation2 + $0x126] sm:$0xff]
      %v2098 = vld [vmem:[#allocation2 + $0x12e] sm:$0xff]
      %v2099 = vld [vmem:[#allocation2 + $0x136] sm:$0xff]
      %v2100 = vld [vmem:[#allocation2 + $0x13e] sm:$0xff]
      %s2101 = scalar_lea.vmem %s3, 1024
      %v2102 = vld [vmem:[%s2101] sm:$0xff]
      %v2103 = vld [vmem:[%s2101 + $0x8] sm:$0xff]
      %v2104 = vld [vmem:[%s2101 + $0x10] sm:$0xff]
      %v2105 = vld [vmem:[%s2101 + $0x18] sm:$0xff]
      %v2106 = vld [vmem:[%s2101 + $0x20] sm:$0xff]
      %v2107 = vld [vmem:[%s2101 + $0x28] sm:$0xff]
      %v2108 = vld [vmem:[%s2101 + $0x30] sm:$0xff]
      %v2109 = vld [vmem:[%s2101 + $0x38] sm:$0xff]
      %v2110 = vld [vmem:[%s2101 + $0x40] sm:$0xff]
      %v2111 = vld [vmem:[%s2101 + $0x48] sm:$0xff]
      %v2112 = vld [vmem:[%s2101 + $0x50] sm:$0xff]
      %v2113 = vld [vmem:[%s2101 + $0x58] sm:$0xff]
      %v2114 = vld [vmem:[%s2101 + $0x60] sm:$0xff]
      %v2115 = vld [vmem:[%s2101 + $0x68] sm:$0xff]
      %v2116 = vld [vmem:[%s2101 + $0x70] sm:$0xff]
      %v2117 = vld [vmem:[%s2101 + $0x78] sm:$0xff]
      %2118 = vmatpush.msra.mxu0 %v2117
      %2119 = vmatpush.msra.mxu0 %v2116
      %2120 = vmatpush.msra.mxu0 %v2115
      %2121 = vmatpush.msra.mxu0 %v2114
      %2122 = vmatpush.msra.mxu0 %v2113
      %2123 = vmatpush.msra.mxu0 %v2112
      %2124 = vmatpush.msra.mxu0 %v2111
      %2125 = vmatpush.msra.mxu0 %v2110
      %2126 = vmatpush.msra.mxu0 %v2109
      %2127 = vmatpush.msra.mxu0 %v2108
      %2128 = vmatpush.msra.mxu0 %v2107
      %2129 = vmatpush.msra.mxu0 %v2106
      %2130 = vmatpush.msra.mxu0 %v2105
      %2131 = vmatpush.msra.mxu0 %v2104
      %2132 = vmatpush.msra.mxu0 %v2103
      %2133 = vmatpush.msra.mxu0 %v2102
      %2134 = vmatmul.f32.gmra.mxu0 %v2065
      %v2135 = vpop.f32.mrf.mxu0
      %v2136 = vadd.f32 0.0, %v2135
      %2137 = vmatmul.f32.gmra.mxu0 %v2066
      %v2138 = vpop.f32.mrf.mxu0
      %v2139 = vadd.f32 0.0, %v2138
      %2140 = vmatmul.f32.gmra.mxu0 %v2067
      %v2141 = vpop.f32.mrf.mxu0
      %v2142 = vadd.f32 0.0, %v2141
      %2143 = vmatmul.f32.gmra.mxu0 %v2068
      %v2144 = vpop.f32.mrf.mxu0
      %v2145 = vadd.f32 0.0, %v2144
      %2146 = vmatmul.f32.gmra.mxu0 %v2069
      %v2147 = vpop.f32.mrf.mxu0
      %v2148 = vadd.f32 0.0, %v2147
      %2149 = vmatmul.f32.gmra.mxu0 %v2070
      %v2150 = vpop.f32.mrf.mxu0
      %v2151 = vadd.f32 0.0, %v2150
      %2152 = vmatmul.f32.gmra.mxu0 %v2071
      %v2153 = vpop.f32.mrf.mxu0
      %v2154 = vadd.f32 0.0, %v2153
      %2155 = vmatmul.f32.gmra.mxu0 %v2072
      %v2156 = vpop.f32.mrf.mxu0
      %v2157 = vadd.f32 0.0, %v2156
      %2158 = vmatmul.f32.gmra.mxu0 %v2073
      %v2159 = vpop.f32.mrf.mxu0
      %v2160 = vadd.f32 0.0, %v2159
      %2161 = vmatmul.f32.gmra.mxu0 %v2074
      %v2162 = vpop.f32.mrf.mxu0
      %v2163 = vadd.f32 0.0, %v2162
      %2164 = vmatmul.f32.gmra.mxu0 %v2075
      %v2165 = vpop.f32.mrf.mxu0
      %v2166 = vadd.f32 0.0, %v2165
      %2167 = vmatmul.f32.gmra.mxu0 %v2076
      %v2168 = vpop.f32.mrf.mxu0
      %v2169 = vadd.f32 0.0, %v2168
      %2170 = vmatmul.f32.gmra.mxu0 %v2077
      %v2171 = vpop.f32.mrf.mxu0
      %v2172 = vadd.f32 0.0, %v2171
      %2173 = vmatmul.f32.gmra.mxu0 %v2078
      %v2174 = vpop.f32.mrf.mxu0
      %v2175 = vadd.f32 0.0, %v2174
      %2176 = vmatmul.f32.gmra.mxu0 %v2079
      %v2177 = vpop.f32.mrf.mxu0
      %v2178 = vadd.f32 0.0, %v2177
      %2179 = vmatmul.f32.gmra.mxu0 %v2080
      %v2180 = vpop.f32.mrf.mxu0
      %v2181 = vadd.f32 0.0, %v2180
      %2182 = vmatmul.f32.gmra.mxu0 %v2081
      %v2183 = vpop.f32.mrf.mxu0
      %v2184 = vadd.f32 0.0, %v2183
      %2185 = vmatmul.f32.gmra.mxu0 %v2082
      %v2186 = vpop.f32.mrf.mxu0
      %v2187 = vadd.f32 0.0, %v2186
      %2188 = vmatmul.f32.gmra.mxu0 %v2083
      %v2189 = vpop.f32.mrf.mxu0
      %v2190 = vadd.f32 0.0, %v2189
      %2191 = vmatmul.f32.gmra.mxu0 %v2084
      %v2192 = vpop.f32.mrf.mxu0
      %v2193 = vadd.f32 0.0, %v2192
      %2194 = vmatmul.f32.gmra.mxu0 %v2085
      %v2195 = vpop.f32.mrf.mxu0
      %v2196 = vadd.f32 0.0, %v2195
      %2197 = vmatmul.f32.gmra.mxu0 %v2086
      %v2198 = vpop.f32.mrf.mxu0
      %v2199 = vadd.f32 0.0, %v2198
      %2200 = vmatmul.f32.gmra.mxu0 %v2087
      %v2201 = vpop.f32.mrf.mxu0
      %v2202 = vadd.f32 0.0, %v2201
      %2203 = vmatmul.f32.gmra.mxu0 %v2088
      %v2204 = vpop.f32.mrf.mxu0
      %v2205 = vadd.f32 0.0, %v2204
      %2206 = vmatmul.f32.gmra.mxu0 %v2089
      %v2207 = vpop.f32.mrf.mxu0
      %v2208 = vadd.f32 0.0, %v2207
      %2209 = vmatmul.f32.gmra.mxu0 %v2090
      %v2210 = vpop.f32.mrf.mxu0
      %v2211 = vadd.f32 0.0, %v2210
      %2212 = vmatmul.f32.gmra.mxu0 %v2091
      %v2213 = vpop.f32.mrf.mxu0
      %v2214 = vadd.f32 0.0, %v2213
      %2215 = vmatmul.f32.gmra.mxu0 %v2092
      %v2216 = vpop.f32.mrf.mxu0
      %v2217 = vadd.f32 0.0, %v2216
      %2218 = vmatmul.f32.gmra.mxu0 %v2093
      %v2219 = vpop.f32.mrf.mxu0
      %v2220 = vadd.f32 0.0, %v2219
      %2221 = vmatmul.f32.gmra.mxu0 %v2094
      %v2222 = vpop.f32.mrf.mxu0
      %v2223 = vadd.f32 0.0, %v2222
      %2224 = vmatmul.f32.gmra.mxu0 %v2095
      %v2225 = vpop.f32.mrf.mxu0
      %v2226 = vadd.f32 0.0, %v2225
      %2227 = vmatmul.f32.gmra.mxu0 %v2096
      %v2228 = vpop.f32.mrf.mxu0
      %v2229 = vadd.f32 0.0, %v2228
      %2230 = vmatmul.f32.gmra.mxu0 %v2097
      %v2231 = vpop.f32.mrf.mxu0
      %v2232 = vadd.f32 0.0, %v2231
      %2233 = vmatmul.f32.gmra.mxu0 %v2098
      %v2234 = vpop.f32.mrf.mxu0
      %v2235 = vadd.f32 0.0, %v2234
      %2236 = vmatmul.f32.gmra.mxu0 %v2099
      %v2237 = vpop.f32.mrf.mxu0
      %v2238 = vadd.f32 0.0, %v2237
      %2239 = vmatmul.f32.gmra.mxu0 %v2100
      %v2240 = vpop.f32.mrf.mxu0
      %v2241 = vadd.f32 0.0, %v2240
      %2242 = vdwg.mxu0
      %v2243 = vadd.f32 %v2029, %v2136
      %v2244 = vadd.f32 %v2030, %v2139
      %v2245 = vadd.f32 %v2031, %v2142
      %v2246 = vadd.f32 %v2032, %v2145
      %v2247 = vadd.f32 %v2033, %v2148
      %v2248 = vadd.f32 %v2034, %v2151
      %v2249 = vadd.f32 %v2035, %v2154
      %v2250 = vadd.f32 %v2036, %v2157
      %v2251 = vadd.f32 %v2037, %v2160
      %v2252 = vadd.f32 %v2038, %v2163
      %v2253 = vadd.f32 %v2039, %v2166
      %v2254 = vadd.f32 %v2040, %v2169
      %v2255 = vadd.f32 %v2041, %v2172
      %v2256 = vadd.f32 %v2042, %v2175
      %v2257 = vadd.f32 %v2043, %v2178
      %v2258 = vadd.f32 %v2044, %v2181
      %v2259 = vadd.f32 %v2045, %v2184
      %v2260 = vadd.f32 %v2046, %v2187
      %v2261 = vadd.f32 %v2047, %v2190
      %v2262 = vadd.f32 %v2048, %v2193
      %v2263 = vadd.f32 %v2049, %v2196
      %v2264 = vadd.f32 %v2050, %v2199
      %v2265 = vadd.f32 %v2051, %v2202
      %v2266 = vadd.f32 %v2052, %v2205
      %v2267 = vadd.f32 %v2053, %v2208
      %v2268 = vadd.f32 %v2054, %v2211
      %v2269 = vadd.f32 %v2055, %v2214
      %v2270 = vadd.f32 %v2056, %v2217
      %v2271 = vadd.f32 %v2057, %v2220
      %v2272 = vadd.f32 %v2058, %v2223
      %v2273 = vadd.f32 %v2059, %v2226
      %v2274 = vadd.f32 %v2060, %v2229
      %v2275 = vadd.f32 %v2061, %v2232
      %v2276 = vadd.f32 %v2062, %v2235
      %v2277 = vadd.f32 %v2063, %v2238
      %v2278 = vadd.f32 %v2064, %v2241
      %2279 = vst [vmem:[%s231] sm:$0xff] %v2243
      %2280 = vst [vmem:[%s231 + $0x8] sm:$0xff] %v2244
      %v2281 = vadd.f32 %v2243, %v2244
      %v2282 = vrot.slane %v2281, 4
      %v2283 = vadd.f32 %v2281, %v2282
      %v2284 = vrot.slane %v2283, 2
      %v2285 = vadd.f32 %v2283, %v2284
      %v2286 = vrot.slane %v2285, 1
      %v2287 = vadd.f32 %v2285, %v2286
      %v2288 = vadd.f32 %v2287, 0.0
      %v2289 = vmul.f32 %v2243, %v2243
      %v2290 = vmul.f32 %v2244, %v2244
      %v2291 = vadd.f32 %v2289, %v2290
      %v2292 = vrot.slane %v2291, 4
      %v2293 = vadd.f32 %v2291, %v2292
      %v2294 = vrot.slane %v2293, 2
      %v2295 = vadd.f32 %v2293, %v2294
      %v2296 = vrot.slane %v2295, 1
      %v2297 = vadd.f32 %v2295, %v2296
      %v2298 = vadd.f32 %v2297, 0.0
      %s2299 = scalar_lea.vmem %s231, 16
      %2300 = vst [vmem:[%s2299 - $0x2] sm:$0xfc] %v2245
      %2301 = vst [vmem:[%s2299 + $0x6] sm:$0xff] %v2246
      %2302 = vst [vmem:[%s2299 + $0xe] sm:$0x3] %v2247
      %vm2306 = vcmask 1045504
      %v2307 = vrot.slane %v2245, 2
      %v2308 = vrot.slane %v2246, 2
      %v2309 = vsel %vm2306, %v2307, %v2308
      %v2310 = vrot.slane %v2247, 2
      %v2311 = vsel %vm2306, %v2308, %v2310
      %v2314 = vadd.f32 %v2309, %v2311
      %v2315 = vrot.slane %v2314, 4
      %v2316 = vadd.f32 %v2314, %v2315
      %v2317 = vrot.slane %v2316, 2
      %v2318 = vadd.f32 %v2316, %v2317
      %v2319 = vrot.slane %v2318, 1
      %v2320 = vadd.f32 %v2318, %v2319
      %v2321 = vadd.f32 %v2288, %v2320
      %v2322 = vmul.f32 %v2245, %v2245
      %v2323 = vmul.f32 %v2246, %v2246
      %v2324 = vmul.f32 %v2247, %v2247
      %v2328 = vrot.slane %v2322, 2
      %v2329 = vrot.slane %v2323, 2
      %v2330 = vsel %vm2306, %v2328, %v2329
      %v2331 = vrot.slane %v2324, 2
      %v2332 = vsel %vm2306, %v2329, %v2331
      %v2335 = vadd.f32 %v2330, %v2332
      %v2336 = vrot.slane %v2335, 4
      %v2337 = vadd.f32 %v2335, %v2336
      %v2338 = vrot.slane %v2337, 2
      %v2339 = vadd.f32 %v2337, %v2338
      %v2340 = vrot.slane %v2339, 1
      %v2341 = vadd.f32 %v2339, %v2340
      %v2342 = vadd.f32 %v2298, %v2341
      %s2343 = scalar_lea.vmem %s231, 32
      %2344 = vst [vmem:[%s2343 - $0x4] sm:$0xf0] %v2247
      %2345 = vst [vmem:[%s2343 + $0x4] sm:$0xff] %v2248
      %2346 = vst [vmem:[%s2343 + $0xc] sm:$0xf] %v2249
      %vm2349 = vcmask 1043456
      %v2350 = vrot.slane %v2247, 4
      %v2351 = vrot.slane %v2248, 4
      %v2352 = vsel %vm2349, %v2350, %v2351
      %v2353 = vrot.slane %v2249, 4
      %v2354 = vsel %vm2349, %v2351, %v2353
      %v2357 = vadd.f32 %v2352, %v2354
      %v2358 = vrot.slane %v2357, 4
      %v2359 = vadd.f32 %v2357, %v2358
      %v2360 = vrot.slane %v2359, 2
      %v2361 = vadd.f32 %v2359, %v2360
      %v2362 = vrot.slane %v2361, 1
      %v2363 = vadd.f32 %v2361, %v2362
      %v2364 = vadd.f32 %v2321, %v2363
      %v2365 = vmul.f32 %v2248, %v2248
      %v2366 = vmul.f32 %v2249, %v2249
      %v2369 = vrot.slane %v2324, 4
      %v2370 = vrot.slane %v2365, 4
      %v2371 = vsel %vm2349, %v2369, %v2370
      %v2372 = vrot.slane %v2366, 4
      %v2373 = vsel %vm2349, %v2370, %v2372
      %v2376 = vadd.f32 %v2371, %v2373
      %v2377 = vrot.slane %v2376, 4
      %v2378 = vadd.f32 %v2376, %v2377
      %v2379 = vrot.slane %v2378, 2
      %v2380 = vadd.f32 %v2378, %v2379
      %v2381 = vrot.slane %v2380, 1
      %v2382 = vadd.f32 %v2380, %v2381
      %v2383 = vadd.f32 %v2342, %v2382
      %s2384 = scalar_lea.vmem %s231, 48
      %2385 = vst [vmem:[%s2384 - $0x6] sm:$0xc0] %v2249
      %2386 = vst [vmem:[%s2384 + $0x2] sm:$0xff] %v2250
      %2387 = vst [vmem:[%s2384 + $0xa] sm:$0x3f] %v2251
      %vm2390 = vcmask 1041408
      %v2391 = vrot.slane %v2249, 6
      %v2392 = vrot.slane %v2250, 6
      %v2393 = vsel %vm2390, %v2391, %v2392
      %v2394 = vrot.slane %v2251, 6
      %v2395 = vsel %vm2390, %v2392, %v2394
      %v2398 = vadd.f32 %v2393, %v2395
      %v2399 = vrot.slane %v2398, 4
      %v2400 = vadd.f32 %v2398, %v2399
      %v2401 = vrot.slane %v2400, 2
      %v2402 = vadd.f32 %v2400, %v2401
      %v2403 = vrot.slane %v2402, 1
      %v2404 = vadd.f32 %v2402, %v2403
      %v2405 = vadd.f32 %v2364, %v2404
      %v2406 = vmul.f32 %v2250, %v2250
      %v2407 = vmul.f32 %v2251, %v2251
      %v2410 = vrot.slane %v2366, 6
      %v2411 = vrot.slane %v2406, 6
      %v2412 = vsel %vm2390, %v2410, %v2411
      %v2413 = vrot.slane %v2407, 6
      %v2414 = vsel %vm2390, %v2411, %v2413
      %v2417 = vadd.f32 %v2412, %v2414
      %v2418 = vrot.slane %v2417, 4
      %v2419 = vadd.f32 %v2417, %v2418
      %v2420 = vrot.slane %v2419, 2
      %v2421 = vadd.f32 %v2419, %v2420
      %v2422 = vrot.slane %v2421, 1
      %v2423 = vadd.f32 %v2421, %v2422
      %v2424 = vadd.f32 %v2383, %v2423
      %s2425 = scalar_lea.vmem %s231, 64
      %2426 = vst [vmem:[%s2425] sm:$0xff] %v2252
      %2427 = vst [vmem:[%s2425 + $0x8] sm:$0xff] %v2253
      %v2428 = vadd.f32 %v2252, %v2253
      %v2429 = vrot.slane %v2428, 4
      %v2430 = vadd.f32 %v2428, %v2429
      %v2431 = vrot.slane %v2430, 2
      %v2432 = vadd.f32 %v2430, %v2431
      %v2433 = vrot.slane %v2432, 1
      %v2434 = vadd.f32 %v2432, %v2433
      %v2435 = vadd.f32 %v2405, %v2434
      %v2436 = vmul.f32 %v2252, %v2252
      %v2437 = vmul.f32 %v2253, %v2253
      %v2438 = vadd.f32 %v2436, %v2437
      %v2439 = vrot.slane %v2438, 4
      %v2440 = vadd.f32 %v2438, %v2439
      %v2441 = vrot.slane %v2440, 2
      %v2442 = vadd.f32 %v2440, %v2441
      %v2443 = vrot.slane %v2442, 1
      %v2444 = vadd.f32 %v2442, %v2443
      %v2445 = vadd.f32 %v2424, %v2444
      %s2446 = scalar_lea.vmem %s231, 80
      %2447 = vst [vmem:[%s2446 - $0x2] sm:$0xfc] %v2254
      %2448 = vst [vmem:[%s2446 + $0x6] sm:$0xff] %v2255
      %2449 = vst [vmem:[%s2446 + $0xe] sm:$0x3] %v2256
      %v2453 = vrot.slane %v2254, 2
      %v2454 = vrot.slane %v2255, 2
      %v2455 = vsel %vm2306, %v2453, %v2454
      %v2456 = vrot.slane %v2256, 2
      %v2457 = vsel %vm2306, %v2454, %v2456
      %v2460 = vadd.f32 %v2455, %v2457
      %v2461 = vrot.slane %v2460, 4
      %v2462 = vadd.f32 %v2460, %v2461
      %v2463 = vrot.slane %v2462, 2
      %v2464 = vadd.f32 %v2462, %v2463
      %v2465 = vrot.slane %v2464, 1
      %v2466 = vadd.f32 %v2464, %v2465
      %v2467 = vadd.f32 %v2435, %v2466
      %v2468 = vmul.f32 %v2254, %v2254
      %v2469 = vmul.f32 %v2255, %v2255
      %v2470 = vmul.f32 %v2256, %v2256
      %v2474 = vrot.slane %v2468, 2
      %v2475 = vrot.slane %v2469, 2
      %v2476 = vsel %vm2306, %v2474, %v2475
      %v2477 = vrot.slane %v2470, 2
      %v2478 = vsel %vm2306, %v2475, %v2477
      %v2481 = vadd.f32 %v2476, %v2478
      %v2482 = vrot.slane %v2481, 4
      %v2483 = vadd.f32 %v2481, %v2482
      %v2484 = vrot.slane %v2483, 2
      %v2485 = vadd.f32 %v2483, %v2484
      %v2486 = vrot.slane %v2485, 1
      %v2487 = vadd.f32 %v2485, %v2486
      %v2488 = vadd.f32 %v2445, %v2487
      %s2489 = scalar_lea.vmem %s231, 96
      %2490 = vst [vmem:[%s2489 - $0x4] sm:$0xf0] %v2256
      %2491 = vst [vmem:[%s2489 + $0x4] sm:$0xff] %v2257
      %2492 = vst [vmem:[%s2489 + $0xc] sm:$0xf] %v2258
      %v2495 = vrot.slane %v2256, 4
      %v2496 = vrot.slane %v2257, 4
      %v2497 = vsel %vm2349, %v2495, %v2496
      %v2498 = vrot.slane %v2258, 4
      %v2499 = vsel %vm2349, %v2496, %v2498
      %v2502 = vadd.f32 %v2497, %v2499
      %v2503 = vrot.slane %v2502, 4
      %v2504 = vadd.f32 %v2502, %v2503
      %v2505 = vrot.slane %v2504, 2
      %v2506 = vadd.f32 %v2504, %v2505
      %v2507 = vrot.slane %v2506, 1
      %v2508 = vadd.f32 %v2506, %v2507
      %v2509 = vadd.f32 %v2467, %v2508
      %v2510 = vmul.f32 %v2257, %v2257
      %v2511 = vmul.f32 %v2258, %v2258
      %v2514 = vrot.slane %v2470, 4
      %v2515 = vrot.slane %v2510, 4
      %v2516 = vsel %vm2349, %v2514, %v2515
      %v2517 = vrot.slane %v2511, 4
      %v2518 = vsel %vm2349, %v2515, %v2517
      %v2521 = vadd.f32 %v2516, %v2518
      %v2522 = vrot.slane %v2521, 4
      %v2523 = vadd.f32 %v2521, %v2522
      %v2524 = vrot.slane %v2523, 2
      %v2525 = vadd.f32 %v2523, %v2524
      %v2526 = vrot.slane %v2525, 1
      %v2527 = vadd.f32 %v2525, %v2526
      %v2528 = vadd.f32 %v2488, %v2527
      %s2529 = scalar_lea.vmem %s231, 112
      %2530 = vst [vmem:[%s2529 - $0x6] sm:$0xc0] %v2258
      %2531 = vst [vmem:[%s2529 + $0x2] sm:$0xff] %v2259
      %2532 = vst [vmem:[%s2529 + $0xa] sm:$0x3f] %v2260
      %v2535 = vrot.slane %v2258, 6
      %v2536 = vrot.slane %v2259, 6
      %v2537 = vsel %vm2390, %v2535, %v2536
      %v2538 = vrot.slane %v2260, 6
      %v2539 = vsel %vm2390, %v2536, %v2538
      %v2542 = vadd.f32 %v2537, %v2539
      %v2543 = vrot.slane %v2542, 4
      %v2544 = vadd.f32 %v2542, %v2543
      %v2545 = vrot.slane %v2544, 2
      %v2546 = vadd.f32 %v2544, %v2545
      %v2547 = vrot.slane %v2546, 1
      %v2548 = vadd.f32 %v2546, %v2547
      %v2549 = vadd.f32 %v2509, %v2548
      %v2550 = vmul.f32 %v2259, %v2259
      %v2551 = vmul.f32 %v2260, %v2260
      %v2554 = vrot.slane %v2511, 6
      %v2555 = vrot.slane %v2550, 6
      %v2556 = vsel %vm2390, %v2554, %v2555
      %v2557 = vrot.slane %v2551, 6
      %v2558 = vsel %vm2390, %v2555, %v2557
      %v2561 = vadd.f32 %v2556, %v2558
      %v2562 = vrot.slane %v2561, 4
      %v2563 = vadd.f32 %v2561, %v2562
      %v2564 = vrot.slane %v2563, 2
      %v2565 = vadd.f32 %v2563, %v2564
      %v2566 = vrot.slane %v2565, 1
      %v2567 = vadd.f32 %v2565, %v2566
      %v2568 = vadd.f32 %v2528, %v2567
      %s2569 = scalar_lea.vmem %s231, 128
      %2570 = vst [vmem:[%s2569] sm:$0xff] %v2261
      %2571 = vst [vmem:[%s2569 + $0x8] sm:$0xff] %v2262
      %v2572 = vadd.f32 %v2261, %v2262
      %v2573 = vrot.slane %v2572, 4
      %v2574 = vadd.f32 %v2572, %v2573
      %v2575 = vrot.slane %v2574, 2
      %v2576 = vadd.f32 %v2574, %v2575
      %v2577 = vrot.slane %v2576, 1
      %v2578 = vadd.f32 %v2576, %v2577
      %v2579 = vadd.f32 %v2549, %v2578
      %v2580 = vmul.f32 %v2261, %v2261
      %v2581 = vmul.f32 %v2262, %v2262
      %v2582 = vadd.f32 %v2580, %v2581
      %v2583 = vrot.slane %v2582, 4
      %v2584 = vadd.f32 %v2582, %v2583
      %v2585 = vrot.slane %v2584, 2
      %v2586 = vadd.f32 %v2584, %v2585
      %v2587 = vrot.slane %v2586, 1
      %v2588 = vadd.f32 %v2586, %v2587
      %v2589 = vadd.f32 %v2568, %v2588
      %s2590 = scalar_lea.vmem %s231, 144
      %2591 = vst [vmem:[%s2590 - $0x2] sm:$0xfc] %v2263
      %2592 = vst [vmem:[%s2590 + $0x6] sm:$0xff] %v2264
      %2593 = vst [vmem:[%s2590 + $0xe] sm:$0x3] %v2265
      %v2597 = vrot.slane %v2263, 2
      %v2598 = vrot.slane %v2264, 2
      %v2599 = vsel %vm2306, %v2597, %v2598
      %v2600 = vrot.slane %v2265, 2
      %v2601 = vsel %vm2306, %v2598, %v2600
      %v2604 = vadd.f32 %v2599, %v2601
      %v2605 = vrot.slane %v2604, 4
      %v2606 = vadd.f32 %v2604, %v2605
      %v2607 = vrot.slane %v2606, 2
      %v2608 = vadd.f32 %v2606, %v2607
      %v2609 = vrot.slane %v2608, 1
      %v2610 = vadd.f32 %v2608, %v2609
      %v2611 = vadd.f32 %v2579, %v2610
      %v2612 = vmul.f32 %v2263, %v2263
      %v2613 = vmul.f32 %v2264, %v2264
      %v2614 = vmul.f32 %v2265, %v2265
      %v2618 = vrot.slane %v2612, 2
      %v2619 = vrot.slane %v2613, 2
      %v2620 = vsel %vm2306, %v2618, %v2619
      %v2621 = vrot.slane %v2614, 2
      %v2622 = vsel %vm2306, %v2619, %v2621
      %v2625 = vadd.f32 %v2620, %v2622
      %v2626 = vrot.slane %v2625, 4
      %v2627 = vadd.f32 %v2625, %v2626
      %v2628 = vrot.slane %v2627, 2
      %v2629 = vadd.f32 %v2627, %v2628
      %v2630 = vrot.slane %v2629, 1
      %v2631 = vadd.f32 %v2629, %v2630
      %v2632 = vadd.f32 %v2589, %v2631
      %s2633 = scalar_lea.vmem %s231, 160
      %2634 = vst [vmem:[%s2633 - $0x4] sm:$0xf0] %v2265
      %2635 = vst [vmem:[%s2633 + $0x4] sm:$0xff] %v2266
      %2636 = vst [vmem:[%s2633 + $0xc] sm:$0xf] %v2267
      %v2639 = vrot.slane %v2265, 4
      %v2640 = vrot.slane %v2266, 4
      %v2641 = vsel %vm2349, %v2639, %v2640
      %v2642 = vrot.slane %v2267, 4
      %v2643 = vsel %vm2349, %v2640, %v2642
      %v2646 = vadd.f32 %v2641, %v2643
      %v2647 = vrot.slane %v2646, 4
      %v2648 = vadd.f32 %v2646, %v2647
      %v2649 = vrot.slane %v2648, 2
      %v2650 = vadd.f32 %v2648, %v2649
      %v2651 = vrot.slane %v2650, 1
      %v2652 = vadd.f32 %v2650, %v2651
      %v2653 = vadd.f32 %v2611, %v2652
      %v2654 = vmul.f32 %v2266, %v2266
      %v2655 = vmul.f32 %v2267, %v2267
      %v2658 = vrot.slane %v2614, 4
      %v2659 = vrot.slane %v2654, 4
      %v2660 = vsel %vm2349, %v2658, %v2659
      %v2661 = vrot.slane %v2655, 4
      %v2662 = vsel %vm2349, %v2659, %v2661
      %v2665 = vadd.f32 %v2660, %v2662
      %v2666 = vrot.slane %v2665, 4
      %v2667 = vadd.f32 %v2665, %v2666
      %v2668 = vrot.slane %v2667, 2
      %v2669 = vadd.f32 %v2667, %v2668
      %v2670 = vrot.slane %v2669, 1
      %v2671 = vadd.f32 %v2669, %v2670
      %v2672 = vadd.f32 %v2632, %v2671
      %s2673 = scalar_lea.vmem %s231, 176
      %2674 = vst [vmem:[%s2673 - $0x6] sm:$0xc0] %v2267
      %2675 = vst [vmem:[%s2673 + $0x2] sm:$0xff] %v2268
      %2676 = vst [vmem:[%s2673 + $0xa] sm:$0x3f] %v2269
      %v2679 = vrot.slane %v2267, 6
      %v2680 = vrot.slane %v2268, 6
      %v2681 = vsel %vm2390, %v2679, %v2680
      %v2682 = vrot.slane %v2269, 6
      %v2683 = vsel %vm2390, %v2680, %v2682
      %v2686 = vadd.f32 %v2681, %v2683
      %v2687 = vrot.slane %v2686, 4
      %v2688 = vadd.f32 %v2686, %v2687
      %v2689 = vrot.slane %v2688, 2
      %v2690 = vadd.f32 %v2688, %v2689
      %v2691 = vrot.slane %v2690, 1
      %v2692 = vadd.f32 %v2690, %v2691
      %v2693 = vadd.f32 %v2653, %v2692
      %v2694 = vmul.f32 %v2268, %v2268
      %v2695 = vmul.f32 %v2269, %v2269
      %v2698 = vrot.slane %v2655, 6
      %v2699 = vrot.slane %v2694, 6
      %v2700 = vsel %vm2390, %v2698, %v2699
      %v2701 = vrot.slane %v2695, 6
      %v2702 = vsel %vm2390, %v2699, %v2701
      %v2705 = vadd.f32 %v2700, %v2702
      %v2706 = vrot.slane %v2705, 4
      %v2707 = vadd.f32 %v2705, %v2706
      %v2708 = vrot.slane %v2707, 2
      %v2709 = vadd.f32 %v2707, %v2708
      %v2710 = vrot.slane %v2709, 1
      %v2711 = vadd.f32 %v2709, %v2710
      %v2712 = vadd.f32 %v2672, %v2711
      %s2713 = scalar_lea.vmem %s231, 192
      %2714 = vst [vmem:[%s2713] sm:$0xff] %v2270
      %2715 = vst [vmem:[%s2713 + $0x8] sm:$0xff] %v2271
      %v2716 = vadd.f32 %v2270, %v2271
      %v2717 = vrot.slane %v2716, 4
      %v2718 = vadd.f32 %v2716, %v2717
      %v2719 = vrot.slane %v2718, 2
      %v2720 = vadd.f32 %v2718, %v2719
      %v2721 = vrot.slane %v2720, 1
      %v2722 = vadd.f32 %v2720, %v2721
      %v2723 = vadd.f32 %v2693, %v2722
      %v2724 = vmul.f32 %v2270, %v2270
      %v2725 = vmul.f32 %v2271, %v2271
      %v2726 = vadd.f32 %v2724, %v2725
      %v2727 = vrot.slane %v2726, 4
      %v2728 = vadd.f32 %v2726, %v2727
      %v2729 = vrot.slane %v2728, 2
      %v2730 = vadd.f32 %v2728, %v2729
      %v2731 = vrot.slane %v2730, 1
      %v2732 = vadd.f32 %v2730, %v2731
      %v2733 = vadd.f32 %v2712, %v2732
      %s2734 = scalar_lea.vmem %s231, 208
      %2735 = vst [vmem:[%s2734 - $0x2] sm:$0xfc] %v2272
      %2736 = vst [vmem:[%s2734 + $0x6] sm:$0xff] %v2273
      %2737 = vst [vmem:[%s2734 + $0xe] sm:$0x3] %v2274
      %v2741 = vrot.slane %v2272, 2
      %v2742 = vrot.slane %v2273, 2
      %v2743 = vsel %vm2306, %v2741, %v2742
      %v2744 = vrot.slane %v2274, 2
      %v2745 = vsel %vm2306, %v2742, %v2744
      %v2748 = vadd.f32 %v2743, %v2745
      %v2749 = vrot.slane %v2748, 4
      %v2750 = vadd.f32 %v2748, %v2749
      %v2751 = vrot.slane %v2750, 2
      %v2752 = vadd.f32 %v2750, %v2751
      %v2753 = vrot.slane %v2752, 1
      %v2754 = vadd.f32 %v2752, %v2753
      %v2755 = vadd.f32 %v2723, %v2754
      %v2756 = vmul.f32 %v2272, %v2272
      %v2757 = vmul.f32 %v2273, %v2273
      %v2758 = vmul.f32 %v2274, %v2274
      %v2762 = vrot.slane %v2756, 2
      %v2763 = vrot.slane %v2757, 2
      %v2764 = vsel %vm2306, %v2762, %v2763
      %v2765 = vrot.slane %v2758, 2
      %v2766 = vsel %vm2306, %v2763, %v2765
      %v2769 = vadd.f32 %v2764, %v2766
      %v2770 = vrot.slane %v2769, 4
      %v2771 = vadd.f32 %v2769, %v2770
      %v2772 = vrot.slane %v2771, 2
      %v2773 = vadd.f32 %v2771, %v2772
      %v2774 = vrot.slane %v2773, 1
      %v2775 = vadd.f32 %v2773, %v2774
      %v2776 = vadd.f32 %v2733, %v2775
      %s2777 = scalar_lea.vmem %s231, 224
      %2778 = vst [vmem:[%s2777 - $0x4] sm:$0xf0] %v2274
      %2779 = vst [vmem:[%s2777 + $0x4] sm:$0xff] %v2275
      %2780 = vst [vmem:[%s2777 + $0xc] sm:$0xf] %v2276
      %v2783 = vrot.slane %v2274, 4
      %v2784 = vrot.slane %v2275, 4
      %v2785 = vsel %vm2349, %v2783, %v2784
      %v2786 = vrot.slane %v2276, 4
      %v2787 = vsel %vm2349, %v2784, %v2786
      %v2790 = vadd.f32 %v2785, %v2787
      %v2791 = vrot.slane %v2790, 4
      %v2792 = vadd.f32 %v2790, %v2791
      %v2793 = vrot.slane %v2792, 2
      %v2794 = vadd.f32 %v2792, %v2793
      %v2795 = vrot.slane %v2794, 1
      %v2796 = vadd.f32 %v2794, %v2795
      %v2797 = vadd.f32 %v2755, %v2796
      %v2798 = vmul.f32 %v2275, %v2275
      %v2799 = vmul.f32 %v2276, %v2276
      %v2802 = vrot.slane %v2758, 4
      %v2803 = vrot.slane %v2798, 4
      %v2804 = vsel %vm2349, %v2802, %v2803
      %v2805 = vrot.slane %v2799, 4
      %v2806 = vsel %vm2349, %v2803, %v2805
      %v2809 = vadd.f32 %v2804, %v2806
      %v2810 = vrot.slane %v2809, 4
      %v2811 = vadd.f32 %v2809, %v2810
      %v2812 = vrot.slane %v2811, 2
      %v2813 = vadd.f32 %v2811, %v2812
      %v2814 = vrot.slane %v2813, 1
      %v2815 = vadd.f32 %v2813, %v2814
      %v2816 = vadd.f32 %v2776, %v2815
      %s2817 = scalar_lea.vmem %s231, 240
      %2818 = vst [vmem:[%s2817 - $0x6] sm:$0xc0] %v2276
      %2819 = vst [vmem:[%s2817 + $0x2] sm:$0xff] %v2277
      %2820 = vst [vmem:[%s2817 + $0xa] sm:$0x3f] %v2278
      %v2823 = vrot.slane %v2276, 6
      %v2824 = vrot.slane %v2277, 6
      %v2825 = vsel %vm2390, %v2823, %v2824
      %v2826 = vrot.slane %v2278, 6
      %v2827 = vsel %vm2390, %v2824, %v2826
      %v2830 = vadd.f32 %v2825, %v2827
      %v2831 = vrot.slane %v2830, 4
      %v2832 = vadd.f32 %v2830, %v2831
      %v2833 = vrot.slane %v2832, 2
      %v2834 = vadd.f32 %v2832, %v2833
      %v2835 = vrot.slane %v2834, 1
      %v2836 = vadd.f32 %v2834, %v2835
      %v2837 = vadd.f32 %v2797, %v2836
      %v2838 = vmul.f32 %v2277, %v2277
      %v2839 = vmul.f32 %v2278, %v2278
      %v2842 = vrot.slane %v2799, 6
      %v2843 = vrot.slane %v2838, 6
      %v2844 = vsel %vm2390, %v2842, %v2843
      %v2845 = vrot.slane %v2839, 6
      %v2846 = vsel %vm2390, %v2843, %v2845
      %v2849 = vadd.f32 %v2844, %v2846
      %v2850 = vrot.slane %v2849, 4
      %v2851 = vadd.f32 %v2849, %v2850
      %v2852 = vrot.slane %v2851, 2
      %v2853 = vadd.f32 %v2851, %v2852
      %v2854 = vrot.slane %v2853, 1
      %v2855 = vadd.f32 %v2853, %v2854
      %v2856 = vadd.f32 %v2816, %v2855
      %v2857 = vlaneseq
      %v2858 = vshrl.u32 %v2857, 7
      %vm2859 = vcmp.eq.s32.totalorder %v2858, 0
      %vm2860 = vcmp.eq.s32.totalorder %v2858, 1
      %v2861 = vsel %vm2860, %v2856, 0.0
      %v2862 = vsel %vm2859, %v2837, %v2861
      %2863 = vst [vmem:[%s235] sm:$0xff] %v2862
      %p2864 = scmp.lt.s32.totalorder %s17, 1
      %s2865 = scalar_select %p2864, %s17, 1
      %s2866 = smul.addr %s2865, 32
      %s2867 = smul.addr %s2866, 8
      %s2868 = scalar_lea.vmem %s4, %s2867
      %p2869 = scmp.lt.s32.totalorder %s17, 1
      %s2870 = scalar_select %p2869, %s17, 1
      %s2871 = smul.addr %s2870, 8
      %s2872 = scalar_lea.vmem %s5, %s2871
      // Predicated region
      $region37: #{bottleneck_forward.5} parent=35 // pred_check
        %p2873 = pneg %p124
      $region38: #{bottleneck_forward.5} parent=35 // pred_check_branch
        %2875 = sbr.rel (%p2873) target = $region40
      $region39: #{bottleneck_forward.5} parent=35 // pred_region
        _
      $region40: #{bottleneck_forward.5} parent=35 // pred_fallthru
        _
      // Predicated region
      $region41: #{bottleneck_forward.5} parent=35 // pred_check
        %p2876 = pneg %p150
      $region42: #{bottleneck_forward.5} parent=35 // pred_check_branch
        %2878 = sbr.rel (%p2876) target = $region44
      $region43: #{bottleneck_forward.5} parent=35 // pred_region
        _
      $region44: #{bottleneck_forward.5} parent=35 // pred_fallthru
        _
    $region36: #{bottleneck_forward.5} parent=5 // pred_fallthru
      _
    %p2879 = scmp.le.s32.totalorder 2, %s12
    // Predicated region
    $region45: #{bottleneck_forward.5} parent=5 // pred_check
      %p2880 = pneg %p2879
    $region46: #{bottleneck_forward.5} parent=5 // pred_check_branch
      %2882 = sbr.rel (%p2880) target = $region48
    $region47: #{bottleneck_forward.5} parent=5 // pred_region
      %s2883 = ssub.s32 %s12, 2
      // Predicated region
      $region49: #{bottleneck_forward.5} parent=47 // pred_check
        %p2884 = pneg %p130
      $region50: #{bottleneck_forward.5} parent=47 // pred_check_branch
        %2886 = sbr.rel (%p2884) target = $region52
      $region51: #{bottleneck_forward.5} parent=47 // pred_region
        %p2887 = scmp.lt.s32.totalorder %s18, 1
        %s2888 = scalar_select %p2887, %s18, 1
        %s2889 = smul.addr %s2888, 32
        %s2890 = smul.addr %s2889, 8
        %s2891 = scalar_lea.vmem %s4, %s2890
      $region52: #{bottleneck_forward.5} parent=47 // pred_fallthru
        _
      // Predicated region
      $region53: #{bottleneck_forward.5} parent=47 // pred_check
        %p2892 = pneg %p156
      $region54: #{bottleneck_forward.5} parent=47 // pred_check_branch
        %2894 = sbr.rel (%p2892) target = $region56
      $region55: #{bottleneck_forward.5} parent=47 // pred_region
        %p2895 = scmp.lt.s32.totalorder %s18, 1
        %s2896 = scalar_select %p2895, %s18, 1
        %s2897 = smul.addr %s2896, 8
        %s2898 = scalar_lea.vmem %s5, %s2897
      $region56: #{bottleneck_forward.5} parent=47 // pred_fallthru
        _
    $region48: #{bottleneck_forward.5} parent=5 // pred_fallthru
      _
  $region6: #{bottleneck_forward.5} parent=0 // loop_footer
    %s16 = sadd.s32 1, %s12
  $region7: #{bottleneck_forward.5} parent=0 // loop_footer_branch
    %11 = sbr.rel target = $region3
  $region8: #{bottleneck_forward.5} parent=0 // loop_exit
    _

</llo_original>
